<compile_context>
chip_gen: v6e
topology: v6e:2x2x1
jax: 0.10.0
libtpu: 0.0.40
codegen_flags: <defaults>
</compile_context>

<pallas_src>
import jax
import jax.numpy as jnp
from jax import lax
from jax.experimental import pallas as pl
from jax.experimental.pallas import tpu as pltpu


def _round_up(x: int, m: int) -> int:
    return ((x + m - 1) // m) * m


def _device_kind() -> str:
    try:
        return jax.devices()[0].device_kind.lower()
    except Exception:
        return ""


def _make_gdecoder_kernel(seq_len: int, Hp: int, Rp: int, rule_dim: int,
                          bt: int, fused: bool):
    """Hp/Rp: hidden/rule dims padded to 128 lanes; bt: batch tile rows."""
    f32 = jnp.float32
    bf16 = jnp.bfloat16

    def kernel(*refs):
        if fused:
            (z_ref, start_ref, fc_w_ref, fc_b_ref,
             w_comb_ref, b_comb_ref, out_w_ref, out_b_ref, o_ref) = refs
        else:
            (z_ref, start_ref, fc_w_ref, fc_b_ref,
             w_x_ref, b_x_ref, w_h_ref, b_h_ref,
             out_w_ref, out_b_ref, o_ref) = refs

        # h0 = fc(z)  (bf16 operands, f32 accumulate)
        h = (jnp.dot(z_ref[...].astype(bf16), fc_w_ref[...],
                     preferred_element_type=f32)
             + fc_b_ref[...])

        # x0 = start token broadcast over the batch tile
        x = jnp.broadcast_to(start_ref[...], (bt, Rp))

        # Loop invariants (hoisted): lane iota; combined padded-lane mask +
        # deterministic first-index tie-break penalty for the greedy step.
        lane = lax.broadcasted_iota(jnp.int32, (bt, Rp), 1)
        tie_pen = jnp.where(lane < rule_dim, lane.astype(f32) * 1e-6, 1e9)

        # Fully unrolled timestep loop: static store indices, full LLO
        # scheduler visibility across the serial GRU dependency chain.
        for t in range(seq_len):
            if fused:
                # [x | h] @ block-diag weight -> [r_pre | z_pre | i_n | h_n]
                xh = jnp.concatenate([x.astype(bf16), h.astype(bf16)], axis=1)
                g = (jnp.dot(xh, w_comb_ref[...], preferred_element_type=f32)
                     + b_comb_ref[...])
                r = jax.nn.sigmoid(g[:, 0 * Hp:1 * Hp])
                zg = jax.nn.sigmoid(g[:, 1 * Hp:2 * Hp])
                n = jnp.tanh(g[:, 2 * Hp:3 * Hp] + r * g[:, 3 * Hp:4 * Hp])
            else:
                # v5e: two K=128 matmuls beat one K=256 with zero blocks.
                gx = (jnp.dot(x.astype(bf16), w_x_ref[...],
                              preferred_element_type=f32) + b_x_ref[...])
                gh = (jnp.dot(h.astype(bf16), w_h_ref[...],
                              preferred_element_type=f32) + b_h_ref[...])
                r = jax.nn.sigmoid(gx[:, 0 * Hp:1 * Hp] + gh[:, 0 * Hp:1 * Hp])
                zg = jax.nn.sigmoid(gx[:, 1 * Hp:2 * Hp] + gh[:, 1 * Hp:2 * Hp])
                n = jnp.tanh(gx[:, 2 * Hp:3 * Hp] + r * gh[:, 2 * Hp:3 * Hp])

            # PyTorch GRU cell update.
            h = (1.0 - zg) * n + zg * h

            # Output projection.
            logits = (jnp.dot(h.astype(bf16), out_w_ref[...],
                              preferred_element_type=f32)
                      + out_b_ref[...])

            # TODO(synk): mask_fn.get_mask / update_stack is host-side Python
            # (per-sample grammar stack walking) with no Pallas equivalent; a
            # zero mask is used here (equivalent to an all-allowed grammar).
            logits = jnp.clip(logits, -10.0, 10.0)

            # Dense (bt, Rp) tile store in (seq_len, B, Rp) layout.
            o_ref[t, :, :] = logits

            # Greedy next token: max-reduce + compare. tie_pen subtracts
            # lane*1e-6 on valid lanes (first-index tie-break, torch.argmax
            # style) and 1e9 on padded lanes (never selected) -> unique max,
            # compare yields exact one-hot feedback.
            tb = logits - tie_pen
            m = jnp.max(tb, axis=1, keepdims=True)
            x = (tb == m).astype(f32)

    return kernel


def gdecoder_forward(z, start_token, params, *, seq_len, rule_dim, hidden_dim):
    """z: (B, latent_dim) f32, start_token: (rule_dim,) one-hot f32."""
    B, latent_dim = z.shape
    H, R = hidden_dim, rule_dim
    f32, bf16 = jnp.float32, jnp.bfloat16

    kind = _device_kind()
    is_v5e = ("v5 lite" in kind) or ("v5e" in kind) or ("v5litepod" in kind)
    two_cores = "v7" in kind            # v7x: 2 TensorCores per chip
    fused = not is_v5e                  # fused block-diag matmul on v6e/v7x

    # Lane padding (128) for hidden / rule dims.
    Hp = _round_up(max(H, 128), 128)
    Rp = _round_up(max(R, 128), 128)

    # Batch padding / tiling: sublane-pad to 8; target 256-row tiles (fills the
    # v6e/v7x 256-row MXU); on v7x ensure >= 2 tiles so both TCs run.
    Bp = _round_up(max(B, 8), 8)
    bt_target = 256
    nb = max(1, -(-Bp // bt_target))
    if two_cores and Bp >= 16:
        nb = max(nb, 2)
    bt = _round_up(-(-Bp // nb), 8)
    Bp = nb * bt

    # ---- host-side zero-padded parameter packing (one-time) ----
    fc_w_p = jnp.zeros((latent_dim, Hp), f32).at[:, :H].set(params["fc_w"]).astype(bf16)
    fc_b_p = jnp.zeros((1, Hp), f32).at[0, :H].set(params["fc_b"])

    w_ih, w_hh = params["w_ih"], params["w_hh"]
    b_ih, b_hh = params["b_ih"], params["b_hh"]

    if fused:
        # Columns: [r_pre | z_pre | i_n | h_n]; rows: [x (Rp) | h (Hp)].
        # r/z blocks get both x- and h-row weights with merged biases; the n
        # gate stays split (i_n from x rows, h_n from h rows) because of the
        # r * (W_hn h + b_hn) coupling.
        w_comb = jnp.zeros((Rp + Hp, 4 * Hp), f32)
        b_comb = jnp.zeros((1, 4 * Hp), f32)
        for g in range(2):  # 0: r, 1: z
            w_comb = w_comb.at[:R, g * Hp:g * Hp + H].set(w_ih[:, g * H:(g + 1) * H])
            w_comb = w_comb.at[Rp:Rp + H, g * Hp:g * Hp + H].set(w_hh[:, g * H:(g + 1) * H])
            b_comb = b_comb.at[0, g * Hp:g * Hp + H].set(
                b_ih[g * H:(g + 1) * H] + b_hh[g * H:(g + 1) * H])
        w_comb = w_comb.at[:R, 2 * Hp:2 * Hp + H].set(w_ih[:, 2 * H:3 * H])
        b_comb = b_comb.at[0, 2 * Hp:2 * Hp + H].set(b_ih[2 * H:3 * H])
        w_comb = w_comb.at[Rp:Rp + H, 3 * Hp:3 * Hp + H].set(w_hh[:, 2 * H:3 * H])
        b_comb = b_comb.at[0, 3 * Hp:3 * Hp + H].set(b_hh[2 * H:3 * H])
        w_comb = w_comb.astype(bf16)
    else:
        # Split weights for v5e: x @ W_x (K=Rp) and h @ W_h (K=Hp), 3 gate
        # column blocks each (r, z, n), biases kept separate.
        w_x = jnp.zeros((Rp, 3 * Hp), f32)
        w_h = jnp.zeros((Hp, 3 * Hp), f32)
        b_x = jnp.zeros((1, 3 * Hp), f32)
        b_h = jnp.zeros((1, 3 * Hp), f32)
        for g in range(3):
            w_x = w_x.at[:R, g * Hp:g * Hp + H].set(w_ih[:, g * H:(g + 1) * H])
            w_h = w_h.at[:H, g * Hp:g * Hp + H].set(w_hh[:, g * H:(g + 1) * H])
            b_x = b_x.at[0, g * Hp:g * Hp + H].set(b_ih[g * H:(g + 1) * H])
            b_h = b_h.at[0, g * Hp:g * Hp + H].set(b_hh[g * H:(g + 1) * H])
        w_x = w_x.astype(bf16)
        w_h = w_h.astype(bf16)

    out_w_p = jnp.zeros((Hp, Rp), f32).at[:H, :R].set(params["out_w"]).astype(bf16)
    out_b_p = jnp.zeros((1, Rp), f32).at[0, :R].set(params["out_b"])
    start_p = jnp.zeros((1, Rp), f32).at[0, :R].set(start_token)
    z_p = jnp.zeros((Bp, latent_dim), f32).at[:B].set(z)

    kernel = _make_gdecoder_kernel(seq_len, Hp, Rp, R, bt, fused)

    # Constant-index operands are never re-DMA'd across grid steps: single
    # buffer (no double-buffer VMEM waste, no redundant prologue DMA).
    def const_spec(shape):
        return pl.BlockSpec(shape, lambda b: (0, 0), pipeline_mode=pl.Buffered(1))

    in_specs = [
        pl.BlockSpec((bt, latent_dim), lambda b: (b, 0)),   # z (batch-tiled)
        const_spec((1, Rp)),                                # start token
        const_spec((latent_dim, Hp)),                       # fc_w
        const_spec((1, Hp)),                                # fc_b
    ]
    if fused:
        args = (z_p, start_p, fc_w_p, fc_b_p, w_comb, b_comb, out_w_p, out_b_p)
        in_specs += [const_spec((Rp + Hp, 4 * Hp)),         # fused GRU weight
                     const_spec((1, 4 * Hp))]               # fused GRU bias
    else:
        args = (z_p, start_p, fc_w_p, fc_b_p, w_x, b_x, w_h, b_h, out_w_p, out_b_p)
        in_specs += [const_spec((Rp, 3 * Hp)),              # W_ih (split)
                     const_spec((1, 3 * Hp)),               # b_ih
                     const_spec((Hp, 3 * Hp)),              # W_hh (split)
                     const_spec((1, 3 * Hp))]               # b_hh
    in_specs += [const_spec((Hp, Rp)),                      # out_w
                 const_spec((1, Rp))]                       # out_b

    # Output emitted as (seq_len, Bp, Rp): each step's store is one dense
    # (bt, Rp) tile (no masked single-sublane vst); cheap transpose afterwards.
    out = pl.pallas_call(
        kernel,
        out_shape=jax.ShapeDtypeStruct((seq_len, Bp, Rp), f32),
        grid=(nb,),
        in_specs=in_specs,
        out_specs=pl.BlockSpec((seq_len, bt, Rp), lambda b: (0, b, 0)),
        compiler_params=pltpu.CompilerParams(
            dimension_semantics=("parallel",)),
    )(*args)

    # (seq_len, Bp, Rp) -> (B, seq_len, rule_dim), dropping padding.
    return jnp.transpose(out, (1, 0, 2))[:B, :, :R]


def init_params(key, *, rule_dim, hidden_dim, latent_dim):
    ks = jax.random.split(key, 8)
    s = 0.1
    return {
        "fc_w":  s * jax.random.normal(ks[0], (latent_dim, hidden_dim), jnp.float32),
        "fc_b":  s * jax.random.normal(ks[1], (hidden_dim,), jnp.float32),
        # GRU: concatenated gates in PyTorch order (r, z, n), stored transposed
        "w_ih":  s * jax.random.normal(ks[2], (rule_dim, 3 * hidden_dim), jnp.float32),
        "w_hh":  s * jax.random.normal(ks[3], (hidden_dim, 3 * hidden_dim), jnp.float32),
        "b_ih":  s * jax.random.normal(ks[4], (3 * hidden_dim,), jnp.float32),
        "b_hh":  s * jax.random.normal(ks[5], (3 * hidden_dim,), jnp.float32),
        "out_w": s * jax.random.normal(ks[6], (hidden_dim, rule_dim), jnp.float32),
        "out_b": s * jax.random.normal(ks[7], (rule_dim,), jnp.float32),
    }


if __name__ == "__main__":
    # Small shapes consistent with the module's forward.
    B, SEQ_LEN, RULE_DIM, HIDDEN_DIM, LATENT_DIM = 4, 8, 16, 32, 32

    key = jax.random.PRNGKey(0)
    k_z, k_p = jax.random.split(key)

    z = jax.random.normal(k_z, (B, LATENT_DIM), jnp.float32)
    start_token = jnp.zeros((RULE_DIM,), jnp.float32).at[0].set(1.0)
    params = init_params(k_p, rule_dim=RULE_DIM, hidden_dim=HIDDEN_DIM,
                         latent_dim=LATENT_DIM)

    out = gdecoder_forward(z, start_token, params,
                           seq_len=SEQ_LEN, rule_dim=RULE_DIM,
                           hidden_dim=HIDDEN_DIM)
    jax.block_until_ready(out)
    assert out.shape == (B, SEQ_LEN, RULE_DIM)
    print("KERNEL_OK")
</pallas_src>

<mosaic_0001>
module attributes {stable_mosaic.version = 11 : i64} {
  func.func @kernel(%arg0: i32, %arg1: memref<8x32xf32, #tpu.memory_space<vmem>>, %arg2: memref<1x128xf32, #tpu.memory_space<vmem>>, %arg3: memref<32x128xbf16, #tpu.memory_space<vmem>>, %arg4: memref<1x128xf32, #tpu.memory_space<vmem>>, %arg5: memref<256x512xbf16, #tpu.memory_space<vmem>>, %arg6: memref<1x512xf32, #tpu.memory_space<vmem>>, %arg7: memref<128x128xbf16, #tpu.memory_space<vmem>>, %arg8: memref<1x128xf32, #tpu.memory_space<vmem>>, %arg9: memref<8x8x128xf32, #tpu.memory_space<vmem>>) attributes {dimension_semantics = [#tpu.dimension_semantics<parallel>], iteration_bounds = array<i64: 1>, scalar_prefetch = 0 : i64, scratch_operands = 0 : i64, tpu.core_type = #tpu.core_type<tc>, window_params = [{transform_indices = @transform_0, window_bounds = array<i64: 8, 32>}, {pipeline_mode = #tpu.pipeline_mode<synchronous>, transform_indices = @transform_1, window_bounds = array<i64: 1, 128>}, {pipeline_mode = #tpu.pipeline_mode<synchronous>, transform_indices = @transform_2, window_bounds = array<i64: 32, 128>}, {pipeline_mode = #tpu.pipeline_mode<synchronous>, transform_indices = @transform_3, window_bounds = array<i64: 1, 128>}, {pipeline_mode = #tpu.pipeline_mode<synchronous>, transform_indices = @transform_4, window_bounds = array<i64: 256, 512>}, {pipeline_mode = #tpu.pipeline_mode<synchronous>, transform_indices = @transform_5, window_bounds = array<i64: 1, 512>}, {pipeline_mode = #tpu.pipeline_mode<synchronous>, transform_indices = @transform_6, window_bounds = array<i64: 128, 128>}, {pipeline_mode = #tpu.pipeline_mode<synchronous>, transform_indices = @transform_7, window_bounds = array<i64: 1, 128>}, {transform_indices = @transform_8, window_bounds = array<i64: 8, 8, 128>}]} {
    %c0 = arith.constant 0 : index
    %c0_0 = arith.constant 0 : index
    %0 = vector.load %arg1[%c0, %c0_0] : memref<8x32xf32, #tpu.memory_space<vmem>>, vector<8x32xf32>
    %1 = arith.truncf %0 : vector<8x32xf32> to vector<8x32xbf16>
    %c0_1 = arith.constant 0 : index
    %c0_2 = arith.constant 0 : index
    %2 = vector.load %arg3[%c0_1, %c0_2] : memref<32x128xbf16, #tpu.memory_space<vmem>>, vector<32x128xbf16>
    %cst = arith.constant dense<0.000000e+00> : vector<8x128xf32>
    %3 = tpu.matmul %1, %2, %cst {dimension_numbers = #tpu.dot_dimension_numbers<[1], [0], [0], [1], [0, 0, 1, 1], [], []>} : vector<8x32xbf16>, vector<32x128xbf16>, vector<8x128xf32> -> vector<8x128xf32>
    %c0_3 = arith.constant 0 : index
    %c0_4 = arith.constant 0 : index
    %4 = vector.load %arg4[%c0_3, %c0_4] : memref<1x128xf32, #tpu.memory_space<vmem>>, vector<1x128xf32>
    %5 = vector.broadcast %4 : vector<1x128xf32> to vector<8x128xf32>
    %6 = arith.addf %3, %5 : vector<8x128xf32>
    %c0_5 = arith.constant 0 : index
    %c0_6 = arith.constant 0 : index
    %7 = vector.load %arg2[%c0_5, %c0_6] : memref<1x128xf32, #tpu.memory_space<vmem>>, vector<1x128xf32>
    %8 = vector.shape_cast %7 : vector<1x128xf32> to vector<1x128xf32>
    %9 = vector.broadcast %8 : vector<1x128xf32> to vector<8x128xf32>
    %10 = tpu.iota {dimensions = array<i32: 1>} : vector<8x128xi32>
    %c16_i32 = arith.constant 16 : i32
    %11 = vector.broadcast %c16_i32 : i32 to vector<8x128xi32>
    %12 = arith.cmpi slt, %10, %11 : vector<8x128xi32>
    %13 = arith.sitofp %10 : vector<8x128xi32> to vector<8x128xf32>
    %cst_7 = arith.constant 9.99999997E-7 : f32
    %14 = vector.broadcast %cst_7 : f32 to vector<8x128xf32>
    %15 = arith.mulf %13, %14 : vector<8x128xf32>
    %cst_8 = arith.constant 1.000000e+09 : f32
    %16 = vector.broadcast %cst_8 : f32 to vector<8x128xf32>
    %17 = arith.select %12, %15, %16 : vector<8x128xi1>, vector<8x128xf32>
    %18 = arith.truncf %9 : vector<8x128xf32> to vector<8x128xbf16>
    %19 = arith.truncf %6 : vector<8x128xf32> to vector<8x128xbf16>
    %20 = tpu.concatenate %18, %19 in 1 : vector<8x128xbf16>, vector<8x128xbf16> -> vector<8x256xbf16>
    %c0_9 = arith.constant 0 : index
    %c0_10 = arith.constant 0 : index
    %21 = vector.load %arg5[%c0_9, %c0_10] : memref<256x512xbf16, #tpu.memory_space<vmem>>, vector<256x512xbf16>
    %cst_11 = arith.constant dense<0.000000e+00> : vector<8x512xf32>
    %22 = tpu.matmul %20, %21, %cst_11 {dimension_numbers = #tpu.dot_dimension_numbers<[1], [0], [0], [1], [0, 0, 1, 1], [], []>} : vector<8x256xbf16>, vector<256x512xbf16>, vector<8x512xf32> -> vector<8x512xf32>
    %c0_12 = arith.constant 0 : index
    %c0_13 = arith.constant 0 : index
    %23 = vector.load %arg6[%c0_12, %c0_13] : memref<1x512xf32, #tpu.memory_space<vmem>>, vector<1x512xf32>
    %24 = vector.broadcast %23 : vector<1x512xf32> to vector<8x512xf32>
    %25 = arith.addf %22, %24 : vector<8x512xf32>
    %26 = vector.extract_strided_slice %25 {offsets = [0, 0], sizes = [8, 128], strides = [1, 1]} : vector<8x512xf32> to vector<8x128xf32>
    %27 = arith.negf %26 : vector<8x128xf32>
    %28 = math.exp %27 : vector<8x128xf32>
    %cst_14 = arith.constant 1.000000e+00 : f32
    %29 = vector.broadcast %cst_14 : f32 to vector<8x128xf32>
    %30 = arith.addf %29, %28 : vector<8x128xf32>
    %31 = arith.divf %29, %30 : vector<8x128xf32>
    %32 = vector.extract_strided_slice %25 {offsets = [0, 128], sizes = [8, 128], strides = [1, 1]} : vector<8x512xf32> to vector<8x128xf32>
    %33 = arith.negf %32 : vector<8x128xf32>
    %34 = math.exp %33 : vector<8x128xf32>
    %cst_15 = arith.constant 1.000000e+00 : f32
    %35 = vector.broadcast %cst_15 : f32 to vector<8x128xf32>
    %36 = arith.addf %35, %34 : vector<8x128xf32>
    %37 = arith.divf %35, %36 : vector<8x128xf32>
    %38 = vector.extract_strided_slice %25 {offsets = [0, 256], sizes = [8, 128], strides = [1, 1]} : vector<8x512xf32> to vector<8x128xf32>
    %39 = vector.extract_strided_slice %25 {offsets = [0, 384], sizes = [8, 128], strides = [1, 1]} : vector<8x512xf32> to vector<8x128xf32>
    %40 = arith.mulf %31, %39 : vector<8x128xf32>
    %41 = arith.addf %38, %40 : vector<8x128xf32>
    %42 = math.tanh %41 : vector<8x128xf32>
    %cst_16 = arith.constant 1.000000e+00 : f32
    %43 = vector.broadcast %cst_16 : f32 to vector<8x128xf32>
    %44 = arith.subf %43, %37 : vector<8x128xf32>
    %45 = arith.mulf %44, %42 : vector<8x128xf32>
    %46 = arith.mulf %37, %6 : vector<8x128xf32>
    %47 = arith.addf %45, %46 : vector<8x128xf32>
    %48 = arith.truncf %47 : vector<8x128xf32> to vector<8x128xbf16>
    %c0_17 = arith.constant 0 : index
    %c0_18 = arith.constant 0 : index
    %49 = vector.load %arg7[%c0_17, %c0_18] : memref<128x128xbf16, #tpu.memory_space<vmem>>, vector<128x128xbf16>
    %cst_19 = arith.constant dense<0.000000e+00> : vector<8x128xf32>
    %50 = tpu.matmul %48, %49, %cst_19 {dimension_numbers = #tpu.dot_dimension_numbers<[1], [0], [0], [1], [0, 0, 1, 1], [], []>} : vector<8x128xbf16>, vector<128x128xbf16>, vector<8x128xf32> -> vector<8x128xf32>
    %c0_20 = arith.constant 0 : index
    %c0_21 = arith.constant 0 : index
    %51 = vector.load %arg8[%c0_20, %c0_21] : memref<1x128xf32, #tpu.memory_space<vmem>>, vector<1x128xf32>
    %52 = vector.broadcast %51 : vector<1x128xf32> to vector<8x128xf32>
    %53 = arith.addf %50, %52 : vector<8x128xf32>
    %cst_22 = arith.constant -1.000000e+01 : f32
    %cst_23 = arith.constant 1.000000e+01 : f32
    %54 = vector.broadcast %cst_22 : f32 to vector<8x128xf32>
    %55 = arith.maximumf %54, %53 : vector<8x128xf32>
    %56 = vector.broadcast %cst_23 : f32 to vector<8x128xf32>
    %57 = arith.minimumf %56, %55 : vector<8x128xf32>
    %c0_24 = arith.constant 0 : index
    %c0_25 = arith.constant 0 : index
    %c0_26 = arith.constant 0 : index
    %58 = vector.load %arg9[%c0_24, %c0_25, %c0_26] : memref<8x8x128xf32, #tpu.memory_space<vmem>>, vector<1x8x128xf32>
    %59 = vector.shape_cast %58 : vector<1x8x128xf32> to vector<8x128xf32>
    %60 = vector.shape_cast %57 : vector<8x128xf32> to vector<1x8x128xf32>
    tpu.vector_store %arg9[%c0_24, %c0_25, %c0_26], %60 {strides = array<i32>} : memref<8x8x128xf32, #tpu.memory_space<vmem>>, vector<1x8x128xf32>,
    %61 = arith.subf %57, %17 : vector<8x128xf32>
    %cst_27 = arith.constant dense<0xFF800000> : vector<8xf32>
    %62 = vector.multi_reduction <maximumf>, %61, %cst_27 [1] : vector<8x128xf32> to vector<8xf32>
    %63 = vector.shape_cast %62 : vector<8xf32> to vector<8x1xf32>
    %64 = vector.broadcast %63 : vector<8x1xf32> to vector<8x128xf32>
    %65 = arith.cmpf oeq, %61, %64 : vector<8x128xf32>
    %66 = arith.extui %65 : vector<8x128xi1> to vector<8x128xi32>
    %67 = arith.sitofp %66 : vector<8x128xi32> to vector<8x128xf32>
    %68 = arith.truncf %67 : vector<8x128xf32> to vector<8x128xbf16>
    %69 = arith.truncf %47 : vector<8x128xf32> to vector<8x128xbf16>
    %70 = tpu.concatenate %68, %69 in 1 : vector<8x128xbf16>, vector<8x128xbf16> -> vector<8x256xbf16>
    %c0_28 = arith.constant 0 : index
    %c0_29 = arith.constant 0 : index
    %71 = vector.load %arg5[%c0_28, %c0_29] : memref<256x512xbf16, #tpu.memory_space<vmem>>, vector<256x512xbf16>
    %cst_30 = arith.constant dense<0.000000e+00> : vector<8x512xf32>
    %72 = tpu.matmul %70, %71, %cst_30 {dimension_numbers = #tpu.dot_dimension_numbers<[1], [0], [0], [1], [0, 0, 1, 1], [], []>} : vector<8x256xbf16>, vector<256x512xbf16>, vector<8x512xf32> -> vector<8x512xf32>
    %c0_31 = arith.constant 0 : index
    %c0_32 = arith.constant 0 : index
    %73 = vector.load %arg6[%c0_31, %c0_32] : memref<1x512xf32, #tpu.memory_space<vmem>>, vector<1x512xf32>
    %74 = vector.broadcast %73 : vector<1x512xf32> to vector<8x512xf32>
    %75 = arith.addf %72, %74 : vector<8x512xf32>
    %76 = vector.extract_strided_slice %75 {offsets = [0, 0], sizes = [8, 128], strides = [1, 1]} : vector<8x512xf32> to vector<8x128xf32>
    %77 = arith.negf %76 : vector<8x128xf32>
    %78 = math.exp %77 : vector<8x128xf32>
    %cst_33 = arith.constant 1.000000e+00 : f32
    %79 = vector.broadcast %cst_33 : f32 to vector<8x128xf32>
    %80 = arith.addf %79, %78 : vector<8x128xf32>
    %81 = arith.divf %79, %80 : vector<8x128xf32>
    %82 = vector.extract_strided_slice %75 {offsets = [0, 128], sizes = [8, 128], strides = [1, 1]} : vector<8x512xf32> to vector<8x128xf32>
    %83 = arith.negf %82 : vector<8x128xf32>
    %84 = math.exp %83 : vector<8x128xf32>
    %cst_34 = arith.constant 1.000000e+00 : f32
    %85 = vector.broadcast %cst_34 : f32 to vector<8x128xf32>
    %86 = arith.addf %85, %84 : vector<8x128xf32>
    %87 = arith.divf %85, %86 : vector<8x128xf32>
    %88 = vector.extract_strided_slice %75 {offsets = [0, 256], sizes = [8, 128], strides = [1, 1]} : vector<8x512xf32> to vector<8x128xf32>
    %89 = vector.extract_strided_slice %75 {offsets = [0, 384], sizes = [8, 128], strides = [1, 1]} : vector<8x512xf32> to vector<8x128xf32>
    %90 = arith.mulf %81, %89 : vector<8x128xf32>
    %91 = arith.addf %88, %90 : vector<8x128xf32>
    %92 = math.tanh %91 : vector<8x128xf32>
    %cst_35 = arith.constant 1.000000e+00 : f32
    %93 = vector.broadcast %cst_35 : f32 to vector<8x128xf32>
    %94 = arith.subf %93, %87 : vector<8x128xf32>
    %95 = arith.mulf %94, %92 : vector<8x128xf32>
    %96 = arith.mulf %87, %47 : vector<8x128xf32>
    %97 = arith.addf %95, %96 : vector<8x128xf32>
    %98 = arith.truncf %97 : vector<8x128xf32> to vector<8x128xbf16>
    %c0_36 = arith.constant 0 : index
    %c0_37 = arith.constant 0 : index
    %99 = vector.load %arg7[%c0_36, %c0_37] : memref<128x128xbf16, #tpu.memory_space<vmem>>, vector<128x128xbf16>
    %cst_38 = arith.constant dense<0.000000e+00> : vector<8x128xf32>
    %100 = tpu.matmul %98, %99, %cst_38 {dimension_numbers = #tpu.dot_dimension_numbers<[1], [0], [0], [1], [0, 0, 1, 1], [], []>} : vector<8x128xbf16>, vector<128x128xbf16>, vector<8x128xf32> -> vector<8x128xf32>
    %c0_39 = arith.constant 0 : index
    %c0_40 = arith.constant 0 : index
    %101 = vector.load %arg8[%c0_39, %c0_40] : memref<1x128xf32, #tpu.memory_space<vmem>>, vector<1x128xf32>
    %102 = vector.broadcast %101 : vector<1x128xf32> to vector<8x128xf32>
    %103 = arith.addf %100, %102 : vector<8x128xf32>
    %cst_41 = arith.constant -1.000000e+01 : f32
    %cst_42 = arith.constant 1.000000e+01 : f32
    %104 = vector.broadcast %cst_41 : f32 to vector<8x128xf32>
    %105 = arith.maximumf %104, %103 : vector<8x128xf32>
    %106 = vector.broadcast %cst_42 : f32 to vector<8x128xf32>
    %107 = arith.minimumf %106, %105 : vector<8x128xf32>
    %c1 = arith.constant 1 : index
    %c0_43 = arith.constant 0 : index
    %c0_44 = arith.constant 0 : index
    %108 = vector.load %arg9[%c1, %c0_43, %c0_44] : memref<8x8x128xf32, #tpu.memory_space<vmem>>, vector<1x8x128xf32>
    %109 = vector.shape_cast %108 : vector<1x8x128xf32> to vector<8x128xf32>
    %110 = vector.shape_cast %107 : vector<8x128xf32> to vector<1x8x128xf32>
    tpu.vector_store %arg9[%c1, %c0_43, %c0_44], %110 {strides = array<i32>} : memref<8x8x128xf32, #tpu.memory_space<vmem>>, vector<1x8x128xf32>,
    %111 = arith.subf %107, %17 : vector<8x128xf32>
    %cst_45 = arith.constant dense<0xFF800000> : vector<8xf32>
    %112 = vector.multi_reduction <maximumf>, %111, %cst_45 [1] : vector<8x128xf32> to vector<8xf32>
    %113 = vector.shape_cast %112 : vector<8xf32> to vector<8x1xf32>
    %114 = vector.broadcast %113 : vector<8x1xf32> to vector<8x128xf32>
    %115 = arith.cmpf oeq, %111, %114 : vector<8x128xf32>
    %116 = arith.extui %115 : vector<8x128xi1> to vector<8x128xi32>
    %117 = arith.sitofp %116 : vector<8x128xi32> to vector<8x128xf32>
    %118 = arith.truncf %117 : vector<8x128xf32> to vector<8x128xbf16>
    %119 = arith.truncf %97 : vector<8x128xf32> to vector<8x128xbf16>
    %120 = tpu.concatenate %118, %119 in 1 : vector<8x128xbf16>, vector<8x128xbf16> -> vector<8x256xbf16>
    %c0_46 = arith.constant 0 : index
    %c0_47 = arith.constant 0 : index
    %121 = vector.load %arg5[%c0_46, %c0_47] : memref<256x512xbf16, #tpu.memory_space<vmem>>, vector<256x512xbf16>
    %cst_48 = arith.constant dense<0.000000e+00> : vector<8x512xf32>
    %122 = tpu.matmul %120, %121, %cst_48 {dimension_numbers = #tpu.dot_dimension_numbers<[1], [0], [0], [1], [0, 0, 1, 1], [], []>} : vector<8x256xbf16>, vector<256x512xbf16>, vector<8x512xf32> -> vector<8x512xf32>
    %c0_49 = arith.constant 0 : index
    %c0_50 = arith.constant 0 : index
    %123 = vector.load %arg6[%c0_49, %c0_50] : memref<1x512xf32, #tpu.memory_space<vmem>>, vector<1x512xf32>
    %124 = vector.broadcast %123 : vector<1x512xf32> to vector<8x512xf32>
    %125 = arith.addf %122, %124 : vector<8x512xf32>
    %126 = vector.extract_strided_slice %125 {offsets = [0, 0], sizes = [8, 128], strides = [1, 1]} : vector<8x512xf32> to vector<8x128xf32>
    %127 = arith.negf %126 : vector<8x128xf32>
    %128 = math.exp %127 : vector<8x128xf32>
    %cst_51 = arith.constant 1.000000e+00 : f32
    %129 = vector.broadcast %cst_51 : f32 to vector<8x128xf32>
    %130 = arith.addf %129, %128 : vector<8x128xf32>
    %131 = arith.divf %129, %130 : vector<8x128xf32>
    %132 = vector.extract_strided_slice %125 {offsets = [0, 128], sizes = [8, 128], strides = [1, 1]} : vector<8x512xf32> to vector<8x128xf32>
    %133 = arith.negf %132 : vector<8x128xf32>
    %134 = math.exp %133 : vector<8x128xf32>
    %cst_52 = arith.constant 1.000000e+00 : f32
    %135 = vector.broadcast %cst_52 : f32 to vector<8x128xf32>
    %136 = arith.addf %135, %134 : vector<8x128xf32>
    %137 = arith.divf %135, %136 : vector<8x128xf32>
    %138 = vector.extract_strided_slice %125 {offsets = [0, 256], sizes = [8, 128], strides = [1, 1]} : vector<8x512xf32> to vector<8x128xf32>
    %139 = vector.extract_strided_slice %125 {offsets = [0, 384], sizes = [8, 128], strides = [1, 1]} : vector<8x512xf32> to vector<8x128xf32>
    %140 = arith.mulf %131, %139 : vector<8x128xf32>
    %141 = arith.addf %138, %140 : vector<8x128xf32>
    %142 = math.tanh %141 : vector<8x128xf32>
    %cst_53 = arith.constant 1.000000e+00 : f32
    %143 = vector.broadcast %cst_53 : f32 to vector<8x128xf32>
    %144 = arith.subf %143, %137 : vector<8x128xf32>
    %145 = arith.mulf %144, %142 : vector<8x128xf32>
    %146 = arith.mulf %137, %97 : vector<8x128xf32>
    %147 = arith.addf %145, %146 : vector<8x128xf32>
    %148 = arith.truncf %147 : vector<8x128xf32> to vector<8x128xbf16>
    %c0_54 = arith.constant 0 : index
    %c0_55 = arith.constant 0 : index
    %149 = vector.load %arg7[%c0_54, %c0_55] : memref<128x128xbf16, #tpu.memory_space<vmem>>, vector<128x128xbf16>
    %cst_56 = arith.constant dense<0.000000e+00> : vector<8x128xf32>
    %150 = tpu.matmul %148, %149, %cst_56 {dimension_numbers = #tpu.dot_dimension_numbers<[1], [0], [0], [1], [0, 0, 1, 1], [], []>} : vector<8x128xbf16>, vector<128x128xbf16>, vector<8x128xf32> -> vector<8x128xf32>
    %c0_57 = arith.constant 0 : index
    %c0_58 = arith.constant 0 : index
    %151 = vector.load %arg8[%c0_57, %c0_58] : memref<1x128xf32, #tpu.memory_space<vmem>>, vector<1x128xf32>
    %152 = vector.broadcast %151 : vector<1x128xf32> to vector<8x128xf32>
    %153 = arith.addf %150, %152 : vector<8x128xf32>
    %cst_59 = arith.constant -1.000000e+01 : f32
    %cst_60 = arith.constant 1.000000e+01 : f32
    %154 = vector.broadcast %cst_59 : f32 to vector<8x128xf32>
    %155 = arith.maximumf %154, %153 : vector<8x128xf32>
    %156 = vector.broadcast %cst_60 : f32 to vector<8x128xf32>
    %157 = arith.minimumf %156, %155 : vector<8x128xf32>
    %c2 = arith.constant 2 : index
    %c0_61 = arith.constant 0 : index
    %c0_62 = arith.constant 0 : index
    %158 = vector.load %arg9[%c2, %c0_61, %c0_62] : memref<8x8x128xf32, #tpu.memory_space<vmem>>, vector<1x8x128xf32>
    %159 = vector.shape_cast %158 : vector<1x8x128xf32> to vector<8x128xf32>
    %160 = vector.shape_cast %157 : vector<8x128xf32> to vector<1x8x128xf32>
    tpu.vector_store %arg9[%c2, %c0_61, %c0_62], %160 {strides = array<i32>} : memref<8x8x128xf32, #tpu.memory_space<vmem>>, vector<1x8x128xf32>,
    %161 = arith.subf %157, %17 : vector<8x128xf32>
    %cst_63 = arith.constant dense<0xFF800000> : vector<8xf32>
    %162 = vector.multi_reduction <maximumf>, %161, %cst_63 [1] : vector<8x128xf32> to vector<8xf32>
    %163 = vector.shape_cast %162 : vector<8xf32> to vector<8x1xf32>
    %164 = vector.broadcast %163 : vector<8x1xf32> to vector<8x128xf32>
    %165 = arith.cmpf oeq, %161, %164 : vector<8x128xf32>
    %166 = arith.extui %165 : vector<8x128xi1> to vector<8x128xi32>
    %167 = arith.sitofp %166 : vector<8x128xi32> to vector<8x128xf32>
    %168 = arith.truncf %167 : vector<8x128xf32> to vector<8x128xbf16>
    %169 = arith.truncf %147 : vector<8x128xf32> to vector<8x128xbf16>
    %170 = tpu.concatenate %168, %169 in 1 : vector<8x128xbf16>, vector<8x128xbf16> -> vector<8x256xbf16>
    %c0_64 = arith.constant 0 : index
    %c0_65 = arith.constant 0 : index
    %171 = vector.load %arg5[%c0_64, %c0_65] : memref<256x512xbf16, #tpu.memory_space<vmem>>, vector<256x512xbf16>
    %cst_66 = arith.constant dense<0.000000e+00> : vector<8x512xf32>
    %172 = tpu.matmul %170, %171, %cst_66 {dimension_numbers = #tpu.dot_dimension_numbers<[1], [0], [0], [1], [0, 0, 1, 1], [], []>} : vector<8x256xbf16>, vector<256x512xbf16>, vector<8x512xf32> -> vector<8x512xf32>
    %c0_67 = arith.constant 0 : index
    %c0_68 = arith.constant 0 : index
    %173 = vector.load %arg6[%c0_67, %c0_68] : memref<1x512xf32, #tpu.memory_space<vmem>>, vector<1x512xf32>
    %174 = vector.broadcast %173 : vector<1x512xf32> to vector<8x512xf32>
    %175 = arith.addf %172, %174 : vector<8x512xf32>
    %176 = vector.extract_strided_slice %175 {offsets = [0, 0], sizes = [8, 128], strides = [1, 1]} : vector<8x512xf32> to vector<8x128xf32>
    %177 = arith.negf %176 : vector<8x128xf32>
    %178 = math.exp %177 : vector<8x128xf32>
    %cst_69 = arith.constant 1.000000e+00 : f32
    %179 = vector.broadcast %cst_69 : f32 to vector<8x128xf32>
    %180 = arith.addf %179, %178 : vector<8x128xf32>
    %181 = arith.divf %179, %180 : vector<8x128xf32>
    %182 = vector.extract_strided_slice %175 {offsets = [0, 128], sizes = [8, 128], strides = [1, 1]} : vector<8x512xf32> to vector<8x128xf32>
    %183 = arith.negf %182 : vector<8x128xf32>
    %184 = math.exp %183 : vector<8x128xf32>
    %cst_70 = arith.constant 1.000000e+00 : f32
    %185 = vector.broadcast %cst_70 : f32 to vector<8x128xf32>
    %186 = arith.addf %185, %184 : vector<8x128xf32>
    %187 = arith.divf %185, %186 : vector<8x128xf32>
    %188 = vector.extract_strided_slice %175 {offsets = [0, 256], sizes = [8, 128], strides = [1, 1]} : vector<8x512xf32> to vector<8x128xf32>
    %189 = vector.extract_strided_slice %175 {offsets = [0, 384], sizes = [8, 128], strides = [1, 1]} : vector<8x512xf32> to vector<8x128xf32>
    %190 = arith.mulf %181, %189 : vector<8x128xf32>
    %191 = arith.addf %188, %190 : vector<8x128xf32>
    %192 = math.tanh %191 : vector<8x128xf32>
    %cst_71 = arith.constant 1.000000e+00 : f32
    %193 = vector.broadcast %cst_71 : f32 to vector<8x128xf32>
    %194 = arith.subf %193, %187 : vector<8x128xf32>
    %195 = arith.mulf %194, %192 : vector<8x128xf32>
    %196 = arith.mulf %187, %147 : vector<8x128xf32>
    %197 = arith.addf %195, %196 : vector<8x128xf32>
    %198 = arith.truncf %197 : vector<8x128xf32> to vector<8x128xbf16>
    %c0_72 = arith.constant 0 : index
    %c0_73 = arith.constant 0 : index
    %199 = vector.load %arg7[%c0_72, %c0_73] : memref<128x128xbf16, #tpu.memory_space<vmem>>, vector<128x128xbf16>
    %cst_74 = arith.constant dense<0.000000e+00> : vector<8x128xf32>
    %200 = tpu.matmul %198, %199, %cst_74 {dimension_numbers = #tpu.dot_dimension_numbers<[1], [0], [0], [1], [0, 0, 1, 1], [], []>} : vector<8x128xbf16>, vector<128x128xbf16>, vector<8x128xf32> -> vector<8x128xf32>
    %c0_75 = arith.constant 0 : index
    %c0_76 = arith.constant 0 : index
    %201 = vector.load %arg8[%c0_75, %c0_76] : memref<1x128xf32, #tpu.memory_space<vmem>>, vector<1x128xf32>
    %202 = vector.broadcast %201 : vector<1x128xf32> to vector<8x128xf32>
    %203 = arith.addf %200, %202 : vector<8x128xf32>
    %cst_77 = arith.constant -1.000000e+01 : f32
    %cst_78 = arith.constant 1.000000e+01 : f32
    %204 = vector.broadcast %cst_77 : f32 to vector<8x128xf32>
    %205 = arith.maximumf %204, %203 : vector<8x128xf32>
    %206 = vector.broadcast %cst_78 : f32 to vector<8x128xf32>
    %207 = arith.minimumf %206, %205 : vector<8x128xf32>
    %c3 = arith.constant 3 : index
    %c0_79 = arith.constant 0 : index
    %c0_80 = arith.constant 0 : index
    %208 = vector.load %arg9[%c3, %c0_79, %c0_80] : memref<8x8x128xf32, #tpu.memory_space<vmem>>, vector<1x8x128xf32>
    %209 = vector.shape_cast %208 : vector<1x8x128xf32> to vector<8x128xf32>
    %210 = vector.shape_cast %207 : vector<8x128xf32> to vector<1x8x128xf32>
    tpu.vector_store %arg9[%c3, %c0_79, %c0_80], %210 {strides = array<i32>} : memref<8x8x128xf32, #tpu.memory_space<vmem>>, vector<1x8x128xf32>,
    %211 = arith.subf %207, %17 : vector<8x128xf32>
    %cst_81 = arith.constant dense<0xFF800000> : vector<8xf32>
    %212 = vector.multi_reduction <maximumf>, %211, %cst_81 [1] : vector<8x128xf32> to vector<8xf32>
    %213 = vector.shape_cast %212 : vector<8xf32> to vector<8x1xf32>
    %214 = vector.broadcast %213 : vector<8x1xf32> to vector<8x128xf32>
    %215 = arith.cmpf oeq, %211, %214 : vector<8x128xf32>
    %216 = arith.extui %215 : vector<8x128xi1> to vector<8x128xi32>
    %217 = arith.sitofp %216 : vector<8x128xi32> to vector<8x128xf32>
    %218 = arith.truncf %217 : vector<8x128xf32> to vector<8x128xbf16>
    %219 = arith.truncf %197 : vector<8x128xf32> to vector<8x128xbf16>
    %220 = tpu.concatenate %218, %219 in 1 : vector<8x128xbf16>, vector<8x128xbf16> -> vector<8x256xbf16>
    %c0_82 = arith.constant 0 : index
    %c0_83 = arith.constant 0 : index
    %221 = vector.load %arg5[%c0_82, %c0_83] : memref<256x512xbf16, #tpu.memory_space<vmem>>, vector<256x512xbf16>
    %cst_84 = arith.constant dense<0.000000e+00> : vector<8x512xf32>
    %222 = tpu.matmul %220, %221, %cst_84 {dimension_numbers = #tpu.dot_dimension_numbers<[1], [0], [0], [1], [0, 0, 1, 1], [], []>} : vector<8x256xbf16>, vector<256x512xbf16>, vector<8x512xf32> -> vector<8x512xf32>
    %c0_85 = arith.constant 0 : index
    %c0_86 = arith.constant 0 : index
    %223 = vector.load %arg6[%c0_85, %c0_86] : memref<1x512xf32, #tpu.memory_space<vmem>>, vector<1x512xf32>
    %224 = vector.broadcast %223 : vector<1x512xf32> to vector<8x512xf32>
    %225 = arith.addf %222, %224 : vector<8x512xf32>
    %226 = vector.extract_strided_slice %225 {offsets = [0, 0], sizes = [8, 128], strides = [1, 1]} : vector<8x512xf32> to vector<8x128xf32>
    %227 = arith.negf %226 : vector<8x128xf32>
    %228 = math.exp %227 : vector<8x128xf32>
    %cst_87 = arith.constant 1.000000e+00 : f32
    %229 = vector.broadcast %cst_87 : f32 to vector<8x128xf32>
    %230 = arith.addf %229, %228 : vector<8x128xf32>
    %231 = arith.divf %229, %230 : vector<8x128xf32>
    %232 = vector.extract_strided_slice %225 {offsets = [0, 128], sizes = [8, 128], strides = [1, 1]} : vector<8x512xf32> to vector<8x128xf32>
    %233 = arith.negf %232 : vector<8x128xf32>
    %234 = math.exp %233 : vector<8x128xf32>
    %cst_88 = arith.constant 1.000000e+00 : f32
    %235 = vector.broadcast %cst_88 : f32 to vector<8x128xf32>
    %236 = arith.addf %235, %234 : vector<8x128xf32>
    %237 = arith.divf %235, %236 : vector<8x128xf32>
    %238 = vector.extract_strided_slice %225 {offsets = [0, 256], sizes = [8, 128], strides = [1, 1]} : vector<8x512xf32> to vector<8x128xf32>
    %239 = vector.extract_strided_slice %225 {offsets = [0, 384], sizes = [8, 128], strides = [1, 1]} : vector<8x512xf32> to vector<8x128xf32>
    %240 = arith.mulf %231, %239 : vector<8x128xf32>
    %241 = arith.addf %238, %240 : vector<8x128xf32>
    %242 = math.tanh %241 : vector<8x128xf32>
    %cst_89 = arith.constant 1.000000e+00 : f32
    %243 = vector.broadcast %cst_89 : f32 to vector<8x128xf32>
    %244 = arith.subf %243, %237 : vector<8x128xf32>
    %245 = arith.mulf %244, %242 : vector<8x128xf32>
    %246 = arith.mulf %237, %197 : vector<8x128xf32>
    %247 = arith.addf %245, %246 : vector<8x128xf32>
    %248 = arith.truncf %247 : vector<8x128xf32> to vector<8x128xbf16>
    %c0_90 = arith.constant 0 : index
    %c0_91 = arith.constant 0 : index
    %249 = vector.load %arg7[%c0_90, %c0_91] : memref<128x128xbf16, #tpu.memory_space<vmem>>, vector<128x128xbf16>
    %cst_92 = arith.constant dense<0.000000e+00> : vector<8x128xf32>
    %250 = tpu.matmul %248, %249, %cst_92 {dimension_numbers = #tpu.dot_dimension_numbers<[1], [0], [0], [1], [0, 0, 1, 1], [], []>} : vector<8x128xbf16>, vector<128x128xbf16>, vector<8x128xf32> -> vector<8x128xf32>
    %c0_93 = arith.constant 0 : index
    %c0_94 = arith.constant 0 : index
    %251 = vector.load %arg8[%c0_93, %c0_94] : memref<1x128xf32, #tpu.memory_space<vmem>>, vector<1x128xf32>
    %252 = vector.broadcast %251 : vector<1x128xf32> to vector<8x128xf32>
    %253 = arith.addf %250, %252 : vector<8x128xf32>
    %cst_95 = arith.constant -1.000000e+01 : f32
    %cst_96 = arith.constant 1.000000e+01 : f32
    %254 = vector.broadcast %cst_95 : f32 to vector<8x128xf32>
    %255 = arith.maximumf %254, %253 : vector<8x128xf32>
    %256 = vector.broadcast %cst_96 : f32 to vector<8x128xf32>
    %257 = arith.minimumf %256, %255 : vector<8x128xf32>
    %c4 = arith.constant 4 : index
    %c0_97 = arith.constant 0 : index
    %c0_98 = arith.constant 0 : index
    %258 = vector.load %arg9[%c4, %c0_97, %c0_98] : memref<8x8x128xf32, #tpu.memory_space<vmem>>, vector<1x8x128xf32>
    %259 = vector.shape_cast %258 : vector<1x8x128xf32> to vector<8x128xf32>
    %260 = vector.shape_cast %257 : vector<8x128xf32> to vector<1x8x128xf32>
    tpu.vector_store %arg9[%c4, %c0_97, %c0_98], %260 {strides = array<i32>} : memref<8x8x128xf32, #tpu.memory_space<vmem>>, vector<1x8x128xf32>,
    %261 = arith.subf %257, %17 : vector<8x128xf32>
    %cst_99 = arith.constant dense<0xFF800000> : vector<8xf32>
    %262 = vector.multi_reduction <maximumf>, %261, %cst_99 [1] : vector<8x128xf32> to vector<8xf32>
    %263 = vector.shape_cast %262 : vector<8xf32> to vector<8x1xf32>
    %264 = vector.broadcast %263 : vector<8x1xf32> to vector<8x128xf32>
    %265 = arith.cmpf oeq, %261, %264 : vector<8x128xf32>
    %266 = arith.extui %265 : vector<8x128xi1> to vector<8x128xi32>
    %267 = arith.sitofp %266 : vector<8x128xi32> to vector<8x128xf32>
    %268 = arith.truncf %267 : vector<8x128xf32> to vector<8x128xbf16>
    %269 = arith.truncf %247 : vector<8x128xf32> to vector<8x128xbf16>
    %270 = tpu.concatenate %268, %269 in 1 : vector<8x128xbf16>, vector<8x128xbf16> -> vector<8x256xbf16>
    %c0_100 = arith.constant 0 : index
    %c0_101 = arith.constant 0 : index
    %271 = vector.load %arg5[%c0_100, %c0_101] : memref<256x512xbf16, #tpu.memory_space<vmem>>, vector<256x512xbf16>
    %cst_102 = arith.constant dense<0.000000e+00> : vector<8x512xf32>
    %272 = tpu.matmul %270, %271, %cst_102 {dimension_numbers = #tpu.dot_dimension_numbers<[1], [0], [0], [1], [0, 0, 1, 1], [], []>} : vector<8x256xbf16>, vector<256x512xbf16>, vector<8x512xf32> -> vector<8x512xf32>
    %c0_103 = arith.constant 0 : index
    %c0_104 = arith.constant 0 : index
    %273 = vector.load %arg6[%c0_103, %c0_104] : memref<1x512xf32, #tpu.memory_space<vmem>>, vector<1x512xf32>
    %274 = vector.broadcast %273 : vector<1x512xf32> to vector<8x512xf32>
    %275 = arith.addf %272, %274 : vector<8x512xf32>
    %276 = vector.extract_strided_slice %275 {offsets = [0, 0], sizes = [8, 128], strides = [1, 1]} : vector<8x512xf32> to vector<8x128xf32>
    %277 = arith.negf %276 : vector<8x128xf32>
    %278 = math.exp %277 : vector<8x128xf32>
    %cst_105 = arith.constant 1.000000e+00 : f32
    %279 = vector.broadcast %cst_105 : f32 to vector<8x128xf32>
    %280 = arith.addf %279, %278 : vector<8x128xf32>
    %281 = arith.divf %279, %280 : vector<8x128xf32>
    %282 = vector.extract_strided_slice %275 {offsets = [0, 128], sizes = [8, 128], strides = [1, 1]} : vector<8x512xf32> to vector<8x128xf32>
    %283 = arith.negf %282 : vector<8x128xf32>
    %284 = math.exp %283 : vector<8x128xf32>
    %cst_106 = arith.constant 1.000000e+00 : f32
    %285 = vector.broadcast %cst_106 : f32 to vector<8x128xf32>
    %286 = arith.addf %285, %284 : vector<8x128xf32>
    %287 = arith.divf %285, %286 : vector<8x128xf32>
    %288 = vector.extract_strided_slice %275 {offsets = [0, 256], sizes = [8, 128], strides = [1, 1]} : vector<8x512xf32> to vector<8x128xf32>
    %289 = vector.extract_strided_slice %275 {offsets = [0, 384], sizes = [8, 128], strides = [1, 1]} : vector<8x512xf32> to vector<8x128xf32>
    %290 = arith.mulf %281, %289 : vector<8x128xf32>
    %291 = arith.addf %288, %290 : vector<8x128xf32>
    %292 = math.tanh %291 : vector<8x128xf32>
    %cst_107 = arith.constant 1.000000e+00 : f32
    %293 = vector.broadcast %cst_107 : f32 to vector<8x128xf32>
    %294 = arith.subf %293, %287 : vector<8x128xf32>
    %295 = arith.mulf %294, %292 : vector<8x128xf32>
    %296 = arith.mulf %287, %247 : vector<8x128xf32>
    %297 = arith.addf %295, %296 : vector<8x128xf32>
    %298 = arith.truncf %297 : vector<8x128xf32> to vector<8x128xbf16>
    %c0_108 = arith.constant 0 : index
    %c0_109 = arith.constant 0 : index
    %299 = vector.load %arg7[%c0_108, %c0_109] : memref<128x128xbf16, #tpu.memory_space<vmem>>, vector<128x128xbf16>
    %cst_110 = arith.constant dense<0.000000e+00> : vector<8x128xf32>
    %300 = tpu.matmul %298, %299, %cst_110 {dimension_numbers = #tpu.dot_dimension_numbers<[1], [0], [0], [1], [0, 0, 1, 1], [], []>} : vector<8x128xbf16>, vector<128x128xbf16>, vector<8x128xf32> -> vector<8x128xf32>
    %c0_111 = arith.constant 0 : index
    %c0_112 = arith.constant 0 : index
    %301 = vector.load %arg8[%c0_111, %c0_112] : memref<1x128xf32, #tpu.memory_space<vmem>>, vector<1x128xf32>
    %302 = vector.broadcast %301 : vector<1x128xf32> to vector<8x128xf32>
    %303 = arith.addf %300, %302 : vector<8x128xf32>
    %cst_113 = arith.constant -1.000000e+01 : f32
    %cst_114 = arith.constant 1.000000e+01 : f32
    %304 = vector.broadcast %cst_113 : f32 to vector<8x128xf32>
    %305 = arith.maximumf %304, %303 : vector<8x128xf32>
    %306 = vector.broadcast %cst_114 : f32 to vector<8x128xf32>
    %307 = arith.minimumf %306, %305 : vector<8x128xf32>
    %c5 = arith.constant 5 : index
    %c0_115 = arith.constant 0 : index
    %c0_116 = arith.constant 0 : index
    %308 = vector.load %arg9[%c5, %c0_115, %c0_116] : memref<8x8x128xf32, #tpu.memory_space<vmem>>, vector<1x8x128xf32>
    %309 = vector.shape_cast %308 : vector<1x8x128xf32> to vector<8x128xf32>
    %310 = vector.shape_cast %307 : vector<8x128xf32> to vector<1x8x128xf32>
    tpu.vector_store %arg9[%c5, %c0_115, %c0_116], %310 {strides = array<i32>} : memref<8x8x128xf32, #tpu.memory_space<vmem>>, vector<1x8x128xf32>,
    %311 = arith.subf %307, %17 : vector<8x128xf32>
    %cst_117 = arith.constant dense<0xFF800000> : vector<8xf32>
    %312 = vector.multi_reduction <maximumf>, %311, %cst_117 [1] : vector<8x128xf32> to vector<8xf32>
    %313 = vector.shape_cast %312 : vector<8xf32> to vector<8x1xf32>
    %314 = vector.broadcast %313 : vector<8x1xf32> to vector<8x128xf32>
    %315 = arith.cmpf oeq, %311, %314 : vector<8x128xf32>
    %316 = arith.extui %315 : vector<8x128xi1> to vector<8x128xi32>
    %317 = arith.sitofp %316 : vector<8x128xi32> to vector<8x128xf32>
    %318 = arith.truncf %317 : vector<8x128xf32> to vector<8x128xbf16>
    %319 = arith.truncf %297 : vector<8x128xf32> to vector<8x128xbf16>
    %320 = tpu.concatenate %318, %319 in 1 : vector<8x128xbf16>, vector<8x128xbf16> -> vector<8x256xbf16>
    %c0_118 = arith.constant 0 : index
    %c0_119 = arith.constant 0 : index
    %321 = vector.load %arg5[%c0_118, %c0_119] : memref<256x512xbf16, #tpu.memory_space<vmem>>, vector<256x512xbf16>
    %cst_120 = arith.constant dense<0.000000e+00> : vector<8x512xf32>
    %322 = tpu.matmul %320, %321, %cst_120 {dimension_numbers = #tpu.dot_dimension_numbers<[1], [0], [0], [1], [0, 0, 1, 1], [], []>} : vector<8x256xbf16>, vector<256x512xbf16>, vector<8x512xf32> -> vector<8x512xf32>
    %c0_121 = arith.constant 0 : index
    %c0_122 = arith.constant 0 : index
    %323 = vector.load %arg6[%c0_121, %c0_122] : memref<1x512xf32, #tpu.memory_space<vmem>>, vector<1x512xf32>
    %324 = vector.broadcast %323 : vector<1x512xf32> to vector<8x512xf32>
    %325 = arith.addf %322, %324 : vector<8x512xf32>
    %326 = vector.extract_strided_slice %325 {offsets = [0, 0], sizes = [8, 128], strides = [1, 1]} : vector<8x512xf32> to vector<8x128xf32>
    %327 = arith.negf %326 : vector<8x128xf32>
    %328 = math.exp %327 : vector<8x128xf32>
    %cst_123 = arith.constant 1.000000e+00 : f32
    %329 = vector.broadcast %cst_123 : f32 to vector<8x128xf32>
    %330 = arith.addf %329, %328 : vector<8x128xf32>
    %331 = arith.divf %329, %330 : vector<8x128xf32>
    %332 = vector.extract_strided_slice %325 {offsets = [0, 128], sizes = [8, 128], strides = [1, 1]} : vector<8x512xf32> to vector<8x128xf32>
    %333 = arith.negf %332 : vector<8x128xf32>
    %334 = math.exp %333 : vector<8x128xf32>
    %cst_124 = arith.constant 1.000000e+00 : f32
    %335 = vector.broadcast %cst_124 : f32 to vector<8x128xf32>
    %336 = arith.addf %335, %334 : vector<8x128xf32>
    %337 = arith.divf %335, %336 : vector<8x128xf32>
    %338 = vector.extract_strided_slice %325 {offsets = [0, 256], sizes = [8, 128], strides = [1, 1]} : vector<8x512xf32> to vector<8x128xf32>
    %339 = vector.extract_strided_slice %325 {offsets = [0, 384], sizes = [8, 128], strides = [1, 1]} : vector<8x512xf32> to vector<8x128xf32>
    %340 = arith.mulf %331, %339 : vector<8x128xf32>
    %341 = arith.addf %338, %340 : vector<8x128xf32>
    %342 = math.tanh %341 : vector<8x128xf32>
    %cst_125 = arith.constant 1.000000e+00 : f32
    %343 = vector.broadcast %cst_125 : f32 to vector<8x128xf32>
    %344 = arith.subf %343, %337 : vector<8x128xf32>
    %345 = arith.mulf %344, %342 : vector<8x128xf32>
    %346 = arith.mulf %337, %297 : vector<8x128xf32>
    %347 = arith.addf %345, %346 : vector<8x128xf32>
    %348 = arith.truncf %347 : vector<8x128xf32> to vector<8x128xbf16>
    %c0_126 = arith.constant 0 : index
    %c0_127 = arith.constant 0 : index
    %349 = vector.load %arg7[%c0_126, %c0_127] : memref<128x128xbf16, #tpu.memory_space<vmem>>, vector<128x128xbf16>
    %cst_128 = arith.constant dense<0.000000e+00> : vector<8x128xf32>
    %350 = tpu.matmul %348, %349, %cst_128 {dimension_numbers = #tpu.dot_dimension_numbers<[1], [0], [0], [1], [0, 0, 1, 1], [], []>} : vector<8x128xbf16>, vector<128x128xbf16>, vector<8x128xf32> -> vector<8x128xf32>
    %c0_129 = arith.constant 0 : index
    %c0_130 = arith.constant 0 : index
    %351 = vector.load %arg8[%c0_129, %c0_130] : memref<1x128xf32, #tpu.memory_space<vmem>>, vector<1x128xf32>
    %352 = vector.broadcast %351 : vector<1x128xf32> to vector<8x128xf32>
    %353 = arith.addf %350, %352 : vector<8x128xf32>
    %cst_131 = arith.constant -1.000000e+01 : f32
    %cst_132 = arith.constant 1.000000e+01 : f32
    %354 = vector.broadcast %cst_131 : f32 to vector<8x128xf32>
    %355 = arith.maximumf %354, %353 : vector<8x128xf32>
    %356 = vector.broadcast %cst_132 : f32 to vector<8x128xf32>
    %357 = arith.minimumf %356, %355 : vector<8x128xf32>
    %c6 = arith.constant 6 : index
    %c0_133 = arith.constant 0 : index
    %c0_134 = arith.constant 0 : index
    %358 = vector.load %arg9[%c6, %c0_133, %c0_134] : memref<8x8x128xf32, #tpu.memory_space<vmem>>, vector<1x8x128xf32>
    %359 = vector.shape_cast %358 : vector<1x8x128xf32> to vector<8x128xf32>
    %360 = vector.shape_cast %357 : vector<8x128xf32> to vector<1x8x128xf32>
    tpu.vector_store %arg9[%c6, %c0_133, %c0_134], %360 {strides = array<i32>} : memref<8x8x128xf32, #tpu.memory_space<vmem>>, vector<1x8x128xf32>,
    %361 = arith.subf %357, %17 : vector<8x128xf32>
    %cst_135 = arith.constant dense<0xFF800000> : vector<8xf32>
    %362 = vector.multi_reduction <maximumf>, %361, %cst_135 [1] : vector<8x128xf32> to vector<8xf32>
    %363 = vector.shape_cast %362 : vector<8xf32> to vector<8x1xf32>
    %364 = vector.broadcast %363 : vector<8x1xf32> to vector<8x128xf32>
    %365 = arith.cmpf oeq, %361, %364 : vector<8x128xf32>
    %366 = arith.extui %365 : vector<8x128xi1> to vector<8x128xi32>
    %367 = arith.sitofp %366 : vector<8x128xi32> to vector<8x128xf32>
    %368 = arith.truncf %367 : vector<8x128xf32> to vector<8x128xbf16>
    %369 = arith.truncf %347 : vector<8x128xf32> to vector<8x128xbf16>
    %370 = tpu.concatenate %368, %369 in 1 : vector<8x128xbf16>, vector<8x128xbf16> -> vector<8x256xbf16>
    %c0_136 = arith.constant 0 : index
    %c0_137 = arith.constant 0 : index
    %371 = vector.load %arg5[%c0_136, %c0_137] : memref<256x512xbf16, #tpu.memory_space<vmem>>, vector<256x512xbf16>
    %cst_138 = arith.constant dense<0.000000e+00> : vector<8x512xf32>
    %372 = tpu.matmul %370, %371, %cst_138 {dimension_numbers = #tpu.dot_dimension_numbers<[1], [0], [0], [1], [0, 0, 1, 1], [], []>} : vector<8x256xbf16>, vector<256x512xbf16>, vector<8x512xf32> -> vector<8x512xf32>
    %c0_139 = arith.constant 0 : index
    %c0_140 = arith.constant 0 : index
    %373 = vector.load %arg6[%c0_139, %c0_140] : memref<1x512xf32, #tpu.memory_space<vmem>>, vector<1x512xf32>
    %374 = vector.broadcast %373 : vector<1x512xf32> to vector<8x512xf32>
    %375 = arith.addf %372, %374 : vector<8x512xf32>
    %376 = vector.extract_strided_slice %375 {offsets = [0, 0], sizes = [8, 128], strides = [1, 1]} : vector<8x512xf32> to vector<8x128xf32>
    %377 = arith.negf %376 : vector<8x128xf32>
    %378 = math.exp %377 : vector<8x128xf32>
    %cst_141 = arith.constant 1.000000e+00 : f32
    %379 = vector.broadcast %cst_141 : f32 to vector<8x128xf32>
    %380 = arith.addf %379, %378 : vector<8x128xf32>
    %381 = arith.divf %379, %380 : vector<8x128xf32>
    %382 = vector.extract_strided_slice %375 {offsets = [0, 128], sizes = [8, 128], strides = [1, 1]} : vector<8x512xf32> to vector<8x128xf32>
    %383 = arith.negf %382 : vector<8x128xf32>
    %384 = math.exp %383 : vector<8x128xf32>
    %cst_142 = arith.constant 1.000000e+00 : f32
    %385 = vector.broadcast %cst_142 : f32 to vector<8x128xf32>
    %386 = arith.addf %385, %384 : vector<8x128xf32>
    %387 = arith.divf %385, %386 : vector<8x128xf32>
    %388 = vector.extract_strided_slice %375 {offsets = [0, 256], sizes = [8, 128], strides = [1, 1]} : vector<8x512xf32> to vector<8x128xf32>
    %389 = vector.extract_strided_slice %375 {offsets = [0, 384], sizes = [8, 128], strides = [1, 1]} : vector<8x512xf32> to vector<8x128xf32>
    %390 = arith.mulf %381, %389 : vector<8x128xf32>
    %391 = arith.addf %388, %390 : vector<8x128xf32>
    %392 = math.tanh %391 : vector<8x128xf32>
    %cst_143 = arith.constant 1.000000e+00 : f32
    %393 = vector.broadcast %cst_143 : f32 to vector<8x128xf32>
    %394 = arith.subf %393, %387 : vector<8x128xf32>
    %395 = arith.mulf %394, %392 : vector<8x128xf32>
    %396 = arith.mulf %387, %347 : vector<8x128xf32>
    %397 = arith.addf %395, %396 : vector<8x128xf32>
    %398 = arith.truncf %397 : vector<8x128xf32> to vector<8x128xbf16>
    %c0_144 = arith.constant 0 : index
    %c0_145 = arith.constant 0 : index
    %399 = vector.load %arg7[%c0_144, %c0_145] : memref<128x128xbf16, #tpu.memory_space<vmem>>, vector<128x128xbf16>
    %cst_146 = arith.constant dense<0.000000e+00> : vector<8x128xf32>
    %400 = tpu.matmul %398, %399, %cst_146 {dimension_numbers = #tpu.dot_dimension_numbers<[1], [0], [0], [1], [0, 0, 1, 1], [], []>} : vector<8x128xbf16>, vector<128x128xbf16>, vector<8x128xf32> -> vector<8x128xf32>
    %c0_147 = arith.constant 0 : index
    %c0_148 = arith.constant 0 : index
    %401 = vector.load %arg8[%c0_147, %c0_148] : memref<1x128xf32, #tpu.memory_space<vmem>>, vector<1x128xf32>
    %402 = vector.broadcast %401 : vector<1x128xf32> to vector<8x128xf32>
    %403 = arith.addf %400, %402 : vector<8x128xf32>
    %cst_149 = arith.constant -1.000000e+01 : f32
    %cst_150 = arith.constant 1.000000e+01 : f32
    %404 = vector.broadcast %cst_149 : f32 to vector<8x128xf32>
    %405 = arith.maximumf %404, %403 : vector<8x128xf32>
    %406 = vector.broadcast %cst_150 : f32 to vector<8x128xf32>
    %407 = arith.minimumf %406, %405 : vector<8x128xf32>
    %c7 = arith.constant 7 : index
    %c0_151 = arith.constant 0 : index
    %c0_152 = arith.constant 0 : index
    %408 = vector.load %arg9[%c7, %c0_151, %c0_152] : memref<8x8x128xf32, #tpu.memory_space<vmem>>, vector<1x8x128xf32>
    %409 = vector.shape_cast %408 : vector<1x8x128xf32> to vector<8x128xf32>
    %410 = vector.shape_cast %407 : vector<8x128xf32> to vector<1x8x128xf32>
    tpu.vector_store %arg9[%c7, %c0_151, %c0_152], %410 {strides = array<i32>} : memref<8x8x128xf32, #tpu.memory_space<vmem>>, vector<1x8x128xf32>,
    return
  }
  func.func @transform_0(%arg0: i32) -> (i32, i32) {
    %c0_i32 = arith.constant 0 : i32
    %c0_i32_0 = arith.constant 0 : i32
    return %arg0, %c0_i32 : i32, i32
  }
  func.func @transform_1(%arg0: i32) -> (i32, i32) {
    %c0_i32 = arith.constant 0 : i32
    %c0_i32_0 = arith.constant 0 : i32
    %c0_i32_1 = arith.constant 0 : i32
    return %c0_i32, %c0_i32_0 : i32, i32
  }
  func.func @transform_2(%arg0: i32) -> (i32, i32) {
    %c0_i32 = arith.constant 0 : i32
    %c0_i32_0 = arith.constant 0 : i32
    %c0_i32_1 = arith.constant 0 : i32
    return %c0_i32, %c0_i32_0 : i32, i32
  }
  func.func @transform_3(%arg0: i32) -> (i32, i32) {
    %c0_i32 = arith.constant 0 : i32
    %c0_i32_0 = arith.constant 0 : i32
    %c0_i32_1 = arith.constant 0 : i32
    return %c0_i32, %c0_i32_0 : i32, i32
  }
  func.func @transform_4(%arg0: i32) -> (i32, i32) {
    %c0_i32 = arith.constant 0 : i32
    %c0_i32_0 = arith.constant 0 : i32
    %c0_i32_1 = arith.constant 0 : i32
    return %c0_i32, %c0_i32_0 : i32, i32
  }
  func.func @transform_5(%arg0: i32) -> (i32, i32) {
    %c0_i32 = arith.constant 0 : i32
    %c0_i32_0 = arith.constant 0 : i32
    %c0_i32_1 = arith.constant 0 : i32
    return %c0_i32, %c0_i32_0 : i32, i32
  }
  func.func @transform_6(%arg0: i32) -> (i32, i32) {
    %c0_i32 = arith.constant 0 : i32
    %c0_i32_0 = arith.constant 0 : i32
    %c0_i32_1 = arith.constant 0 : i32
    return %c0_i32, %c0_i32_0 : i32, i32
  }
  func.func @transform_7(%arg0: i32) -> (i32, i32) {
    %c0_i32 = arith.constant 0 : i32
    %c0_i32_0 = arith.constant 0 : i32
    %c0_i32_1 = arith.constant 0 : i32
    return %c0_i32, %c0_i32_0 : i32, i32
  }
  func.func @transform_8(%arg0: i32) -> (i32, i32, i32) {
    %c0_i32 = arith.constant 0 : i32
    %c0_i32_0 = arith.constant 0 : i32
    %c0_i32_1 = arith.constant 0 : i32
    return %c0_i32, %arg0, %c0_i32_0 : i32, i32, i32
  }
}

</mosaic_0001>

<llo_original>
// kernel: tpu_custom_call.1
$region0: #{tpu_custom_call.1}
  #allocation0 [shape = 'u32[]', space=smem, size = 0x4, offset = 0x4, fixed_abs, tag = 'smem constant byte address 0x4 - core index']
  #allocation1 [shape = 'u32[144,128]{1,0:T(1,128)}', space=vmem, size = 0x12000, scoped, tag = 'internal scratch']
  %s0 = inlined_call_operand.hbm [shape: f32[8,32], index: 0, kind: input, shape index: {}]
  %s1 = inlined_call_operand.vmem [shape: f32[1,128], index: 1, kind: input, shape index: {}]
  %s2 = inlined_call_operand.hbm [shape: bf16[32,128], index: 2, kind: input, shape index: {}]
  %s3 = inlined_call_operand.vmem [shape: f32[1,128], index: 3, kind: input, shape index: {}]
  %s4 = inlined_call_operand.hbm [shape: bf16[256,512], index: 4, kind: input, shape index: {}]
  %s5 = inlined_call_operand.vmem [shape: f32[1,512], index: 5, kind: input, shape index: {}]
  %s6 = inlined_call_operand.hbm [shape: bf16[128,128], index: 6, kind: input, shape index: {}]
  %s7 = inlined_call_operand.vmem [shape: f32[1,128], index: 7, kind: input, shape index: {}]
  %s8 = inlined_call_operand.hbm [shape: f32[8,8,128], index: 8, kind: output, shape index: {}]
  %s9 = sld [smem:[#allocation0]]
  $region58: #{tpu_custom_call.1} parent=0
    _
  %s11 = ssub.s32 1, %s9
  %s12 = scalar_select 0, %s11, %s9
  $region1: #{tpu_custom_call.1} parent=0
    #allocation2 [shape = 'u8[4096]{0}', space=vmem, size = 0x1000, scoped, tag = 'input window, operand 0, single buffered']
    #allocation3 [shape = 's32[1]{0}', space=sflag, size = 0x4, scoped, tag = 'scoped memory for tpu_custom_call.1']
    #allocation4 [shape = 's32[1]{0}', space=sflag, size = 0x4, scoped, tag = 'scoped memory for tpu_custom_call.1']
    #allocation5 [shape = 'u8[8192]{0}', space=vmem, size = 0x2000, scoped, tag = 'input window, operand 2, single buffered']
    #allocation6 [shape = 's32[1]{0}', space=sflag, size = 0x4, scoped, tag = 'scoped memory for tpu_custom_call.1']
    #allocation7 [shape = 'u8[262144]{0}', space=vmem, size = 0x40000, scoped, tag = 'input window, operand 4, single buffered']
    #allocation8 [shape = 'u8[32768]{0}', space=vmem, size = 0x8000, scoped, tag = 'input window, operand 6, single buffered']
    #allocation9 [shape = 's32[1]{0}', space=sflag, size = 0x4, scoped, tag = 'scoped memory for tpu_custom_call.1']
    #allocation10 [shape = 'u8[32768]{0}', space=vmem, size = 0x8000, scoped, tag = 'output window, operand 0, single buffered']
    %13 = vsyncpa [#allocation3], 0
    %14 = vsyncpa [#allocation6], 0
    %15 = vsyncpa [#allocation9], 0
    %16 = vsyncpa [#allocation4], 0
    // Predicated region
    $region2: #{tpu_custom_call.1} parent=1 // pred_check
      _
    $region3: #{tpu_custom_call.1} parent=1 // pred_check_branch
      %18 = sbr.rel (0) target = $region5
    $region4: #{tpu_custom_call.1} parent=1 // pred_region
      %s20 = ssub.s32 128, 128
      %21 = vsyncadd [#allocation3], %s20
      %s23 = sshll.u32 [#allocation2], 4
      %s24 = int_to_ptr.vmem [resolvable:$true] %s23
      %26 = dma.hbm_to_vmem [thread:$0]  %s0, 128, %s24, [#allocation3]
    $region5: #{tpu_custom_call.1} parent=1 // pred_fallthru
      _
    // Predicated region
    $region6: #{tpu_custom_call.1} parent=1 // pred_check
      _
    $region7: #{tpu_custom_call.1} parent=1 // pred_check_branch
      %28 = sbr.rel (0) target = $region9
    $region8: #{tpu_custom_call.1} parent=1 // pred_region
      _
    $region9: #{tpu_custom_call.1} parent=1 // pred_fallthru
      _
    // Predicated region
    $region10: #{tpu_custom_call.1} parent=1 // pred_check
      _
    $region11: #{tpu_custom_call.1} parent=1 // pred_check_branch
      %30 = sbr.rel (0) target = $region13
    $region12: #{tpu_custom_call.1} parent=1 // pred_region
      %s32 = ssub.s32 256, 256
      %33 = vsyncadd [#allocation6], %s32
      %s34 = sshll.u32 [#allocation5], 4
      %s35 = int_to_ptr.vmem [resolvable:$true] %s34
      %40 = dma.hbm_to_vmem [thread:$0]  %s2, 256, %s35, [#allocation6], 64, 64, 4
    $region13: #{tpu_custom_call.1} parent=1 // pred_fallthru
      _
    // Predicated region
    $region14: #{tpu_custom_call.1} parent=1 // pred_check
      _
    $region15: #{tpu_custom_call.1} parent=1 // pred_check_branch
      %42 = sbr.rel (0) target = $region17
    $region16: #{tpu_custom_call.1} parent=1 // pred_region
      _
    $region17: #{tpu_custom_call.1} parent=1 // pred_fallthru
      _
    // Predicated region
    $region18: #{tpu_custom_call.1} parent=1 // pred_check
      _
    $region19: #{tpu_custom_call.1} parent=1 // pred_check_branch
      %44 = sbr.rel (0) target = $region21
    $region20: #{tpu_custom_call.1} parent=1 // pred_region
      %s46 = ssub.s32 8192, 8192
      %47 = vsyncadd [#allocation6], %s46
      %s48 = sshll.u32 [#allocation7], 4
      %s49 = int_to_ptr.vmem [resolvable:$true] %s48
      %54 = dma.hbm_to_vmem [thread:$0]  %s4, 8192, %s49, [#allocation6], 256, 256, 16
    $region21: #{tpu_custom_call.1} parent=1 // pred_fallthru
      _
    // Predicated region
    $region22: #{tpu_custom_call.1} parent=1 // pred_check
      _
    $region23: #{tpu_custom_call.1} parent=1 // pred_check_branch
      %56 = sbr.rel (0) target = $region25
    $region24: #{tpu_custom_call.1} parent=1 // pred_region
      _
    $region25: #{tpu_custom_call.1} parent=1 // pred_fallthru
      _
    // Predicated region
    $region26: #{tpu_custom_call.1} parent=1 // pred_check
      _
    $region27: #{tpu_custom_call.1} parent=1 // pred_check_branch
      %58 = sbr.rel (0) target = $region29
    $region28: #{tpu_custom_call.1} parent=1 // pred_region
      %s60 = ssub.s32 1024, 1024
      %61 = vsyncadd [#allocation9], %s60
      %s62 = sshll.u32 [#allocation8], 4
      %s63 = int_to_ptr.vmem [resolvable:$true] %s62
      %68 = dma.hbm_to_vmem [thread:$0]  %s6, 1024, %s63, [#allocation9], 64, 64, 4
    $region29: #{tpu_custom_call.1} parent=1 // pred_fallthru
      _
    // Predicated region
    $region30: #{tpu_custom_call.1} parent=1 // pred_check
      _
    $region31: #{tpu_custom_call.1} parent=1 // pred_check_branch
      %70 = sbr.rel (0) target = $region33
    $region32: #{tpu_custom_call.1} parent=1 // pred_region
      _
    $region33: #{tpu_custom_call.1} parent=1 // pred_fallthru
      _
    // Predicated region
    $region34: #{tpu_custom_call.1} parent=1 // pred_check
      _
    $region35: #{tpu_custom_call.1} parent=1 // pred_check_branch
      %72 = sbr.rel (0) target = $region37
    $region36: #{tpu_custom_call.1} parent=1 // pred_region
      %73 = dma.done [#allocation3], 128
    $region37: #{tpu_custom_call.1} parent=1 // pred_fallthru
      _
    // Predicated region
    $region38: #{tpu_custom_call.1} parent=1 // pred_check
      _
    $region39: #{tpu_custom_call.1} parent=1 // pred_check_branch
      %75 = sbr.rel (0) target = $region41
    $region40: #{tpu_custom_call.1} parent=1 // pred_region
      %76 = dma.done [#allocation6], 256
    $region41: #{tpu_custom_call.1} parent=1 // pred_fallthru
      _
    // Predicated region
    $region42: #{tpu_custom_call.1} parent=1 // pred_check
      _
    $region43: #{tpu_custom_call.1} parent=1 // pred_check_branch
      %78 = sbr.rel (0) target = $region45
    $region44: #{tpu_custom_call.1} parent=1 // pred_region
      %79 = dma.done [#allocation6], 8192
    $region45: #{tpu_custom_call.1} parent=1 // pred_fallthru
      _
    // Predicated region
    $region46: #{tpu_custom_call.1} parent=1 // pred_check
      _
    $region47: #{tpu_custom_call.1} parent=1 // pred_check_branch
      %81 = sbr.rel (0) target = $region49
    $region48: #{tpu_custom_call.1} parent=1 // pred_region
      %82 = dma.done [#allocation9], 1024
    $region49: #{tpu_custom_call.1} parent=1 // pred_fallthru
      _
    %v84 = vld [vmem:[#allocation2] sm:$0xff]
    %v85 = vpack.c.bf16 %v84, %v84
    %v86 = vld [vmem:[#allocation5] sm:$0xf]
    %v87 = vld [vmem:[#allocation5 + $0x4] sm:$0xf]
    %v88 = vld [vmem:[#allocation5 + $0x8] sm:$0xf]
    %v89 = vld [vmem:[#allocation5 + $0xc] sm:$0xf]
    %v90 = vld [vmem:[%s3] sm:$0x1]
    %v92 = vlaneseq
    %v93 = vshrl.u32 %v92, 7
    %v94 = vsub.s32 0, %v93
    %v95 = vrot.slane %v90, %v94
    %v101 = vunpack.c.l.b16 %v86
    %v102 = vunpack.c.l.b16 %v87
    %v103 = vunpack.c.l.b16 %v88
    %v104 = vunpack.c.l.b16 %v89
    %v105 = vpack.c.b16 %v102, %v101
    %v106 = vpack.c.b16 %v104, %v103
    %vm109 = vcmask 261120
    %v111 = vsel %vm109, %v85, 0
    %113 = vmatprep.subr.bf16.mxu0 0
    %114 = vmatpush1.bf16.msra.mxu0 0
    %115 = vmatprep.subr.bf16.mxu0 0
    %116 = vmatpush1.bf16.msra.mxu0 0
    %117 = vmatprep.subr.bf16.mxu0 0
    %118 = vmatpush1.bf16.msra.mxu0 0
    %119 = vmatprep.subr.bf16.mxu0 0
    %120 = vmatpush1.bf16.msra.mxu0 0
    %121 = vmatprep.subr.bf16.mxu0 0
    %122 = vmatpush1.bf16.msra.mxu0 0
    %123 = vmatprep.subr.bf16.mxu0 0
    %124 = vmatpush1.bf16.msra.mxu0 0
    %125 = vmatprep.subr.bf16.mxu0 0
    %126 = vmatpush1.bf16.msra.mxu0 %v106
    %127 = vmatprep.subr.bf16.mxu0 0
    %128 = vmatpush1.bf16.msra.mxu0 %v105
    %129 = vmatprep.subr.bf16.mxu0 0
    %130 = vmatpush2.bf16.msra.mxu0 0
    %131 = vmatprep.subr.bf16.mxu0 0
    %132 = vmatpush2.bf16.msra.mxu0 0
    %133 = vmatprep.subr.bf16.mxu0 0
    %134 = vmatpush2.bf16.msra.mxu0 0
    %135 = vmatprep.subr.bf16.mxu0 0
    %136 = vmatpush2.bf16.msra.mxu0 0
    %137 = vmatprep.subr.bf16.mxu0 0
    %138 = vmatpush2.bf16.msra.mxu0 0
    %139 = vmatprep.subr.bf16.mxu0 0
    %140 = vmatpush2.bf16.msra.mxu0 0
    %141 = vmatprep.subr.bf16.mxu0 0
    %142 = vmatpush2.bf16.msra.mxu0 0
    %143 = vmatprep.subr.bf16.mxu0 0
    %144 = vmatpush2.bf16.msra.mxu0 0
    %145 = vmatprep.mubr.bf16.mxu0 0
    %146 = vmatmul.mubr.bf16.gmra.mxu0 %v111
    %v147 = vpop.f32.mrf.mxu0
    %v148 = vadd.f32 %v95, %v147
    %v149 = vpop.f32.mrf.mxu0
    %v150 = vpop.f32.mrf.mxu0
    %v151 = vpop.f32.mrf.mxu0
    %152 = vdwg.mxu0
    %v153 = vld [vmem:[%s1] sm:$0x1]
    %v155 = vlaneseq
    %v156 = vshrl.u32 %v155, 7
    %v157 = vsub.s32 0, %v156
    %v158 = vrot.slane %v153, %v157
    %v160 = vlaneseq
    %v161 = vand.u32 %v160, 127
    %vm162 = vcmp.lt.s32.totalorder %v161, 16
    %v163 = vcvt.s32.f32 %v161
    %v164 = vmul.f32 %v163, 1e-06
    %v165 = vsel %vm162, %v164, 1e+09
    %v166 = vpack.c.bf16 %v158, %v158
    %v167 = vpack.c.bf16 %v148, %v148
    %v168 = vld [vmem:[#allocation7] sm:$0xff]
    %v169 = vld [vmem:[#allocation7 + $0x8] sm:$0xff]
    %v170 = vld [vmem:[#allocation7 + $0x10] sm:$0xff]
    %v171 = vld [vmem:[#allocation7 + $0x18] sm:$0xff]
    %v172 = vld [vmem:[#allocation7 + $0x20] sm:$0xff]
    %v173 = vld [vmem:[#allocation7 + $0x28] sm:$0xff]
    %v174 = vld [vmem:[#allocation7 + $0x30] sm:$0xff]
    %v175 = vld [vmem:[#allocation7 + $0x38] sm:$0xff]
    %v176 = vld [vmem:[#allocation7 + $0x40] sm:$0xff]
    %v177 = vld [vmem:[#allocation7 + $0x48] sm:$0xff]
    %v178 = vld [vmem:[#allocation7 + $0x50] sm:$0xff]
    %v179 = vld [vmem:[#allocation7 + $0x58] sm:$0xff]
    %v180 = vld [vmem:[#allocation7 + $0x60] sm:$0xff]
    %v181 = vld [vmem:[#allocation7 + $0x68] sm:$0xff]
    %v182 = vld [vmem:[#allocation7 + $0x70] sm:$0xff]
    %v183 = vld [vmem:[#allocation7 + $0x78] sm:$0xff]
    %v184 = vld [vmem:[#allocation7 + $0x80] sm:$0xff]
    %v185 = vld [vmem:[#allocation7 + $0x88] sm:$0xff]
    %v186 = vld [vmem:[#allocation7 + $0x90] sm:$0xff]
    %v187 = vld [vmem:[#allocation7 + $0x98] sm:$0xff]
    %v188 = vld [vmem:[#allocation7 + $0xa0] sm:$0xff]
    %v189 = vld [vmem:[#allocation7 + $0xa8] sm:$0xff]
    %v190 = vld [vmem:[#allocation7 + $0xb0] sm:$0xff]
    %v191 = vld [vmem:[#allocation7 + $0xb8] sm:$0xff]
    %v192 = vld [vmem:[#allocation7 + $0xc0] sm:$0xff]
    %v193 = vld [vmem:[#allocation7 + $0xc8] sm:$0xff]
    %v194 = vld [vmem:[#allocation7 + $0xd0] sm:$0xff]
    %v195 = vld [vmem:[#allocation7 + $0xd8] sm:$0xff]
    %v196 = vld [vmem:[#allocation7 + $0xe0] sm:$0xff]
    %v197 = vld [vmem:[#allocation7 + $0xe8] sm:$0xff]
    %v198 = vld [vmem:[#allocation7 + $0xf0] sm:$0xff]
    %v199 = vld [vmem:[#allocation7 + $0xf8] sm:$0xff]
    %v200 = vld [vmem:[#allocation7 + $0x100] sm:$0xff]
    %v201 = vld [vmem:[#allocation7 + $0x108] sm:$0xff]
    %v202 = vld [vmem:[#allocation7 + $0x110] sm:$0xff]
    %v203 = vld [vmem:[#allocation7 + $0x118] sm:$0xff]
    %v204 = vld [vmem:[#allocation7 + $0x120] sm:$0xff]
    %v205 = vld [vmem:[#allocation7 + $0x128] sm:$0xff]
    %v206 = vld [vmem:[#allocation7 + $0x130] sm:$0xff]
    %v207 = vld [vmem:[#allocation7 + $0x138] sm:$0xff]
    %v208 = vld [vmem:[#allocation7 + $0x140] sm:$0xff]
    %v209 = vld [vmem:[#allocation7 + $0x148] sm:$0xff]
    %v210 = vld [vmem:[#allocation7 + $0x150] sm:$0xff]
    %v211 = vld [vmem:[#allocation7 + $0x158] sm:$0xff]
    %v212 = vld [vmem:[#allocation7 + $0x160] sm:$0xff]
    %v213 = vld [vmem:[#allocation7 + $0x168] sm:$0xff]
    %v214 = vld [vmem:[#allocation7 + $0x170] sm:$0xff]
    %v215 = vld [vmem:[#allocation7 + $0x178] sm:$0xff]
    %v216 = vld [vmem:[#allocation7 + $0x180] sm:$0xff]
    %v217 = vld [vmem:[#allocation7 + $0x188] sm:$0xff]
    %v218 = vld [vmem:[#allocation7 + $0x190] sm:$0xff]
    %v219 = vld [vmem:[#allocation7 + $0x198] sm:$0xff]
    %v220 = vld [vmem:[#allocation7 + $0x1a0] sm:$0xff]
    %v221 = vld [vmem:[#allocation7 + $0x1a8] sm:$0xff]
    %v222 = vld [vmem:[#allocation7 + $0x1b0] sm:$0xff]
    %v223 = vld [vmem:[#allocation7 + $0x1b8] sm:$0xff]
    %v224 = vld [vmem:[#allocation7 + $0x1c0] sm:$0xff]
    %v225 = vld [vmem:[#allocation7 + $0x1c8] sm:$0xff]
    %v226 = vld [vmem:[#allocation7 + $0x1d0] sm:$0xff]
    %v227 = vld [vmem:[#allocation7 + $0x1d8] sm:$0xff]
    %v228 = vld [vmem:[#allocation7 + $0x1e0] sm:$0xff]
    %v229 = vld [vmem:[#allocation7 + $0x1e8] sm:$0xff]
    %v230 = vld [vmem:[#allocation7 + $0x1f0] sm:$0xff]
    %v231 = vld [vmem:[#allocation7 + $0x1f8] sm:$0xff]
    %v232 = vld [vmem:[%s5] sm:$0xf]
    %v234 = vlaneseq
    %v235 = vshrl.u32 %v234, 7
    %v236 = vsub.s32 0, %v235
    %v237 = vrot.slane %v232, %v236
    %v238 = vlaneseq
    %v239 = vshrl.u32 %v238, 7
    %v240 = vsub.s32 1, %v239
    %v241 = vrot.slane %v232, %v240
    %v242 = vlaneseq
    %v243 = vshrl.u32 %v242, 7
    %v244 = vsub.s32 2, %v243
    %v245 = vrot.slane %v232, %v244
    %v246 = vlaneseq
    %v247 = vshrl.u32 %v246, 7
    %v248 = vsub.s32 3, %v247
    %v249 = vrot.slane %v232, %v248
    %v318 = vunpack.c.l.b16 %v168
    %v319 = vunpack.c.h.b16 %v168
    %v320 = vunpack.c.l.b16 %v169
    %v321 = vunpack.c.h.b16 %v169
    %v322 = vunpack.c.l.b16 %v170
    %v323 = vunpack.c.h.b16 %v170
    %v324 = vunpack.c.l.b16 %v171
    %v325 = vunpack.c.h.b16 %v171
    %v326 = vunpack.c.l.b16 %v172
    %v327 = vunpack.c.h.b16 %v172
    %v328 = vunpack.c.l.b16 %v173
    %v329 = vunpack.c.h.b16 %v173
    %v330 = vunpack.c.l.b16 %v174
    %v331 = vunpack.c.h.b16 %v174
    %v332 = vunpack.c.l.b16 %v175
    %v333 = vunpack.c.h.b16 %v175
    %v334 = vunpack.c.l.b16 %v176
    %v335 = vunpack.c.h.b16 %v176
    %v336 = vunpack.c.l.b16 %v177
    %v337 = vunpack.c.h.b16 %v177
    %v338 = vunpack.c.l.b16 %v178
    %v339 = vunpack.c.h.b16 %v178
    %v340 = vunpack.c.l.b16 %v179
    %v341 = vunpack.c.h.b16 %v179
    %v342 = vunpack.c.l.b16 %v180
    %v343 = vunpack.c.h.b16 %v180
    %v344 = vunpack.c.l.b16 %v181
    %v345 = vunpack.c.h.b16 %v181
    %v346 = vunpack.c.l.b16 %v182
    %v347 = vunpack.c.h.b16 %v182
    %v348 = vunpack.c.l.b16 %v183
    %v349 = vunpack.c.h.b16 %v183
    %v350 = vunpack.c.l.b16 %v184
    %v351 = vunpack.c.h.b16 %v184
    %v352 = vunpack.c.l.b16 %v185
    %v353 = vunpack.c.h.b16 %v185
    %v354 = vunpack.c.l.b16 %v186
    %v355 = vunpack.c.h.b16 %v186
    %v356 = vunpack.c.l.b16 %v187
    %v357 = vunpack.c.h.b16 %v187
    %v358 = vunpack.c.l.b16 %v188
    %v359 = vunpack.c.h.b16 %v188
    %v360 = vunpack.c.l.b16 %v189
    %v361 = vunpack.c.h.b16 %v189
    %v362 = vunpack.c.l.b16 %v190
    %v363 = vunpack.c.h.b16 %v190
    %v364 = vunpack.c.l.b16 %v191
    %v365 = vunpack.c.h.b16 %v191
    %v366 = vunpack.c.l.b16 %v192
    %v367 = vunpack.c.h.b16 %v192
    %v368 = vunpack.c.l.b16 %v193
    %v369 = vunpack.c.h.b16 %v193
    %v370 = vunpack.c.l.b16 %v194
    %v371 = vunpack.c.h.b16 %v194
    %v372 = vunpack.c.l.b16 %v195
    %v373 = vunpack.c.h.b16 %v195
    %v374 = vunpack.c.l.b16 %v196
    %v375 = vunpack.c.h.b16 %v196
    %v376 = vunpack.c.l.b16 %v197
    %v377 = vunpack.c.h.b16 %v197
    %v378 = vunpack.c.l.b16 %v198
    %v379 = vunpack.c.h.b16 %v198
    %v380 = vunpack.c.l.b16 %v199
    %v381 = vunpack.c.h.b16 %v199
    %v382 = vunpack.c.l.b16 %v200
    %v383 = vunpack.c.h.b16 %v200
    %v384 = vunpack.c.l.b16 %v201
    %v385 = vunpack.c.h.b16 %v201
    %v386 = vunpack.c.l.b16 %v202
    %v387 = vunpack.c.h.b16 %v202
    %v388 = vunpack.c.l.b16 %v203
    %v389 = vunpack.c.h.b16 %v203
    %v390 = vunpack.c.l.b16 %v204
    %v391 = vunpack.c.h.b16 %v204
    %v392 = vunpack.c.l.b16 %v205
    %v393 = vunpack.c.h.b16 %v205
    %v394 = vunpack.c.l.b16 %v206
    %v395 = vunpack.c.h.b16 %v206
    %v396 = vunpack.c.l.b16 %v207
    %v397 = vunpack.c.h.b16 %v207
    %v398 = vunpack.c.l.b16 %v208
    %v399 = vunpack.c.h.b16 %v208
    %v400 = vunpack.c.l.b16 %v209
    %v401 = vunpack.c.h.b16 %v209
    %v402 = vunpack.c.l.b16 %v210
    %v403 = vunpack.c.h.b16 %v210
    %v404 = vunpack.c.l.b16 %v211
    %v405 = vunpack.c.h.b16 %v211
    %v406 = vunpack.c.l.b16 %v212
    %v407 = vunpack.c.h.b16 %v212
    %v408 = vunpack.c.l.b16 %v213
    %v409 = vunpack.c.h.b16 %v213
    %v410 = vunpack.c.l.b16 %v214
    %v411 = vunpack.c.h.b16 %v214
    %v412 = vunpack.c.l.b16 %v215
    %v413 = vunpack.c.h.b16 %v215
    %v414 = vunpack.c.l.b16 %v216
    %v415 = vunpack.c.h.b16 %v216
    %v416 = vunpack.c.l.b16 %v217
    %v417 = vunpack.c.h.b16 %v217
    %v418 = vunpack.c.l.b16 %v218
    %v419 = vunpack.c.h.b16 %v218
    %v420 = vunpack.c.l.b16 %v219
    %v421 = vunpack.c.h.b16 %v219
    %v422 = vunpack.c.l.b16 %v220
    %v423 = vunpack.c.h.b16 %v220
    %v424 = vunpack.c.l.b16 %v221
    %v425 = vunpack.c.h.b16 %v221
    %v426 = vunpack.c.l.b16 %v222
    %v427 = vunpack.c.h.b16 %v222
    %v428 = vunpack.c.l.b16 %v223
    %v429 = vunpack.c.h.b16 %v223
    %v430 = vunpack.c.l.b16 %v224
    %v431 = vunpack.c.h.b16 %v224
    %v432 = vunpack.c.l.b16 %v225
    %v433 = vunpack.c.h.b16 %v225
    %v434 = vunpack.c.l.b16 %v226
    %v435 = vunpack.c.h.b16 %v226
    %v436 = vunpack.c.l.b16 %v227
    %v437 = vunpack.c.h.b16 %v227
    %v438 = vunpack.c.l.b16 %v228
    %v439 = vunpack.c.h.b16 %v228
    %v440 = vunpack.c.l.b16 %v229
    %v441 = vunpack.c.h.b16 %v229
    %v442 = vunpack.c.l.b16 %v230
    %v443 = vunpack.c.h.b16 %v230
    %v444 = vunpack.c.l.b16 %v231
    %v445 = vunpack.c.h.b16 %v231
    %v446 = vpack.c.b16 %v322, %v318
    %v447 = vpack.c.b16 %v323, %v319
    %v448 = vpack.c.b16 %v324, %v320
    %v449 = vpack.c.b16 %v325, %v321
    %v450 = vpack.c.b16 %v330, %v326
    %v451 = vpack.c.b16 %v331, %v327
    %v452 = vpack.c.b16 %v332, %v328
    %v453 = vpack.c.b16 %v333, %v329
    %v454 = vpack.c.b16 %v338, %v334
    %v455 = vpack.c.b16 %v339, %v335
    %v456 = vpack.c.b16 %v340, %v336
    %v457 = vpack.c.b16 %v341, %v337
    %v458 = vpack.c.b16 %v346, %v342
    %v459 = vpack.c.b16 %v347, %v343
    %v460 = vpack.c.b16 %v348, %v344
    %v461 = vpack.c.b16 %v349, %v345
    %v462 = vpack.c.b16 %v354, %v350
    %v463 = vpack.c.b16 %v355, %v351
    %v464 = vpack.c.b16 %v356, %v352
    %v465 = vpack.c.b16 %v357, %v353
    %v466 = vpack.c.b16 %v362, %v358
    %v467 = vpack.c.b16 %v363, %v359
    %v468 = vpack.c.b16 %v364, %v360
    %v469 = vpack.c.b16 %v365, %v361
    %v470 = vpack.c.b16 %v370, %v366
    %v471 = vpack.c.b16 %v371, %v367
    %v472 = vpack.c.b16 %v372, %v368
    %v473 = vpack.c.b16 %v373, %v369
    %v474 = vpack.c.b16 %v378, %v374
    %v475 = vpack.c.b16 %v379, %v375
    %v476 = vpack.c.b16 %v380, %v376
    %v477 = vpack.c.b16 %v381, %v377
    %v478 = vpack.c.b16 %v386, %v382
    %v479 = vpack.c.b16 %v387, %v383
    %v480 = vpack.c.b16 %v388, %v384
    %v481 = vpack.c.b16 %v389, %v385
    %v482 = vpack.c.b16 %v394, %v390
    %v483 = vpack.c.b16 %v395, %v391
    %v484 = vpack.c.b16 %v396, %v392
    %v485 = vpack.c.b16 %v397, %v393
    %v486 = vpack.c.b16 %v402, %v398
    %v487 = vpack.c.b16 %v403, %v399
    %v488 = vpack.c.b16 %v404, %v400
    %v489 = vpack.c.b16 %v405, %v401
    %v490 = vpack.c.b16 %v410, %v406
    %v491 = vpack.c.b16 %v411, %v407
    %v492 = vpack.c.b16 %v412, %v408
    %v493 = vpack.c.b16 %v413, %v409
    %v494 = vpack.c.b16 %v418, %v414
    %v495 = vpack.c.b16 %v419, %v415
    %v496 = vpack.c.b16 %v420, %v416
    %v497 = vpack.c.b16 %v421, %v417
    %v498 = vpack.c.b16 %v426, %v422
    %v499 = vpack.c.b16 %v427, %v423
    %v500 = vpack.c.b16 %v428, %v424
    %v501 = vpack.c.b16 %v429, %v425
    %v502 = vpack.c.b16 %v434, %v430
    %v503 = vpack.c.b16 %v435, %v431
    %v504 = vpack.c.b16 %v436, %v432
    %v505 = vpack.c.b16 %v437, %v433
    %v506 = vpack.c.b16 %v442, %v438
    %v507 = vpack.c.b16 %v443, %v439
    %v508 = vpack.c.b16 %v444, %v440
    %v509 = vpack.c.b16 %v445, %v441
    %574 = vmatprep.subr.bf16.mxu0 %v475
    %575 = vmatpush1.bf16.msra.mxu0 %v474
    %576 = vmatprep.subr.bf16.mxu0 %v471
    %577 = vmatpush1.bf16.msra.mxu0 %v470
    %578 = vmatprep.subr.bf16.mxu0 %v467
    %579 = vmatpush1.bf16.msra.mxu0 %v466
    %580 = vmatprep.subr.bf16.mxu0 %v463
    %581 = vmatpush1.bf16.msra.mxu0 %v462
    %582 = vmatprep.subr.bf16.mxu0 %v459
    %583 = vmatpush1.bf16.msra.mxu0 %v458
    %584 = vmatprep.subr.bf16.mxu0 %v455
    %585 = vmatpush1.bf16.msra.mxu0 %v454
    %586 = vmatprep.subr.bf16.mxu0 %v451
    %587 = vmatpush1.bf16.msra.mxu0 %v450
    %588 = vmatprep.subr.bf16.mxu0 %v447
    %589 = vmatpush1.bf16.msra.mxu0 %v446
    %590 = vmatprep.subr.bf16.mxu0 %v507
    %591 = vmatpush2.bf16.msra.mxu0 %v506
    %592 = vmatprep.subr.bf16.mxu0 %v503
    %593 = vmatpush2.bf16.msra.mxu0 %v502
    %594 = vmatprep.subr.bf16.mxu0 %v499
    %595 = vmatpush2.bf16.msra.mxu0 %v498
    %596 = vmatprep.subr.bf16.mxu0 %v495
    %597 = vmatpush2.bf16.msra.mxu0 %v494
    %598 = vmatprep.subr.bf16.mxu0 %v491
    %599 = vmatpush2.bf16.msra.mxu0 %v490
    %600 = vmatprep.subr.bf16.mxu0 %v487
    %601 = vmatpush2.bf16.msra.mxu0 %v486
    %602 = vmatprep.subr.bf16.mxu0 %v483
    %603 = vmatpush2.bf16.msra.mxu0 %v482
    %604 = vmatprep.subr.bf16.mxu0 %v479
    %605 = vmatpush2.bf16.msra.mxu0 %v478
    %606 = vmatprep.mubr.bf16.mxu0 %v167
    %607 = vmatmul.mubr.bf16.gmra.mxu0 %v166
    %v608 = vpop.f32.mrf.mxu0
    %v609 = vadd.f32 %v237, %v608
    %v610 = vpop.f32.mrf.mxu0
    %v611 = vadd.f32 %v241, %v610
    %v612 = vpop.f32.mrf.mxu0
    %v613 = vpop.f32.mrf.mxu0
    %614 = vdwg.mxu0
    %615 = vmatprep.subr.bf16.mxu0 %v477
    %616 = vmatpush1.bf16.msra.mxu0 %v476
    %617 = vmatprep.subr.bf16.mxu0 %v473
    %618 = vmatpush1.bf16.msra.mxu0 %v472
    %619 = vmatprep.subr.bf16.mxu0 %v469
    %620 = vmatpush1.bf16.msra.mxu0 %v468
    %621 = vmatprep.subr.bf16.mxu0 %v465
    %622 = vmatpush1.bf16.msra.mxu0 %v464
    %623 = vmatprep.subr.bf16.mxu0 %v461
    %624 = vmatpush1.bf16.msra.mxu0 %v460
    %625 = vmatprep.subr.bf16.mxu0 %v457
    %626 = vmatpush1.bf16.msra.mxu0 %v456
    %627 = vmatprep.subr.bf16.mxu0 %v453
    %628 = vmatpush1.bf16.msra.mxu0 %v452
    %629 = vmatprep.subr.bf16.mxu0 %v449
    %630 = vmatpush1.bf16.msra.mxu0 %v448
    %631 = vmatprep.subr.bf16.mxu0 %v509
    %632 = vmatpush2.bf16.msra.mxu0 %v508
    %633 = vmatprep.subr.bf16.mxu0 %v505
    %634 = vmatpush2.bf16.msra.mxu0 %v504
    %635 = vmatprep.subr.bf16.mxu0 %v501
    %636 = vmatpush2.bf16.msra.mxu0 %v500
    %637 = vmatprep.subr.bf16.mxu0 %v497
    %638 = vmatpush2.bf16.msra.mxu0 %v496
    %639 = vmatprep.subr.bf16.mxu0 %v493
    %640 = vmatpush2.bf16.msra.mxu0 %v492
    %641 = vmatprep.subr.bf16.mxu0 %v489
    %642 = vmatpush2.bf16.msra.mxu0 %v488
    %643 = vmatprep.subr.bf16.mxu0 %v485
    %644 = vmatpush2.bf16.msra.mxu0 %v484
    %645 = vmatprep.subr.bf16.mxu0 %v481
    %646 = vmatpush2.bf16.msra.mxu0 %v480
    %647 = vmatprep.mubr.bf16.mxu0 %v167
    %648 = vmatmul.mubr.bf16.gmra.mxu0 %v166
    %v649 = vpop.f32.mrf.mxu0
    %v650 = vadd.f32 %v245, %v649
    %v651 = vpop.f32.mrf.mxu0
    %v652 = vadd.f32 %v249, %v651
    %v653 = vpop.f32.mrf.mxu0
    %v654 = vpop.f32.mrf.mxu0
    %655 = vdwg.mxu0
    %v656 = vxor.u32 %v609, 2147483648
    %v657 = vmul.f32 %v656, 1.442695
    %v658 = vpow.pop %v657
    %v659 = vadd.f32 %v658, 1.0
    %v660 = vrcp.pop %v659
    %v661 = vmul.f32 1.0, %v660
    %v662 = vxor.u32 %v611, 2147483648
    %v663 = vmul.f32 %v662, 1.442695
    %v664 = vpow.pop %v663
    %v665 = vadd.f32 %v664, 1.0
    %v666 = vrcp.pop %v665
    %v667 = vmul.f32 1.0, %v666
    %v668 = vmul.f32 %v661, %v652
    %v669 = vadd.f32 %v650, %v668
    %v670 = vtanh.pop %v669
    %v671 = vsub.f32 1.0, %v667
    %v672 = vmul.f32 %v671, %v670
    %v673 = vmul.f32 %v667, %v148
    %v674 = vadd.f32 %v672, %v673
    %v675 = vpack.c.bf16 %v674, %v674
    %v676 = vld [vmem:[#allocation8] sm:$0xf]
    %v677 = vld [vmem:[#allocation8 + $0x4] sm:$0xf]
    %v678 = vld [vmem:[#allocation8 + $0x8] sm:$0xf]
    %v679 = vld [vmem:[#allocation8 + $0xc] sm:$0xf]
    %v680 = vld [vmem:[#allocation8 + $0x10] sm:$0xf]
    %v681 = vld [vmem:[#allocation8 + $0x14] sm:$0xf]
    %v682 = vld [vmem:[#allocation8 + $0x18] sm:$0xf]
    %v683 = vld [vmem:[#allocation8 + $0x1c] sm:$0xf]
    %v684 = vld [vmem:[#allocation8 + $0x20] sm:$0xf]
    %v685 = vld [vmem:[#allocation8 + $0x24] sm:$0xf]
    %v686 = vld [vmem:[#allocation8 + $0x28] sm:$0xf]
    %v687 = vld [vmem:[#allocation8 + $0x2c] sm:$0xf]
    %v688 = vld [vmem:[#allocation8 + $0x30] sm:$0xf]
    %v689 = vld [vmem:[#allocation8 + $0x34] sm:$0xf]
    %v690 = vld [vmem:[#allocation8 + $0x38] sm:$0xf]
    %v691 = vld [vmem:[#allocation8 + $0x3c] sm:$0xf]
    %v692 = vld [vmem:[%s7] sm:$0x1]
    %v694 = vlaneseq
    %v695 = vshrl.u32 %v694, 7
    %v696 = vsub.s32 0, %v695
    %v697 = vrot.slane %v692, %v696
    %v715 = vunpack.c.l.b16 %v676
    %v716 = vunpack.c.l.b16 %v677
    %v717 = vunpack.c.l.b16 %v678
    %v718 = vunpack.c.l.b16 %v679
    %v719 = vunpack.c.l.b16 %v680
    %v720 = vunpack.c.l.b16 %v681
    %v721 = vunpack.c.l.b16 %v682
    %v722 = vunpack.c.l.b16 %v683
    %v723 = vunpack.c.l.b16 %v684
    %v724 = vunpack.c.l.b16 %v685
    %v725 = vunpack.c.l.b16 %v686
    %v726 = vunpack.c.l.b16 %v687
    %v727 = vunpack.c.l.b16 %v688
    %v728 = vunpack.c.l.b16 %v689
    %v729 = vunpack.c.l.b16 %v690
    %v730 = vunpack.c.l.b16 %v691
    %v731 = vpack.c.b16 %v716, %v715
    %v732 = vpack.c.b16 %v718, %v717
    %v733 = vpack.c.b16 %v720, %v719
    %v734 = vpack.c.b16 %v722, %v721
    %v735 = vpack.c.b16 %v724, %v723
    %v736 = vpack.c.b16 %v726, %v725
    %v737 = vpack.c.b16 %v728, %v727
    %v738 = vpack.c.b16 %v730, %v729
    %747 = vmatprep.subr.bf16.mxu0 0
    %748 = vmatpush1.bf16.msra.mxu0 %v738
    %749 = vmatprep.subr.bf16.mxu0 0
    %750 = vmatpush1.bf16.msra.mxu0 %v737
    %751 = vmatprep.subr.bf16.mxu0 0
    %752 = vmatpush1.bf16.msra.mxu0 %v736
    %753 = vmatprep.subr.bf16.mxu0 0
    %754 = vmatpush1.bf16.msra.mxu0 %v735
    %755 = vmatprep.subr.bf16.mxu0 0
    %756 = vmatpush1.bf16.msra.mxu0 %v734
    %757 = vmatprep.subr.bf16.mxu0 0
    %758 = vmatpush1.bf16.msra.mxu0 %v733
    %759 = vmatprep.subr.bf16.mxu0 0
    %760 = vmatpush1.bf16.msra.mxu0 %v732
    %761 = vmatprep.subr.bf16.mxu0 0
    %762 = vmatpush1.bf16.msra.mxu0 %v731
    %763 = vmatprep.subr.bf16.mxu0 0
    %764 = vmatpush2.bf16.msra.mxu0 0
    %765 = vmatprep.subr.bf16.mxu0 0
    %766 = vmatpush2.bf16.msra.mxu0 0
    %767 = vmatprep.subr.bf16.mxu0 0
    %768 = vmatpush2.bf16.msra.mxu0 0
    %769 = vmatprep.subr.bf16.mxu0 0
    %770 = vmatpush2.bf16.msra.mxu0 0
    %771 = vmatprep.subr.bf16.mxu0 0
    %772 = vmatpush2.bf16.msra.mxu0 0
    %773 = vmatprep.subr.bf16.mxu0 0
    %774 = vmatpush2.bf16.msra.mxu0 0
    %775 = vmatprep.subr.bf16.mxu0 0
    %776 = vmatpush2.bf16.msra.mxu0 0
    %777 = vmatprep.subr.bf16.mxu0 0
    %778 = vmatpush2.bf16.msra.mxu0 0
    %779 = vmatprep.mubr.bf16.mxu0 0
    %780 = vmatmul.mubr.bf16.gmra.mxu0 %v675
    %v781 = vpop.f32.mrf.mxu0
    %v782 = vadd.f32 %v697, %v781
    %v783 = vpop.f32.mrf.mxu0
    %v784 = vpop.f32.mrf.mxu0
    %v785 = vpop.f32.mrf.mxu0
    %786 = vdwg.mxu0
    %v787 = vmax.f32 %v782, -10.0
    %v788 = vmin.f32 %v787, 10.0
    %789 = vst [vmem:[#allocation10] sm:$0xff] %v788
    %v790 = vsub.f32 %v788, %v165
    %791 = vmax.xlane.f32.xlu0 %v790
    %v792 = vpop.xlane.xlu0 %791
    %vm793 = vcmp.eq.f32.partialorder %v790, %v792
    %v794 = vsel %vm793, 1, 0
    %v795 = vcvt.s32.f32 %v794
    %v796 = vpack.c.bf16 %v795, %v795
    %v797 = vld [vmem:[#allocation7] sm:$0xff]
    %v798 = vld [vmem:[#allocation7 + $0x8] sm:$0xff]
    %v799 = vld [vmem:[#allocation7 + $0x10] sm:$0xff]
    %v800 = vld [vmem:[#allocation7 + $0x18] sm:$0xff]
    %v801 = vld [vmem:[#allocation7 + $0x20] sm:$0xff]
    %v802 = vld [vmem:[#allocation7 + $0x28] sm:$0xff]
    %v803 = vld [vmem:[#allocation7 + $0x30] sm:$0xff]
    %v804 = vld [vmem:[#allocation7 + $0x38] sm:$0xff]
    %v805 = vld [vmem:[#allocation7 + $0x40] sm:$0xff]
    %v806 = vld [vmem:[#allocation7 + $0x48] sm:$0xff]
    %v807 = vld [vmem:[#allocation7 + $0x50] sm:$0xff]
    %v808 = vld [vmem:[#allocation7 + $0x58] sm:$0xff]
    %v809 = vld [vmem:[#allocation7 + $0x60] sm:$0xff]
    %v810 = vld [vmem:[#allocation7 + $0x68] sm:$0xff]
    %v811 = vld [vmem:[#allocation7 + $0x70] sm:$0xff]
    %v812 = vld [vmem:[#allocation7 + $0x78] sm:$0xff]
    %v813 = vld [vmem:[#allocation7 + $0x80] sm:$0xff]
    %v814 = vld [vmem:[#allocation7 + $0x88] sm:$0xff]
    %v815 = vld [vmem:[#allocation7 + $0x90] sm:$0xff]
    %v816 = vld [vmem:[#allocation7 + $0x98] sm:$0xff]
    %v817 = vld [vmem:[#allocation7 + $0xa0] sm:$0xff]
    %v818 = vld [vmem:[#allocation7 + $0xa8] sm:$0xff]
    %v819 = vld [vmem:[#allocation7 + $0xb0] sm:$0xff]
    %v820 = vld [vmem:[#allocation7 + $0xb8] sm:$0xff]
    %v821 = vld [vmem:[#allocation7 + $0xc0] sm:$0xff]
    %v822 = vld [vmem:[#allocation7 + $0xc8] sm:$0xff]
    %v823 = vld [vmem:[#allocation7 + $0xd0] sm:$0xff]
    %v824 = vld [vmem:[#allocation7 + $0xd8] sm:$0xff]
    %v825 = vld [vmem:[#allocation7 + $0xe0] sm:$0xff]
    %v826 = vld [vmem:[#allocation7 + $0xe8] sm:$0xff]
    %v827 = vld [vmem:[#allocation7 + $0xf0] sm:$0xff]
    %v828 = vld [vmem:[#allocation7 + $0xf8] sm:$0xff]
    %v829 = vld [vmem:[#allocation7 + $0x100] sm:$0xff]
    %v830 = vld [vmem:[#allocation7 + $0x108] sm:$0xff]
    %v831 = vld [vmem:[#allocation7 + $0x110] sm:$0xff]
    %v832 = vld [vmem:[#allocation7 + $0x118] sm:$0xff]
    %v833 = vld [vmem:[#allocation7 + $0x120] sm:$0xff]
    %v834 = vld [vmem:[#allocation7 + $0x128] sm:$0xff]
    %v835 = vld [vmem:[#allocation7 + $0x130] sm:$0xff]
    %v836 = vld [vmem:[#allocation7 + $0x138] sm:$0xff]
    %v837 = vld [vmem:[#allocation7 + $0x140] sm:$0xff]
    %v838 = vld [vmem:[#allocation7 + $0x148] sm:$0xff]
    %v839 = vld [vmem:[#allocation7 + $0x150] sm:$0xff]
    %v840 = vld [vmem:[#allocation7 + $0x158] sm:$0xff]
    %v841 = vld [vmem:[#allocation7 + $0x160] sm:$0xff]
    %v842 = vld [vmem:[#allocation7 + $0x168] sm:$0xff]
    %v843 = vld [vmem:[#allocation7 + $0x170] sm:$0xff]
    %v844 = vld [vmem:[#allocation7 + $0x178] sm:$0xff]
    %v845 = vld [vmem:[#allocation7 + $0x180] sm:$0xff]
    %v846 = vld [vmem:[#allocation7 + $0x188] sm:$0xff]
    %v847 = vld [vmem:[#allocation7 + $0x190] sm:$0xff]
    %v848 = vld [vmem:[#allocation7 + $0x198] sm:$0xff]
    %v849 = vld [vmem:[#allocation7 + $0x1a0] sm:$0xff]
    %v850 = vld [vmem:[#allocation7 + $0x1a8] sm:$0xff]
    %v851 = vld [vmem:[#allocation7 + $0x1b0] sm:$0xff]
    %v852 = vld [vmem:[#allocation7 + $0x1b8] sm:$0xff]
    %v853 = vld [vmem:[#allocation7 + $0x1c0] sm:$0xff]
    %v854 = vld [vmem:[#allocation7 + $0x1c8] sm:$0xff]
    %v855 = vld [vmem:[#allocation7 + $0x1d0] sm:$0xff]
    %v856 = vld [vmem:[#allocation7 + $0x1d8] sm:$0xff]
    %v857 = vld [vmem:[#allocation7 + $0x1e0] sm:$0xff]
    %v858 = vld [vmem:[#allocation7 + $0x1e8] sm:$0xff]
    %v859 = vld [vmem:[#allocation7 + $0x1f0] sm:$0xff]
    %v860 = vld [vmem:[#allocation7 + $0x1f8] sm:$0xff]
    %v861 = vld [vmem:[%s5] sm:$0xf]
    %v863 = vlaneseq
    %v864 = vshrl.u32 %v863, 7
    %v865 = vsub.s32 0, %v864
    %v866 = vrot.slane %v861, %v865
    %v867 = vlaneseq
    %v868 = vshrl.u32 %v867, 7
    %v869 = vsub.s32 1, %v868
    %v870 = vrot.slane %v861, %v869
    %v871 = vlaneseq
    %v872 = vshrl.u32 %v871, 7
    %v873 = vsub.s32 2, %v872
    %v874 = vrot.slane %v861, %v873
    %v875 = vlaneseq
    %v876 = vshrl.u32 %v875, 7
    %v877 = vsub.s32 3, %v876
    %v878 = vrot.slane %v861, %v877
    %v947 = vunpack.c.l.b16 %v797
    %v948 = vunpack.c.h.b16 %v797
    %v949 = vunpack.c.l.b16 %v798
    %v950 = vunpack.c.h.b16 %v798
    %v951 = vunpack.c.l.b16 %v799
    %v952 = vunpack.c.h.b16 %v799
    %v953 = vunpack.c.l.b16 %v800
    %v954 = vunpack.c.h.b16 %v800
    %v955 = vunpack.c.l.b16 %v801
    %v956 = vunpack.c.h.b16 %v801
    %v957 = vunpack.c.l.b16 %v802
    %v958 = vunpack.c.h.b16 %v802
    %v959 = vunpack.c.l.b16 %v803
    %v960 = vunpack.c.h.b16 %v803
    %v961 = vunpack.c.l.b16 %v804
    %v962 = vunpack.c.h.b16 %v804
    %v963 = vunpack.c.l.b16 %v805
    %v964 = vunpack.c.h.b16 %v805
    %v965 = vunpack.c.l.b16 %v806
    %v966 = vunpack.c.h.b16 %v806
    %v967 = vunpack.c.l.b16 %v807
    %v968 = vunpack.c.h.b16 %v807
    %v969 = vunpack.c.l.b16 %v808
    %v970 = vunpack.c.h.b16 %v808
    %v971 = vunpack.c.l.b16 %v809
    %v972 = vunpack.c.h.b16 %v809
    %v973 = vunpack.c.l.b16 %v810
    %v974 = vunpack.c.h.b16 %v810
    %v975 = vunpack.c.l.b16 %v811
    %v976 = vunpack.c.h.b16 %v811
    %v977 = vunpack.c.l.b16 %v812
    %v978 = vunpack.c.h.b16 %v812
    %v979 = vunpack.c.l.b16 %v813
    %v980 = vunpack.c.h.b16 %v813
    %v981 = vunpack.c.l.b16 %v814
    %v982 = vunpack.c.h.b16 %v814
    %v983 = vunpack.c.l.b16 %v815
    %v984 = vunpack.c.h.b16 %v815
    %v985 = vunpack.c.l.b16 %v816
    %v986 = vunpack.c.h.b16 %v816
    %v987 = vunpack.c.l.b16 %v817
    %v988 = vunpack.c.h.b16 %v817
    %v989 = vunpack.c.l.b16 %v818
    %v990 = vunpack.c.h.b16 %v818
    %v991 = vunpack.c.l.b16 %v819
    %v992 = vunpack.c.h.b16 %v819
    %v993 = vunpack.c.l.b16 %v820
    %v994 = vunpack.c.h.b16 %v820
    %v995 = vunpack.c.l.b16 %v821
    %v996 = vunpack.c.h.b16 %v821
    %v997 = vunpack.c.l.b16 %v822
    %v998 = vunpack.c.h.b16 %v822
    %v999 = vunpack.c.l.b16 %v823
    %v1000 = vunpack.c.h.b16 %v823
    %v1001 = vunpack.c.l.b16 %v824
    %v1002 = vunpack.c.h.b16 %v824
    %v1003 = vunpack.c.l.b16 %v825
    %v1004 = vunpack.c.h.b16 %v825
    %v1005 = vunpack.c.l.b16 %v826
    %v1006 = vunpack.c.h.b16 %v826
    %v1007 = vunpack.c.l.b16 %v827
    %v1008 = vunpack.c.h.b16 %v827
    %v1009 = vunpack.c.l.b16 %v828
    %v1010 = vunpack.c.h.b16 %v828
    %v1011 = vunpack.c.l.b16 %v829
    %v1012 = vunpack.c.h.b16 %v829
    %v1013 = vunpack.c.l.b16 %v830
    %v1014 = vunpack.c.h.b16 %v830
    %v1015 = vunpack.c.l.b16 %v831
    %v1016 = vunpack.c.h.b16 %v831
    %v1017 = vunpack.c.l.b16 %v832
    %v1018 = vunpack.c.h.b16 %v832
    %v1019 = vunpack.c.l.b16 %v833
    %v1020 = vunpack.c.h.b16 %v833
    %v1021 = vunpack.c.l.b16 %v834
    %v1022 = vunpack.c.h.b16 %v834
    %v1023 = vunpack.c.l.b16 %v835
    %v1024 = vunpack.c.h.b16 %v835
    %v1025 = vunpack.c.l.b16 %v836
    %v1026 = vunpack.c.h.b16 %v836
    %v1027 = vunpack.c.l.b16 %v837
    %v1028 = vunpack.c.h.b16 %v837
    %v1029 = vunpack.c.l.b16 %v838
    %v1030 = vunpack.c.h.b16 %v838
    %v1031 = vunpack.c.l.b16 %v839
    %v1032 = vunpack.c.h.b16 %v839
    %v1033 = vunpack.c.l.b16 %v840
    %v1034 = vunpack.c.h.b16 %v840
    %v1035 = vunpack.c.l.b16 %v841
    %v1036 = vunpack.c.h.b16 %v841
    %v1037 = vunpack.c.l.b16 %v842
    %v1038 = vunpack.c.h.b16 %v842
    %v1039 = vunpack.c.l.b16 %v843
    %v1040 = vunpack.c.h.b16 %v843
    %v1041 = vunpack.c.l.b16 %v844
    %v1042 = vunpack.c.h.b16 %v844
    %v1043 = vunpack.c.l.b16 %v845
    %v1044 = vunpack.c.h.b16 %v845
    %v1045 = vunpack.c.l.b16 %v846
    %v1046 = vunpack.c.h.b16 %v846
    %v1047 = vunpack.c.l.b16 %v847
    %v1048 = vunpack.c.h.b16 %v847
    %v1049 = vunpack.c.l.b16 %v848
    %v1050 = vunpack.c.h.b16 %v848
    %v1051 = vunpack.c.l.b16 %v849
    %v1052 = vunpack.c.h.b16 %v849
    %v1053 = vunpack.c.l.b16 %v850
    %v1054 = vunpack.c.h.b16 %v850
    %v1055 = vunpack.c.l.b16 %v851
    %v1056 = vunpack.c.h.b16 %v851
    %v1057 = vunpack.c.l.b16 %v852
    %v1058 = vunpack.c.h.b16 %v852
    %v1059 = vunpack.c.l.b16 %v853
    %v1060 = vunpack.c.h.b16 %v853
    %v1061 = vunpack.c.l.b16 %v854
    %v1062 = vunpack.c.h.b16 %v854
    %v1063 = vunpack.c.l.b16 %v855
    %v1064 = vunpack.c.h.b16 %v855
    %v1065 = vunpack.c.l.b16 %v856
    %v1066 = vunpack.c.h.b16 %v856
    %v1067 = vunpack.c.l.b16 %v857
    %v1068 = vunpack.c.h.b16 %v857
    %v1069 = vunpack.c.l.b16 %v858
    %v1070 = vunpack.c.h.b16 %v858
    %v1071 = vunpack.c.l.b16 %v859
    %v1072 = vunpack.c.h.b16 %v859
    %v1073 = vunpack.c.l.b16 %v860
    %v1074 = vunpack.c.h.b16 %v860
    %v1075 = vpack.c.b16 %v951, %v947
    %v1076 = vpack.c.b16 %v952, %v948
    %v1077 = vpack.c.b16 %v953, %v949
    %v1078 = vpack.c.b16 %v954, %v950
    %v1079 = vpack.c.b16 %v959, %v955
    %v1080 = vpack.c.b16 %v960, %v956
    %v1081 = vpack.c.b16 %v961, %v957
    %v1082 = vpack.c.b16 %v962, %v958
    %v1083 = vpack.c.b16 %v967, %v963
    %v1084 = vpack.c.b16 %v968, %v964
    %v1085 = vpack.c.b16 %v969, %v965
    %v1086 = vpack.c.b16 %v970, %v966
    %v1087 = vpack.c.b16 %v975, %v971
    %v1088 = vpack.c.b16 %v976, %v972
    %v1089 = vpack.c.b16 %v977, %v973
    %v1090 = vpack.c.b16 %v978, %v974
    %v1091 = vpack.c.b16 %v983, %v979
    %v1092 = vpack.c.b16 %v984, %v980
    %v1093 = vpack.c.b16 %v985, %v981
    %v1094 = vpack.c.b16 %v986, %v982
    %v1095 = vpack.c.b16 %v991, %v987
    %v1096 = vpack.c.b16 %v992, %v988
    %v1097 = vpack.c.b16 %v993, %v989
    %v1098 = vpack.c.b16 %v994, %v990
    %v1099 = vpack.c.b16 %v999, %v995
    %v1100 = vpack.c.b16 %v1000, %v996
    %v1101 = vpack.c.b16 %v1001, %v997
    %v1102 = vpack.c.b16 %v1002, %v998
    %v1103 = vpack.c.b16 %v1007, %v1003
    %v1104 = vpack.c.b16 %v1008, %v1004
    %v1105 = vpack.c.b16 %v1009, %v1005
    %v1106 = vpack.c.b16 %v1010, %v1006
    %v1107 = vpack.c.b16 %v1015, %v1011
    %v1108 = vpack.c.b16 %v1016, %v1012
    %v1109 = vpack.c.b16 %v1017, %v1013
    %v1110 = vpack.c.b16 %v1018, %v1014
    %v1111 = vpack.c.b16 %v1023, %v1019
    %v1112 = vpack.c.b16 %v1024, %v1020
    %v1113 = vpack.c.b16 %v1025, %v1021
    %v1114 = vpack.c.b16 %v1026, %v1022
    %v1115 = vpack.c.b16 %v1031, %v1027
    %v1116 = vpack.c.b16 %v1032, %v1028
    %v1117 = vpack.c.b16 %v1033, %v1029
    %v1118 = vpack.c.b16 %v1034, %v1030
    %v1119 = vpack.c.b16 %v1039, %v1035
    %v1120 = vpack.c.b16 %v1040, %v1036
    %v1121 = vpack.c.b16 %v1041, %v1037
    %v1122 = vpack.c.b16 %v1042, %v1038
    %v1123 = vpack.c.b16 %v1047, %v1043
    %v1124 = vpack.c.b16 %v1048, %v1044
    %v1125 = vpack.c.b16 %v1049, %v1045
    %v1126 = vpack.c.b16 %v1050, %v1046
    %v1127 = vpack.c.b16 %v1055, %v1051
    %v1128 = vpack.c.b16 %v1056, %v1052
    %v1129 = vpack.c.b16 %v1057, %v1053
    %v1130 = vpack.c.b16 %v1058, %v1054
    %v1131 = vpack.c.b16 %v1063, %v1059
    %v1132 = vpack.c.b16 %v1064, %v1060
    %v1133 = vpack.c.b16 %v1065, %v1061
    %v1134 = vpack.c.b16 %v1066, %v1062
    %v1135 = vpack.c.b16 %v1071, %v1067
    %v1136 = vpack.c.b16 %v1072, %v1068
    %v1137 = vpack.c.b16 %v1073, %v1069
    %v1138 = vpack.c.b16 %v1074, %v1070
    %1203 = vmatprep.subr.bf16.mxu0 %v1104
    %1204 = vmatpush1.bf16.msra.mxu0 %v1103
    %1205 = vmatprep.subr.bf16.mxu0 %v1100
    %1206 = vmatpush1.bf16.msra.mxu0 %v1099
    %1207 = vmatprep.subr.bf16.mxu0 %v1096
    %1208 = vmatpush1.bf16.msra.mxu0 %v1095
    %1209 = vmatprep.subr.bf16.mxu0 %v1092
    %1210 = vmatpush1.bf16.msra.mxu0 %v1091
    %1211 = vmatprep.subr.bf16.mxu0 %v1088
    %1212 = vmatpush1.bf16.msra.mxu0 %v1087
    %1213 = vmatprep.subr.bf16.mxu0 %v1084
    %1214 = vmatpush1.bf16.msra.mxu0 %v1083
    %1215 = vmatprep.subr.bf16.mxu0 %v1080
    %1216 = vmatpush1.bf16.msra.mxu0 %v1079
    %1217 = vmatprep.subr.bf16.mxu0 %v1076
    %1218 = vmatpush1.bf16.msra.mxu0 %v1075
    %1219 = vmatprep.subr.bf16.mxu0 %v1136
    %1220 = vmatpush2.bf16.msra.mxu0 %v1135
    %1221 = vmatprep.subr.bf16.mxu0 %v1132
    %1222 = vmatpush2.bf16.msra.mxu0 %v1131
    %1223 = vmatprep.subr.bf16.mxu0 %v1128
    %1224 = vmatpush2.bf16.msra.mxu0 %v1127
    %1225 = vmatprep.subr.bf16.mxu0 %v1124
    %1226 = vmatpush2.bf16.msra.mxu0 %v1123
    %1227 = vmatprep.subr.bf16.mxu0 %v1120
    %1228 = vmatpush2.bf16.msra.mxu0 %v1119
    %1229 = vmatprep.subr.bf16.mxu0 %v1116
    %1230 = vmatpush2.bf16.msra.mxu0 %v1115
    %1231 = vmatprep.subr.bf16.mxu0 %v1112
    %1232 = vmatpush2.bf16.msra.mxu0 %v1111
    %1233 = vmatprep.subr.bf16.mxu0 %v1108
    %1234 = vmatpush2.bf16.msra.mxu0 %v1107
    %1235 = vmatprep.mubr.bf16.mxu0 %v675
    %1236 = vmatmul.mubr.bf16.gmra.mxu0 %v796
    %v1237 = vpop.f32.mrf.mxu0
    %v1238 = vadd.f32 %v866, %v1237
    %v1239 = vpop.f32.mrf.mxu0
    %v1240 = vadd.f32 %v870, %v1239
    %v1241 = vpop.f32.mrf.mxu0
    %v1242 = vpop.f32.mrf.mxu0
    %1243 = vdwg.mxu0
    %1244 = vmatprep.subr.bf16.mxu0 %v1106
    %1245 = vmatpush1.bf16.msra.mxu0 %v1105
    %1246 = vmatprep.subr.bf16.mxu0 %v1102
    %1247 = vmatpush1.bf16.msra.mxu0 %v1101
    %1248 = vmatprep.subr.bf16.mxu0 %v1098
    %1249 = vmatpush1.bf16.msra.mxu0 %v1097
    %1250 = vmatprep.subr.bf16.mxu0 %v1094
    %1251 = vmatpush1.bf16.msra.mxu0 %v1093
    %1252 = vmatprep.subr.bf16.mxu0 %v1090
    %1253 = vmatpush1.bf16.msra.mxu0 %v1089
    %1254 = vmatprep.subr.bf16.mxu0 %v1086
    %1255 = vmatpush1.bf16.msra.mxu0 %v1085
    %1256 = vmatprep.subr.bf16.mxu0 %v1082
    %1257 = vmatpush1.bf16.msra.mxu0 %v1081
    %1258 = vmatprep.subr.bf16.mxu0 %v1078
    %1259 = vmatpush1.bf16.msra.mxu0 %v1077
    %1260 = vmatprep.subr.bf16.mxu0 %v1138
    %1261 = vmatpush2.bf16.msra.mxu0 %v1137
    %1262 = vmatprep.subr.bf16.mxu0 %v1134
    %1263 = vmatpush2.bf16.msra.mxu0 %v1133
    %1264 = vmatprep.subr.bf16.mxu0 %v1130
    %1265 = vmatpush2.bf16.msra.mxu0 %v1129
    %1266 = vmatprep.subr.bf16.mxu0 %v1126
    %1267 = vmatpush2.bf16.msra.mxu0 %v1125
    %1268 = vmatprep.subr.bf16.mxu0 %v1122
    %1269 = vmatpush2.bf16.msra.mxu0 %v1121
    %1270 = vmatprep.subr.bf16.mxu0 %v1118
    %1271 = vmatpush2.bf16.msra.mxu0 %v1117
    %1272 = vmatprep.subr.bf16.mxu0 %v1114
    %1273 = vmatpush2.bf16.msra.mxu0 %v1113
    %1274 = vmatprep.subr.bf16.mxu0 %v1110
    %1275 = vmatpush2.bf16.msra.mxu0 %v1109
    %1276 = vmatprep.mubr.bf16.mxu0 %v675
    %1277 = vmatmul.mubr.bf16.gmra.mxu0 %v796
    %v1278 = vpop.f32.mrf.mxu0
    %v1279 = vadd.f32 %v874, %v1278
    %v1280 = vpop.f32.mrf.mxu0
    %v1281 = vadd.f32 %v878, %v1280
    %v1282 = vpop.f32.mrf.mxu0
    %v1283 = vpop.f32.mrf.mxu0
    %1284 = vdwg.mxu0
    %v1285 = vxor.u32 %v1238, 2147483648
    %v1286 = vmul.f32 %v1285, 1.442695
    %v1287 = vpow.pop %v1286
    %v1288 = vadd.f32 %v1287, 1.0
    %v1289 = vrcp.pop %v1288
    %v1290 = vmul.f32 1.0, %v1289
    %v1291 = vxor.u32 %v1240, 2147483648
    %v1292 = vmul.f32 %v1291, 1.442695
    %v1293 = vpow.pop %v1292
    %v1294 = vadd.f32 %v1293, 1.0
    %v1295 = vrcp.pop %v1294
    %v1296 = vmul.f32 1.0, %v1295
    %v1297 = vmul.f32 %v1290, %v1281
    %v1298 = vadd.f32 %v1279, %v1297
    %v1299 = vtanh.pop %v1298
    %v1300 = vsub.f32 1.0, %v1296
    %v1301 = vmul.f32 %v1300, %v1299
    %v1302 = vmul.f32 %v1296, %v674
    %v1303 = vadd.f32 %v1301, %v1302
    %v1304 = vpack.c.bf16 %v1303, %v1303
    %v1305 = vld [vmem:[#allocation8] sm:$0xf]
    %v1306 = vld [vmem:[#allocation8 + $0x4] sm:$0xf]
    %v1307 = vld [vmem:[#allocation8 + $0x8] sm:$0xf]
    %v1308 = vld [vmem:[#allocation8 + $0xc] sm:$0xf]
    %v1309 = vld [vmem:[#allocation8 + $0x10] sm:$0xf]
    %v1310 = vld [vmem:[#allocation8 + $0x14] sm:$0xf]
    %v1311 = vld [vmem:[#allocation8 + $0x18] sm:$0xf]
    %v1312 = vld [vmem:[#allocation8 + $0x1c] sm:$0xf]
    %v1313 = vld [vmem:[#allocation8 + $0x20] sm:$0xf]
    %v1314 = vld [vmem:[#allocation8 + $0x24] sm:$0xf]
    %v1315 = vld [vmem:[#allocation8 + $0x28] sm:$0xf]
    %v1316 = vld [vmem:[#allocation8 + $0x2c] sm:$0xf]
    %v1317 = vld [vmem:[#allocation8 + $0x30] sm:$0xf]
    %v1318 = vld [vmem:[#allocation8 + $0x34] sm:$0xf]
    %v1319 = vld [vmem:[#allocation8 + $0x38] sm:$0xf]
    %v1320 = vld [vmem:[#allocation8 + $0x3c] sm:$0xf]
    %v1321 = vld [vmem:[%s7] sm:$0x1]
    %v1323 = vlaneseq
    %v1324 = vshrl.u32 %v1323, 7
    %v1325 = vsub.s32 0, %v1324
    %v1326 = vrot.slane %v1321, %v1325
    %v1344 = vunpack.c.l.b16 %v1305
    %v1345 = vunpack.c.l.b16 %v1306
    %v1346 = vunpack.c.l.b16 %v1307
    %v1347 = vunpack.c.l.b16 %v1308
    %v1348 = vunpack.c.l.b16 %v1309
    %v1349 = vunpack.c.l.b16 %v1310
    %v1350 = vunpack.c.l.b16 %v1311
    %v1351 = vunpack.c.l.b16 %v1312
    %v1352 = vunpack.c.l.b16 %v1313
    %v1353 = vunpack.c.l.b16 %v1314
    %v1354 = vunpack.c.l.b16 %v1315
    %v1355 = vunpack.c.l.b16 %v1316
    %v1356 = vunpack.c.l.b16 %v1317
    %v1357 = vunpack.c.l.b16 %v1318
    %v1358 = vunpack.c.l.b16 %v1319
    %v1359 = vunpack.c.l.b16 %v1320
    %v1360 = vpack.c.b16 %v1345, %v1344
    %v1361 = vpack.c.b16 %v1347, %v1346
    %v1362 = vpack.c.b16 %v1349, %v1348
    %v1363 = vpack.c.b16 %v1351, %v1350
    %v1364 = vpack.c.b16 %v1353, %v1352
    %v1365 = vpack.c.b16 %v1355, %v1354
    %v1366 = vpack.c.b16 %v1357, %v1356
    %v1367 = vpack.c.b16 %v1359, %v1358
    %1376 = vmatprep.subr.bf16.mxu0 0
    %1377 = vmatpush1.bf16.msra.mxu0 %v1367
    %1378 = vmatprep.subr.bf16.mxu0 0
    %1379 = vmatpush1.bf16.msra.mxu0 %v1366
    %1380 = vmatprep.subr.bf16.mxu0 0
    %1381 = vmatpush1.bf16.msra.mxu0 %v1365
    %1382 = vmatprep.subr.bf16.mxu0 0
    %1383 = vmatpush1.bf16.msra.mxu0 %v1364
    %1384 = vmatprep.subr.bf16.mxu0 0
    %1385 = vmatpush1.bf16.msra.mxu0 %v1363
    %1386 = vmatprep.subr.bf16.mxu0 0
    %1387 = vmatpush1.bf16.msra.mxu0 %v1362
    %1388 = vmatprep.subr.bf16.mxu0 0
    %1389 = vmatpush1.bf16.msra.mxu0 %v1361
    %1390 = vmatprep.subr.bf16.mxu0 0
    %1391 = vmatpush1.bf16.msra.mxu0 %v1360
    %1392 = vmatprep.subr.bf16.mxu0 0
    %1393 = vmatpush2.bf16.msra.mxu0 0
    %1394 = vmatprep.subr.bf16.mxu0 0
    %1395 = vmatpush2.bf16.msra.mxu0 0
    %1396 = vmatprep.subr.bf16.mxu0 0
    %1397 = vmatpush2.bf16.msra.mxu0 0
    %1398 = vmatprep.subr.bf16.mxu0 0
    %1399 = vmatpush2.bf16.msra.mxu0 0
    %1400 = vmatprep.subr.bf16.mxu0 0
    %1401 = vmatpush2.bf16.msra.mxu0 0
    %1402 = vmatprep.subr.bf16.mxu0 0
    %1403 = vmatpush2.bf16.msra.mxu0 0
    %1404 = vmatprep.subr.bf16.mxu0 0
    %1405 = vmatpush2.bf16.msra.mxu0 0
    %1406 = vmatprep.subr.bf16.mxu0 0
    %1407 = vmatpush2.bf16.msra.mxu0 0
    %1408 = vmatprep.mubr.bf16.mxu0 0
    %1409 = vmatmul.mubr.bf16.gmra.mxu0 %v1304
    %v1410 = vpop.f32.mrf.mxu0
    %v1411 = vadd.f32 %v1326, %v1410
    %v1412 = vpop.f32.mrf.mxu0
    %v1413 = vpop.f32.mrf.mxu0
    %v1414 = vpop.f32.mrf.mxu0
    %1415 = vdwg.mxu0
    %v1416 = vmax.f32 %v1411, -10.0
    %v1417 = vmin.f32 %v1416, 10.0
    %s1418 = scalar_lea.vmem [#allocation10], 8
    %1419 = vst [vmem:[%s1418] sm:$0xff] %v1417
    %v1420 = vsub.f32 %v1417, %v165
    %1421 = vmax.xlane.f32.xlu0 %v1420
    %v1422 = vpop.xlane.xlu0 %1421
    %vm1423 = vcmp.eq.f32.partialorder %v1420, %v1422
    %v1424 = vsel %vm1423, 1, 0
    %v1425 = vcvt.s32.f32 %v1424
    %v1426 = vpack.c.bf16 %v1425, %v1425
    %v1427 = vld [vmem:[#allocation7] sm:$0xff]
    %v1428 = vld [vmem:[#allocation7 + $0x8] sm:$0xff]
    %v1429 = vld [vmem:[#allocation7 + $0x10] sm:$0xff]
    %v1430 = vld [vmem:[#allocation7 + $0x18] sm:$0xff]
    %v1431 = vld [vmem:[#allocation7 + $0x20] sm:$0xff]
    %v1432 = vld [vmem:[#allocation7 + $0x28] sm:$0xff]
    %v1433 = vld [vmem:[#allocation7 + $0x30] sm:$0xff]
    %v1434 = vld [vmem:[#allocation7 + $0x38] sm:$0xff]
    %v1435 = vld [vmem:[#allocation7 + $0x40] sm:$0xff]
    %v1436 = vld [vmem:[#allocation7 + $0x48] sm:$0xff]
    %v1437 = vld [vmem:[#allocation7 + $0x50] sm:$0xff]
    %v1438 = vld [vmem:[#allocation7 + $0x58] sm:$0xff]
    %v1439 = vld [vmem:[#allocation7 + $0x60] sm:$0xff]
    %v1440 = vld [vmem:[#allocation7 + $0x68] sm:$0xff]
    %v1441 = vld [vmem:[#allocation7 + $0x70] sm:$0xff]
    %v1442 = vld [vmem:[#allocation7 + $0x78] sm:$0xff]
    %v1443 = vld [vmem:[#allocation7 + $0x80] sm:$0xff]
    %v1444 = vld [vmem:[#allocation7 + $0x88] sm:$0xff]
    %v1445 = vld [vmem:[#allocation7 + $0x90] sm:$0xff]
    %v1446 = vld [vmem:[#allocation7 + $0x98] sm:$0xff]
    %v1447 = vld [vmem:[#allocation7 + $0xa0] sm:$0xff]
    %v1448 = vld [vmem:[#allocation7 + $0xa8] sm:$0xff]
    %v1449 = vld [vmem:[#allocation7 + $0xb0] sm:$0xff]
    %v1450 = vld [vmem:[#allocation7 + $0xb8] sm:$0xff]
    %v1451 = vld [vmem:[#allocation7 + $0xc0] sm:$0xff]
    %v1452 = vld [vmem:[#allocation7 + $0xc8] sm:$0xff]
    %v1453 = vld [vmem:[#allocation7 + $0xd0] sm:$0xff]
    %v1454 = vld [vmem:[#allocation7 + $0xd8] sm:$0xff]
    %v1455 = vld [vmem:[#allocation7 + $0xe0] sm:$0xff]
    %v1456 = vld [vmem:[#allocation7 + $0xe8] sm:$0xff]
    %v1457 = vld [vmem:[#allocation7 + $0xf0] sm:$0xff]
    %v1458 = vld [vmem:[#allocation7 + $0xf8] sm:$0xff]
    %v1459 = vld [vmem:[#allocation7 + $0x100] sm:$0xff]
    %v1460 = vld [vmem:[#allocation7 + $0x108] sm:$0xff]
    %v1461 = vld [vmem:[#allocation7 + $0x110] sm:$0xff]
    %v1462 = vld [vmem:[#allocation7 + $0x118] sm:$0xff]
    %v1463 = vld [vmem:[#allocation7 + $0x120] sm:$0xff]
    %v1464 = vld [vmem:[#allocation7 + $0x128] sm:$0xff]
    %v1465 = vld [vmem:[#allocation7 + $0x130] sm:$0xff]
    %v1466 = vld [vmem:[#allocation7 + $0x138] sm:$0xff]
    %v1467 = vld [vmem:[#allocation7 + $0x140] sm:$0xff]
    %v1468 = vld [vmem:[#allocation7 + $0x148] sm:$0xff]
    %v1469 = vld [vmem:[#allocation7 + $0x150] sm:$0xff]
    %v1470 = vld [vmem:[#allocation7 + $0x158] sm:$0xff]
    %v1471 = vld [vmem:[#allocation7 + $0x160] sm:$0xff]
    %v1472 = vld [vmem:[#allocation7 + $0x168] sm:$0xff]
    %v1473 = vld [vmem:[#allocation7 + $0x170] sm:$0xff]
    %v1474 = vld [vmem:[#allocation7 + $0x178] sm:$0xff]
    %v1475 = vld [vmem:[#allocation7 + $0x180] sm:$0xff]
    %v1476 = vld [vmem:[#allocation7 + $0x188] sm:$0xff]
    %v1477 = vld [vmem:[#allocation7 + $0x190] sm:$0xff]
    %v1478 = vld [vmem:[#allocation7 + $0x198] sm:$0xff]
    %v1479 = vld [vmem:[#allocation7 + $0x1a0] sm:$0xff]
    %v1480 = vld [vmem:[#allocation7 + $0x1a8] sm:$0xff]
    %v1481 = vld [vmem:[#allocation7 + $0x1b0] sm:$0xff]
    %v1482 = vld [vmem:[#allocation7 + $0x1b8] sm:$0xff]
    %v1483 = vld [vmem:[#allocation7 + $0x1c0] sm:$0xff]
    %v1484 = vld [vmem:[#allocation7 + $0x1c8] sm:$0xff]
    %v1485 = vld [vmem:[#allocation7 + $0x1d0] sm:$0xff]
    %v1486 = vld [vmem:[#allocation7 + $0x1d8] sm:$0xff]
    %v1487 = vld [vmem:[#allocation7 + $0x1e0] sm:$0xff]
    %v1488 = vld [vmem:[#allocation7 + $0x1e8] sm:$0xff]
    %v1489 = vld [vmem:[#allocation7 + $0x1f0] sm:$0xff]
    %v1490 = vld [vmem:[#allocation7 + $0x1f8] sm:$0xff]
    %v1491 = vld [vmem:[%s5] sm:$0xf]
    %v1493 = vlaneseq
    %v1494 = vshrl.u32 %v1493, 7
    %v1495 = vsub.s32 0, %v1494
    %v1496 = vrot.slane %v1491, %v1495
    %v1497 = vlaneseq
    %v1498 = vshrl.u32 %v1497, 7
    %v1499 = vsub.s32 1, %v1498
    %v1500 = vrot.slane %v1491, %v1499
    %v1501 = vlaneseq
    %v1502 = vshrl.u32 %v1501, 7
    %v1503 = vsub.s32 2, %v1502
    %v1504 = vrot.slane %v1491, %v1503
    %v1505 = vlaneseq
    %v1506 = vshrl.u32 %v1505, 7
    %v1507 = vsub.s32 3, %v1506
    %v1508 = vrot.slane %v1491, %v1507
    %v1577 = vunpack.c.l.b16 %v1427
    %v1578 = vunpack.c.h.b16 %v1427
    %v1579 = vunpack.c.l.b16 %v1428
    %v1580 = vunpack.c.h.b16 %v1428
    %v1581 = vunpack.c.l.b16 %v1429
    %v1582 = vunpack.c.h.b16 %v1429
    %v1583 = vunpack.c.l.b16 %v1430
    %v1584 = vunpack.c.h.b16 %v1430
    %v1585 = vunpack.c.l.b16 %v1431
    %v1586 = vunpack.c.h.b16 %v1431
    %v1587 = vunpack.c.l.b16 %v1432
    %v1588 = vunpack.c.h.b16 %v1432
    %v1589 = vunpack.c.l.b16 %v1433
    %v1590 = vunpack.c.h.b16 %v1433
    %v1591 = vunpack.c.l.b16 %v1434
    %v1592 = vunpack.c.h.b16 %v1434
    %v1593 = vunpack.c.l.b16 %v1435
    %v1594 = vunpack.c.h.b16 %v1435
    %v1595 = vunpack.c.l.b16 %v1436
    %v1596 = vunpack.c.h.b16 %v1436
    %v1597 = vunpack.c.l.b16 %v1437
    %v1598 = vunpack.c.h.b16 %v1437
    %v1599 = vunpack.c.l.b16 %v1438
    %v1600 = vunpack.c.h.b16 %v1438
    %v1601 = vunpack.c.l.b16 %v1439
    %v1602 = vunpack.c.h.b16 %v1439
    %v1603 = vunpack.c.l.b16 %v1440
    %v1604 = vunpack.c.h.b16 %v1440
    %v1605 = vunpack.c.l.b16 %v1441
    %v1606 = vunpack.c.h.b16 %v1441
    %v1607 = vunpack.c.l.b16 %v1442
    %v1608 = vunpack.c.h.b16 %v1442
    %v1609 = vunpack.c.l.b16 %v1443
    %v1610 = vunpack.c.h.b16 %v1443
    %v1611 = vunpack.c.l.b16 %v1444
    %v1612 = vunpack.c.h.b16 %v1444
    %v1613 = vunpack.c.l.b16 %v1445
    %v1614 = vunpack.c.h.b16 %v1445
    %v1615 = vunpack.c.l.b16 %v1446
    %v1616 = vunpack.c.h.b16 %v1446
    %v1617 = vunpack.c.l.b16 %v1447
    %v1618 = vunpack.c.h.b16 %v1447
    %v1619 = vunpack.c.l.b16 %v1448
    %v1620 = vunpack.c.h.b16 %v1448
    %v1621 = vunpack.c.l.b16 %v1449
    %v1622 = vunpack.c.h.b16 %v1449
    %v1623 = vunpack.c.l.b16 %v1450
    %v1624 = vunpack.c.h.b16 %v1450
    %v1625 = vunpack.c.l.b16 %v1451
    %v1626 = vunpack.c.h.b16 %v1451
    %v1627 = vunpack.c.l.b16 %v1452
    %v1628 = vunpack.c.h.b16 %v1452
    %v1629 = vunpack.c.l.b16 %v1453
    %v1630 = vunpack.c.h.b16 %v1453
    %v1631 = vunpack.c.l.b16 %v1454
    %v1632 = vunpack.c.h.b16 %v1454
    %v1633 = vunpack.c.l.b16 %v1455
    %v1634 = vunpack.c.h.b16 %v1455
    %v1635 = vunpack.c.l.b16 %v1456
    %v1636 = vunpack.c.h.b16 %v1456
    %v1637 = vunpack.c.l.b16 %v1457
    %v1638 = vunpack.c.h.b16 %v1457
    %v1639 = vunpack.c.l.b16 %v1458
    %v1640 = vunpack.c.h.b16 %v1458
    %v1641 = vunpack.c.l.b16 %v1459
    %v1642 = vunpack.c.h.b16 %v1459
    %v1643 = vunpack.c.l.b16 %v1460
    %v1644 = vunpack.c.h.b16 %v1460
    %v1645 = vunpack.c.l.b16 %v1461
    %v1646 = vunpack.c.h.b16 %v1461
    %v1647 = vunpack.c.l.b16 %v1462
    %v1648 = vunpack.c.h.b16 %v1462
    %v1649 = vunpack.c.l.b16 %v1463
    %v1650 = vunpack.c.h.b16 %v1463
    %v1651 = vunpack.c.l.b16 %v1464
    %v1652 = vunpack.c.h.b16 %v1464
    %v1653 = vunpack.c.l.b16 %v1465
    %v1654 = vunpack.c.h.b16 %v1465
    %v1655 = vunpack.c.l.b16 %v1466
    %v1656 = vunpack.c.h.b16 %v1466
    %v1657 = vunpack.c.l.b16 %v1467
    %v1658 = vunpack.c.h.b16 %v1467
    %v1659 = vunpack.c.l.b16 %v1468
    %v1660 = vunpack.c.h.b16 %v1468
    %v1661 = vunpack.c.l.b16 %v1469
    %v1662 = vunpack.c.h.b16 %v1469
    %v1663 = vunpack.c.l.b16 %v1470
    %v1664 = vunpack.c.h.b16 %v1470
    %v1665 = vunpack.c.l.b16 %v1471
    %v1666 = vunpack.c.h.b16 %v1471
    %v1667 = vunpack.c.l.b16 %v1472
    %v1668 = vunpack.c.h.b16 %v1472
    %v1669 = vunpack.c.l.b16 %v1473
    %v1670 = vunpack.c.h.b16 %v1473
    %v1671 = vunpack.c.l.b16 %v1474
    %v1672 = vunpack.c.h.b16 %v1474
    %v1673 = vunpack.c.l.b16 %v1475
    %v1674 = vunpack.c.h.b16 %v1475
    %v1675 = vunpack.c.l.b16 %v1476
    %v1676 = vunpack.c.h.b16 %v1476
    %v1677 = vunpack.c.l.b16 %v1477
    %v1678 = vunpack.c.h.b16 %v1477
    %v1679 = vunpack.c.l.b16 %v1478
    %v1680 = vunpack.c.h.b16 %v1478
    %v1681 = vunpack.c.l.b16 %v1479
    %v1682 = vunpack.c.h.b16 %v1479
    %v1683 = vunpack.c.l.b16 %v1480
    %v1684 = vunpack.c.h.b16 %v1480
    %v1685 = vunpack.c.l.b16 %v1481
    %v1686 = vunpack.c.h.b16 %v1481
    %v1687 = vunpack.c.l.b16 %v1482
    %v1688 = vunpack.c.h.b16 %v1482
    %v1689 = vunpack.c.l.b16 %v1483
    %v1690 = vunpack.c.h.b16 %v1483
    %v1691 = vunpack.c.l.b16 %v1484
    %v1692 = vunpack.c.h.b16 %v1484
    %v1693 = vunpack.c.l.b16 %v1485
    %v1694 = vunpack.c.h.b16 %v1485
    %v1695 = vunpack.c.l.b16 %v1486
    %v1696 = vunpack.c.h.b16 %v1486
    %v1697 = vunpack.c.l.b16 %v1487
    %v1698 = vunpack.c.h.b16 %v1487
    %v1699 = vunpack.c.l.b16 %v1488
    %v1700 = vunpack.c.h.b16 %v1488
    %v1701 = vunpack.c.l.b16 %v1489
    %v1702 = vunpack.c.h.b16 %v1489
    %v1703 = vunpack.c.l.b16 %v1490
    %v1704 = vunpack.c.h.b16 %v1490
    %v1705 = vpack.c.b16 %v1581, %v1577
    %v1706 = vpack.c.b16 %v1582, %v1578
    %v1707 = vpack.c.b16 %v1583, %v1579
    %v1708 = vpack.c.b16 %v1584, %v1580
    %v1709 = vpack.c.b16 %v1589, %v1585
    %v1710 = vpack.c.b16 %v1590, %v1586
    %v1711 = vpack.c.b16 %v1591, %v1587
    %v1712 = vpack.c.b16 %v1592, %v1588
    %v1713 = vpack.c.b16 %v1597, %v1593
    %v1714 = vpack.c.b16 %v1598, %v1594
    %v1715 = vpack.c.b16 %v1599, %v1595
    %v1716 = vpack.c.b16 %v1600, %v1596
    %v1717 = vpack.c.b16 %v1605, %v1601
    %v1718 = vpack.c.b16 %v1606, %v1602
    %v1719 = vpack.c.b16 %v1607, %v1603
    %v1720 = vpack.c.b16 %v1608, %v1604
    %v1721 = vpack.c.b16 %v1613, %v1609
    %v1722 = vpack.c.b16 %v1614, %v1610
    %v1723 = vpack.c.b16 %v1615, %v1611
    %v1724 = vpack.c.b16 %v1616, %v1612
    %v1725 = vpack.c.b16 %v1621, %v1617
    %v1726 = vpack.c.b16 %v1622, %v1618
    %v1727 = vpack.c.b16 %v1623, %v1619
    %v1728 = vpack.c.b16 %v1624, %v1620
    %v1729 = vpack.c.b16 %v1629, %v1625
    %v1730 = vpack.c.b16 %v1630, %v1626
    %v1731 = vpack.c.b16 %v1631, %v1627
    %v1732 = vpack.c.b16 %v1632, %v1628
    %v1733 = vpack.c.b16 %v1637, %v1633
    %v1734 = vpack.c.b16 %v1638, %v1634
    %v1735 = vpack.c.b16 %v1639, %v1635
    %v1736 = vpack.c.b16 %v1640, %v1636
    %v1737 = vpack.c.b16 %v1645, %v1641
    %v1738 = vpack.c.b16 %v1646, %v1642
    %v1739 = vpack.c.b16 %v1647, %v1643
    %v1740 = vpack.c.b16 %v1648, %v1644
    %v1741 = vpack.c.b16 %v1653, %v1649
    %v1742 = vpack.c.b16 %v1654, %v1650
    %v1743 = vpack.c.b16 %v1655, %v1651
    %v1744 = vpack.c.b16 %v1656, %v1652
    %v1745 = vpack.c.b16 %v1661, %v1657
    %v1746 = vpack.c.b16 %v1662, %v1658
    %v1747 = vpack.c.b16 %v1663, %v1659
    %v1748 = vpack.c.b16 %v1664, %v1660
    %v1749 = vpack.c.b16 %v1669, %v1665
    %v1750 = vpack.c.b16 %v1670, %v1666
    %v1751 = vpack.c.b16 %v1671, %v1667
    %v1752 = vpack.c.b16 %v1672, %v1668
    %v1753 = vpack.c.b16 %v1677, %v1673
    %v1754 = vpack.c.b16 %v1678, %v1674
    %v1755 = vpack.c.b16 %v1679, %v1675
    %v1756 = vpack.c.b16 %v1680, %v1676
    %v1757 = vpack.c.b16 %v1685, %v1681
    %v1758 = vpack.c.b16 %v1686, %v1682
    %v1759 = vpack.c.b16 %v1687, %v1683
    %v1760 = vpack.c.b16 %v1688, %v1684
    %v1761 = vpack.c.b16 %v1693, %v1689
    %v1762 = vpack.c.b16 %v1694, %v1690
    %v1763 = vpack.c.b16 %v1695, %v1691
    %v1764 = vpack.c.b16 %v1696, %v1692
    %v1765 = vpack.c.b16 %v1701, %v1697
    %v1766 = vpack.c.b16 %v1702, %v1698
    %v1767 = vpack.c.b16 %v1703, %v1699
    %v1768 = vpack.c.b16 %v1704, %v1700
    %1833 = vmatprep.subr.bf16.mxu0 %v1734
    %1834 = vmatpush1.bf16.msra.mxu0 %v1733
    %1835 = vmatprep.subr.bf16.mxu0 %v1730
    %1836 = vmatpush1.bf16.msra.mxu0 %v1729
    %1837 = vmatprep.subr.bf16.mxu0 %v1726
    %1838 = vmatpush1.bf16.msra.mxu0 %v1725
    %1839 = vmatprep.subr.bf16.mxu0 %v1722
    %1840 = vmatpush1.bf16.msra.mxu0 %v1721
    %1841 = vmatprep.subr.bf16.mxu0 %v1718
    %1842 = vmatpush1.bf16.msra.mxu0 %v1717
    %1843 = vmatprep.subr.bf16.mxu0 %v1714
    %1844 = vmatpush1.bf16.msra.mxu0 %v1713
    %1845 = vmatprep.subr.bf16.mxu0 %v1710
    %1846 = vmatpush1.bf16.msra.mxu0 %v1709
    %1847 = vmatprep.subr.bf16.mxu0 %v1706
    %1848 = vmatpush1.bf16.msra.mxu0 %v1705
    %1849 = vmatprep.subr.bf16.mxu0 %v1766
    %1850 = vmatpush2.bf16.msra.mxu0 %v1765
    %1851 = vmatprep.subr.bf16.mxu0 %v1762
    %1852 = vmatpush2.bf16.msra.mxu0 %v1761
    %1853 = vmatprep.subr.bf16.mxu0 %v1758
    %1854 = vmatpush2.bf16.msra.mxu0 %v1757
    %1855 = vmatprep.subr.bf16.mxu0 %v1754
    %1856 = vmatpush2.bf16.msra.mxu0 %v1753
    %1857 = vmatprep.subr.bf16.mxu0 %v1750
    %1858 = vmatpush2.bf16.msra.mxu0 %v1749
    %1859 = vmatprep.subr.bf16.mxu0 %v1746
    %1860 = vmatpush2.bf16.msra.mxu0 %v1745
    %1861 = vmatprep.subr.bf16.mxu0 %v1742
    %1862 = vmatpush2.bf16.msra.mxu0 %v1741
    %1863 = vmatprep.subr.bf16.mxu0 %v1738
    %1864 = vmatpush2.bf16.msra.mxu0 %v1737
    %1865 = vmatprep.mubr.bf16.mxu0 %v1304
    %1866 = vmatmul.mubr.bf16.gmra.mxu0 %v1426
    %v1867 = vpop.f32.mrf.mxu0
    %v1868 = vadd.f32 %v1496, %v1867
    %v1869 = vpop.f32.mrf.mxu0
    %v1870 = vadd.f32 %v1500, %v1869
    %v1871 = vpop.f32.mrf.mxu0
    %v1872 = vpop.f32.mrf.mxu0
    %1873 = vdwg.mxu0
    %1874 = vmatprep.subr.bf16.mxu0 %v1736
    %1875 = vmatpush1.bf16.msra.mxu0 %v1735
    %1876 = vmatprep.subr.bf16.mxu0 %v1732
    %1877 = vmatpush1.bf16.msra.mxu0 %v1731
    %1878 = vmatprep.subr.bf16.mxu0 %v1728
    %1879 = vmatpush1.bf16.msra.mxu0 %v1727
    %1880 = vmatprep.subr.bf16.mxu0 %v1724
    %1881 = vmatpush1.bf16.msra.mxu0 %v1723
    %1882 = vmatprep.subr.bf16.mxu0 %v1720
    %1883 = vmatpush1.bf16.msra.mxu0 %v1719
    %1884 = vmatprep.subr.bf16.mxu0 %v1716
    %1885 = vmatpush1.bf16.msra.mxu0 %v1715
    %1886 = vmatprep.subr.bf16.mxu0 %v1712
    %1887 = vmatpush1.bf16.msra.mxu0 %v1711
    %1888 = vmatprep.subr.bf16.mxu0 %v1708
    %1889 = vmatpush1.bf16.msra.mxu0 %v1707
    %1890 = vmatprep.subr.bf16.mxu0 %v1768
    %1891 = vmatpush2.bf16.msra.mxu0 %v1767
    %1892 = vmatprep.subr.bf16.mxu0 %v1764
    %1893 = vmatpush2.bf16.msra.mxu0 %v1763
    %1894 = vmatprep.subr.bf16.mxu0 %v1760
    %1895 = vmatpush2.bf16.msra.mxu0 %v1759
    %1896 = vmatprep.subr.bf16.mxu0 %v1756
    %1897 = vmatpush2.bf16.msra.mxu0 %v1755
    %1898 = vmatprep.subr.bf16.mxu0 %v1752
    %1899 = vmatpush2.bf16.msra.mxu0 %v1751
    %1900 = vmatprep.subr.bf16.mxu0 %v1748
    %1901 = vmatpush2.bf16.msra.mxu0 %v1747
    %1902 = vmatprep.subr.bf16.mxu0 %v1744
    %1903 = vmatpush2.bf16.msra.mxu0 %v1743
    %1904 = vmatprep.subr.bf16.mxu0 %v1740
    %1905 = vmatpush2.bf16.msra.mxu0 %v1739
    %1906 = vmatprep.mubr.bf16.mxu0 %v1304
    %1907 = vmatmul.mubr.bf16.gmra.mxu0 %v1426
    %v1908 = vpop.f32.mrf.mxu0
    %v1909 = vadd.f32 %v1504, %v1908
    %v1910 = vpop.f32.mrf.mxu0
    %v1911 = vadd.f32 %v1508, %v1910
    %v1912 = vpop.f32.mrf.mxu0
    %v1913 = vpop.f32.mrf.mxu0
    %1914 = vdwg.mxu0
    %v1915 = vxor.u32 %v1868, 2147483648
    %v1916 = vmul.f32 %v1915, 1.442695
    %v1917 = vpow.pop %v1916
    %v1918 = vadd.f32 %v1917, 1.0
    %v1919 = vrcp.pop %v1918
    %v1920 = vmul.f32 1.0, %v1919
    %v1921 = vxor.u32 %v1870, 2147483648
    %v1922 = vmul.f32 %v1921, 1.442695
    %v1923 = vpow.pop %v1922
    %v1924 = vadd.f32 %v1923, 1.0
    %v1925 = vrcp.pop %v1924
    %v1926 = vmul.f32 1.0, %v1925
    %v1927 = vmul.f32 %v1920, %v1911
    %v1928 = vadd.f32 %v1909, %v1927
    %v1929 = vtanh.pop %v1928
    %v1930 = vsub.f32 1.0, %v1926
    %v1931 = vmul.f32 %v1930, %v1929
    %v1932 = vmul.f32 %v1926, %v1303
    %v1933 = vadd.f32 %v1931, %v1932
    %v1934 = vpack.c.bf16 %v1933, %v1933
    %v1935 = vld [vmem:[#allocation8] sm:$0xf]
    %v1936 = vld [vmem:[#allocation8 + $0x4] sm:$0xf]
    %v1937 = vld [vmem:[#allocation8 + $0x8] sm:$0xf]
    %v1938 = vld [vmem:[#allocation8 + $0xc] sm:$0xf]
    %v1939 = vld [vmem:[#allocation8 + $0x10] sm:$0xf]
    %v1940 = vld [vmem:[#allocation8 + $0x14] sm:$0xf]
    %v1941 = vld [vmem:[#allocation8 + $0x18] sm:$0xf]
    %v1942 = vld [vmem:[#allocation8 + $0x1c] sm:$0xf]
    %v1943 = vld [vmem:[#allocation8 + $0x20] sm:$0xf]
    %v1944 = vld [vmem:[#allocation8 + $0x24] sm:$0xf]
    %v1945 = vld [vmem:[#allocation8 + $0x28] sm:$0xf]
    %v1946 = vld [vmem:[#allocation8 + $0x2c] sm:$0xf]
    %v1947 = vld [vmem:[#allocation8 + $0x30] sm:$0xf]
    %v1948 = vld [vmem:[#allocation8 + $0x34] sm:$0xf]
    %v1949 = vld [vmem:[#allocation8 + $0x38] sm:$0xf]
    %v1950 = vld [vmem:[#allocation8 + $0x3c] sm:$0xf]
    %v1951 = vld [vmem:[%s7] sm:$0x1]
    %v1953 = vlaneseq
    %v1954 = vshrl.u32 %v1953, 7
    %v1955 = vsub.s32 0, %v1954
    %v1956 = vrot.slane %v1951, %v1955
    %v1974 = vunpack.c.l.b16 %v1935
    %v1975 = vunpack.c.l.b16 %v1936
    %v1976 = vunpack.c.l.b16 %v1937
    %v1977 = vunpack.c.l.b16 %v1938
    %v1978 = vunpack.c.l.b16 %v1939
    %v1979 = vunpack.c.l.b16 %v1940
    %v1980 = vunpack.c.l.b16 %v1941
    %v1981 = vunpack.c.l.b16 %v1942
    %v1982 = vunpack.c.l.b16 %v1943
    %v1983 = vunpack.c.l.b16 %v1944
    %v1984 = vunpack.c.l.b16 %v1945
    %v1985 = vunpack.c.l.b16 %v1946
    %v1986 = vunpack.c.l.b16 %v1947
    %v1987 = vunpack.c.l.b16 %v1948
    %v1988 = vunpack.c.l.b16 %v1949
    %v1989 = vunpack.c.l.b16 %v1950
    %v1990 = vpack.c.b16 %v1975, %v1974
    %v1991 = vpack.c.b16 %v1977, %v1976
    %v1992 = vpack.c.b16 %v1979, %v1978
    %v1993 = vpack.c.b16 %v1981, %v1980
    %v1994 = vpack.c.b16 %v1983, %v1982
    %v1995 = vpack.c.b16 %v1985, %v1984
    %v1996 = vpack.c.b16 %v1987, %v1986
    %v1997 = vpack.c.b16 %v1989, %v1988
    %2006 = vmatprep.subr.bf16.mxu0 0
    %2007 = vmatpush1.bf16.msra.mxu0 %v1997
    %2008 = vmatprep.subr.bf16.mxu0 0
    %2009 = vmatpush1.bf16.msra.mxu0 %v1996
    %2010 = vmatprep.subr.bf16.mxu0 0
    %2011 = vmatpush1.bf16.msra.mxu0 %v1995
    %2012 = vmatprep.subr.bf16.mxu0 0
    %2013 = vmatpush1.bf16.msra.mxu0 %v1994
    %2014 = vmatprep.subr.bf16.mxu0 0
    %2015 = vmatpush1.bf16.msra.mxu0 %v1993
    %2016 = vmatprep.subr.bf16.mxu0 0
    %2017 = vmatpush1.bf16.msra.mxu0 %v1992
    %2018 = vmatprep.subr.bf16.mxu0 0
    %2019 = vmatpush1.bf16.msra.mxu0 %v1991
    %2020 = vmatprep.subr.bf16.mxu0 0
    %2021 = vmatpush1.bf16.msra.mxu0 %v1990
    %2022 = vmatprep.subr.bf16.mxu0 0
    %2023 = vmatpush2.bf16.msra.mxu0 0
    %2024 = vmatprep.subr.bf16.mxu0 0
    %2025 = vmatpush2.bf16.msra.mxu0 0
    %2026 = vmatprep.subr.bf16.mxu0 0
    %2027 = vmatpush2.bf16.msra.mxu0 0
    %2028 = vmatprep.subr.bf16.mxu0 0
    %2029 = vmatpush2.bf16.msra.mxu0 0
    %2030 = vmatprep.subr.bf16.mxu0 0
    %2031 = vmatpush2.bf16.msra.mxu0 0
    %2032 = vmatprep.subr.bf16.mxu0 0
    %2033 = vmatpush2.bf16.msra.mxu0 0
    %2034 = vmatprep.subr.bf16.mxu0 0
    %2035 = vmatpush2.bf16.msra.mxu0 0
    %2036 = vmatprep.subr.bf16.mxu0 0
    %2037 = vmatpush2.bf16.msra.mxu0 0
    %2038 = vmatprep.mubr.bf16.mxu0 0
    %2039 = vmatmul.mubr.bf16.gmra.mxu0 %v1934
    %v2040 = vpop.f32.mrf.mxu0
    %v2041 = vadd.f32 %v1956, %v2040
    %v2042 = vpop.f32.mrf.mxu0
    %v2043 = vpop.f32.mrf.mxu0
    %v2044 = vpop.f32.mrf.mxu0
    %2045 = vdwg.mxu0
    %v2046 = vmax.f32 %v2041, -10.0
    %v2047 = vmin.f32 %v2046, 10.0
    %s2048 = scalar_lea.vmem [#allocation10], 16
    %2049 = vst [vmem:[%s2048] sm:$0xff] %v2047
    %v2050 = vsub.f32 %v2047, %v165
    %2051 = vmax.xlane.f32.xlu0 %v2050
    %v2052 = vpop.xlane.xlu0 %2051
    %vm2053 = vcmp.eq.f32.partialorder %v2050, %v2052
    %v2054 = vsel %vm2053, 1, 0
    %v2055 = vcvt.s32.f32 %v2054
    %v2056 = vpack.c.bf16 %v2055, %v2055
    %v2057 = vld [vmem:[#allocation7] sm:$0xff]
    %v2058 = vld [vmem:[#allocation7 + $0x8] sm:$0xff]
    %v2059 = vld [vmem:[#allocation7 + $0x10] sm:$0xff]
    %v2060 = vld [vmem:[#allocation7 + $0x18] sm:$0xff]
    %v2061 = vld [vmem:[#allocation7 + $0x20] sm:$0xff]
    %v2062 = vld [vmem:[#allocation7 + $0x28] sm:$0xff]
    %v2063 = vld [vmem:[#allocation7 + $0x30] sm:$0xff]
    %v2064 = vld [vmem:[#allocation7 + $0x38] sm:$0xff]
    %v2065 = vld [vmem:[#allocation7 + $0x40] sm:$0xff]
    %v2066 = vld [vmem:[#allocation7 + $0x48] sm:$0xff]
    %v2067 = vld [vmem:[#allocation7 + $0x50] sm:$0xff]
    %v2068 = vld [vmem:[#allocation7 + $0x58] sm:$0xff]
    %v2069 = vld [vmem:[#allocation7 + $0x60] sm:$0xff]
    %v2070 = vld [vmem:[#allocation7 + $0x68] sm:$0xff]
    %v2071 = vld [vmem:[#allocation7 + $0x70] sm:$0xff]
    %v2072 = vld [vmem:[#allocation7 + $0x78] sm:$0xff]
    %v2073 = vld [vmem:[#allocation7 + $0x80] sm:$0xff]
    %v2074 = vld [vmem:[#allocation7 + $0x88] sm:$0xff]
    %v2075 = vld [vmem:[#allocation7 + $0x90] sm:$0xff]
    %v2076 = vld [vmem:[#allocation7 + $0x98] sm:$0xff]
    %v2077 = vld [vmem:[#allocation7 + $0xa0] sm:$0xff]
    %v2078 = vld [vmem:[#allocation7 + $0xa8] sm:$0xff]
    %v2079 = vld [vmem:[#allocation7 + $0xb0] sm:$0xff]
    %v2080 = vld [vmem:[#allocation7 + $0xb8] sm:$0xff]
    %v2081 = vld [vmem:[#allocation7 + $0xc0] sm:$0xff]
    %v2082 = vld [vmem:[#allocation7 + $0xc8] sm:$0xff]
    %v2083 = vld [vmem:[#allocation7 + $0xd0] sm:$0xff]
    %v2084 = vld [vmem:[#allocation7 + $0xd8] sm:$0xff]
    %v2085 = vld [vmem:[#allocation7 + $0xe0] sm:$0xff]
    %v2086 = vld [vmem:[#allocation7 + $0xe8] sm:$0xff]
    %v2087 = vld [vmem:[#allocation7 + $0xf0] sm:$0xff]
    %v2088 = vld [vmem:[#allocation7 + $0xf8] sm:$0xff]
    %v2089 = vld [vmem:[#allocation7 + $0x100] sm:$0xff]
    %v2090 = vld [vmem:[#allocation7 + $0x108] sm:$0xff]
    %v2091 = vld [vmem:[#allocation7 + $0x110] sm:$0xff]
    %v2092 = vld [vmem:[#allocation7 + $0x118] sm:$0xff]
    %v2093 = vld [vmem:[#allocation7 + $0x120] sm:$0xff]
    %v2094 = vld [vmem:[#allocation7 + $0x128] sm:$0xff]
    %v2095 = vld [vmem:[#allocation7 + $0x130] sm:$0xff]
    %v2096 = vld [vmem:[#allocation7 + $0x138] sm:$0xff]
    %v2097 = vld [vmem:[#allocation7 + $0x140] sm:$0xff]
    %v2098 = vld [vmem:[#allocation7 + $0x148] sm:$0xff]
    %v2099 = vld [vmem:[#allocation7 + $0x150] sm:$0xff]
    %v2100 = vld [vmem:[#allocation7 + $0x158] sm:$0xff]
    %v2101 = vld [vmem:[#allocation7 + $0x160] sm:$0xff]
    %v2102 = vld [vmem:[#allocation7 + $0x168] sm:$0xff]
    %v2103 = vld [vmem:[#allocation7 + $0x170] sm:$0xff]
    %v2104 = vld [vmem:[#allocation7 + $0x178] sm:$0xff]
    %v2105 = vld [vmem:[#allocation7 + $0x180] sm:$0xff]
    %v2106 = vld [vmem:[#allocation7 + $0x188] sm:$0xff]
    %v2107 = vld [vmem:[#allocation7 + $0x190] sm:$0xff]
    %v2108 = vld [vmem:[#allocation7 + $0x198] sm:$0xff]
    %v2109 = vld [vmem:[#allocation7 + $0x1a0] sm:$0xff]
    %v2110 = vld [vmem:[#allocation7 + $0x1a8] sm:$0xff]
    %v2111 = vld [vmem:[#allocation7 + $0x1b0] sm:$0xff]
    %v2112 = vld [vmem:[#allocation7 + $0x1b8] sm:$0xff]
    %v2113 = vld [vmem:[#allocation7 + $0x1c0] sm:$0xff]
    %v2114 = vld [vmem:[#allocation7 + $0x1c8] sm:$0xff]
    %v2115 = vld [vmem:[#allocation7 + $0x1d0] sm:$0xff]
    %v2116 = vld [vmem:[#allocation7 + $0x1d8] sm:$0xff]
    %v2117 = vld [vmem:[#allocation7 + $0x1e0] sm:$0xff]
    %v2118 = vld [vmem:[#allocation7 + $0x1e8] sm:$0xff]
    %v2119 = vld [vmem:[#allocation7 + $0x1f0] sm:$0xff]
    %v2120 = vld [vmem:[#allocation7 + $0x1f8] sm:$0xff]
    %v2121 = vld [vmem:[%s5] sm:$0xf]
    %v2123 = vlaneseq
    %v2124 = vshrl.u32 %v2123, 7
    %v2125 = vsub.s32 0, %v2124
    %v2126 = vrot.slane %v2121, %v2125
    %v2127 = vlaneseq
    %v2128 = vshrl.u32 %v2127, 7
    %v2129 = vsub.s32 1, %v2128
    %v2130 = vrot.slane %v2121, %v2129
    %v2131 = vlaneseq
    %v2132 = vshrl.u32 %v2131, 7
    %v2133 = vsub.s32 2, %v2132
    %v2134 = vrot.slane %v2121, %v2133
    %v2135 = vlaneseq
    %v2136 = vshrl.u32 %v2135, 7
    %v2137 = vsub.s32 3, %v2136
    %v2138 = vrot.slane %v2121, %v2137
    %v2207 = vunpack.c.l.b16 %v2057
    %v2208 = vunpack.c.h.b16 %v2057
    %v2209 = vunpack.c.l.b16 %v2058
    %v2210 = vunpack.c.h.b16 %v2058
    %v2211 = vunpack.c.l.b16 %v2059
    %v2212 = vunpack.c.h.b16 %v2059
    %v2213 = vunpack.c.l.b16 %v2060
    %v2214 = vunpack.c.h.b16 %v2060
    %v2215 = vunpack.c.l.b16 %v2061
    %v2216 = vunpack.c.h.b16 %v2061
    %v2217 = vunpack.c.l.b16 %v2062
    %v2218 = vunpack.c.h.b16 %v2062
    %v2219 = vunpack.c.l.b16 %v2063
    %v2220 = vunpack.c.h.b16 %v2063
    %v2221 = vunpack.c.l.b16 %v2064
    %v2222 = vunpack.c.h.b16 %v2064
    %v2223 = vunpack.c.l.b16 %v2065
    %v2224 = vunpack.c.h.b16 %v2065
    %v2225 = vunpack.c.l.b16 %v2066
    %v2226 = vunpack.c.h.b16 %v2066
    %v2227 = vunpack.c.l.b16 %v2067
    %v2228 = vunpack.c.h.b16 %v2067
    %v2229 = vunpack.c.l.b16 %v2068
    %v2230 = vunpack.c.h.b16 %v2068
    %v2231 = vunpack.c.l.b16 %v2069
    %v2232 = vunpack.c.h.b16 %v2069
    %v2233 = vunpack.c.l.b16 %v2070
    %v2234 = vunpack.c.h.b16 %v2070
    %v2235 = vunpack.c.l.b16 %v2071
    %v2236 = vunpack.c.h.b16 %v2071
    %v2237 = vunpack.c.l.b16 %v2072
    %v2238 = vunpack.c.h.b16 %v2072
    %v2239 = vunpack.c.l.b16 %v2073
    %v2240 = vunpack.c.h.b16 %v2073
    %v2241 = vunpack.c.l.b16 %v2074
    %v2242 = vunpack.c.h.b16 %v2074
    %v2243 = vunpack.c.l.b16 %v2075
    %v2244 = vunpack.c.h.b16 %v2075
    %v2245 = vunpack.c.l.b16 %v2076
    %v2246 = vunpack.c.h.b16 %v2076
    %v2247 = vunpack.c.l.b16 %v2077
    %v2248 = vunpack.c.h.b16 %v2077
    %v2249 = vunpack.c.l.b16 %v2078
    %v2250 = vunpack.c.h.b16 %v2078
    %v2251 = vunpack.c.l.b16 %v2079
    %v2252 = vunpack.c.h.b16 %v2079
    %v2253 = vunpack.c.l.b16 %v2080
    %v2254 = vunpack.c.h.b16 %v2080
    %v2255 = vunpack.c.l.b16 %v2081
    %v2256 = vunpack.c.h.b16 %v2081
    %v2257 = vunpack.c.l.b16 %v2082
    %v2258 = vunpack.c.h.b16 %v2082
    %v2259 = vunpack.c.l.b16 %v2083
    %v2260 = vunpack.c.h.b16 %v2083
    %v2261 = vunpack.c.l.b16 %v2084
    %v2262 = vunpack.c.h.b16 %v2084
    %v2263 = vunpack.c.l.b16 %v2085
    %v2264 = vunpack.c.h.b16 %v2085
    %v2265 = vunpack.c.l.b16 %v2086
    %v2266 = vunpack.c.h.b16 %v2086
    %v2267 = vunpack.c.l.b16 %v2087
    %v2268 = vunpack.c.h.b16 %v2087
    %v2269 = vunpack.c.l.b16 %v2088
    %v2270 = vunpack.c.h.b16 %v2088
    %v2271 = vunpack.c.l.b16 %v2089
    %v2272 = vunpack.c.h.b16 %v2089
    %v2273 = vunpack.c.l.b16 %v2090
    %v2274 = vunpack.c.h.b16 %v2090
    %v2275 = vunpack.c.l.b16 %v2091
    %v2276 = vunpack.c.h.b16 %v2091
    %v2277 = vunpack.c.l.b16 %v2092
    %v2278 = vunpack.c.h.b16 %v2092
    %v2279 = vunpack.c.l.b16 %v2093
    %v2280 = vunpack.c.h.b16 %v2093
    %v2281 = vunpack.c.l.b16 %v2094
    %v2282 = vunpack.c.h.b16 %v2094
    %v2283 = vunpack.c.l.b16 %v2095
    %v2284 = vunpack.c.h.b16 %v2095
    %v2285 = vunpack.c.l.b16 %v2096
    %v2286 = vunpack.c.h.b16 %v2096
    %v2287 = vunpack.c.l.b16 %v2097
    %v2288 = vunpack.c.h.b16 %v2097
    %v2289 = vunpack.c.l.b16 %v2098
    %v2290 = vunpack.c.h.b16 %v2098
    %v2291 = vunpack.c.l.b16 %v2099
    %v2292 = vunpack.c.h.b16 %v2099
    %v2293 = vunpack.c.l.b16 %v2100
    %v2294 = vunpack.c.h.b16 %v2100
    %v2295 = vunpack.c.l.b16 %v2101
    %v2296 = vunpack.c.h.b16 %v2101
    %v2297 = vunpack.c.l.b16 %v2102
    %v2298 = vunpack.c.h.b16 %v2102
    %v2299 = vunpack.c.l.b16 %v2103
    %v2300 = vunpack.c.h.b16 %v2103
    %v2301 = vunpack.c.l.b16 %v2104
    %v2302 = vunpack.c.h.b16 %v2104
    %v2303 = vunpack.c.l.b16 %v2105
    %v2304 = vunpack.c.h.b16 %v2105
    %v2305 = vunpack.c.l.b16 %v2106
    %v2306 = vunpack.c.h.b16 %v2106
    %v2307 = vunpack.c.l.b16 %v2107
    %v2308 = vunpack.c.h.b16 %v2107
    %v2309 = vunpack.c.l.b16 %v2108
    %v2310 = vunpack.c.h.b16 %v2108
    %v2311 = vunpack.c.l.b16 %v2109
    %v2312 = vunpack.c.h.b16 %v2109
    %v2313 = vunpack.c.l.b16 %v2110
    %v2314 = vunpack.c.h.b16 %v2110
    %v2315 = vunpack.c.l.b16 %v2111
    %v2316 = vunpack.c.h.b16 %v2111
    %v2317 = vunpack.c.l.b16 %v2112
    %v2318 = vunpack.c.h.b16 %v2112
    %v2319 = vunpack.c.l.b16 %v2113
    %v2320 = vunpack.c.h.b16 %v2113
    %v2321 = vunpack.c.l.b16 %v2114
    %v2322 = vunpack.c.h.b16 %v2114
    %v2323 = vunpack.c.l.b16 %v2115
    %v2324 = vunpack.c.h.b16 %v2115
    %v2325 = vunpack.c.l.b16 %v2116
    %v2326 = vunpack.c.h.b16 %v2116
    %v2327 = vunpack.c.l.b16 %v2117
    %v2328 = vunpack.c.h.b16 %v2117
    %v2329 = vunpack.c.l.b16 %v2118
    %v2330 = vunpack.c.h.b16 %v2118
    %v2331 = vunpack.c.l.b16 %v2119
    %v2332 = vunpack.c.h.b16 %v2119
    %v2333 = vunpack.c.l.b16 %v2120
    %v2334 = vunpack.c.h.b16 %v2120
    %v2335 = vpack.c.b16 %v2211, %v2207
    %v2336 = vpack.c.b16 %v2212, %v2208
    %v2337 = vpack.c.b16 %v2213, %v2209
    %v2338 = vpack.c.b16 %v2214, %v2210
    %v2339 = vpack.c.b16 %v2219, %v2215
    %v2340 = vpack.c.b16 %v2220, %v2216
    %v2341 = vpack.c.b16 %v2221, %v2217
    %v2342 = vpack.c.b16 %v2222, %v2218
    %v2343 = vpack.c.b16 %v2227, %v2223
    %v2344 = vpack.c.b16 %v2228, %v2224
    %v2345 = vpack.c.b16 %v2229, %v2225
    %v2346 = vpack.c.b16 %v2230, %v2226
    %v2347 = vpack.c.b16 %v2235, %v2231
    %v2348 = vpack.c.b16 %v2236, %v2232
    %v2349 = vpack.c.b16 %v2237, %v2233
    %v2350 = vpack.c.b16 %v2238, %v2234
    %v2351 = vpack.c.b16 %v2243, %v2239
    %v2352 = vpack.c.b16 %v2244, %v2240
    %v2353 = vpack.c.b16 %v2245, %v2241
    %v2354 = vpack.c.b16 %v2246, %v2242
    %v2355 = vpack.c.b16 %v2251, %v2247
    %v2356 = vpack.c.b16 %v2252, %v2248
    %v2357 = vpack.c.b16 %v2253, %v2249
    %v2358 = vpack.c.b16 %v2254, %v2250
    %v2359 = vpack.c.b16 %v2259, %v2255
    %v2360 = vpack.c.b16 %v2260, %v2256
    %v2361 = vpack.c.b16 %v2261, %v2257
    %v2362 = vpack.c.b16 %v2262, %v2258
    %v2363 = vpack.c.b16 %v2267, %v2263
    %v2364 = vpack.c.b16 %v2268, %v2264
    %v2365 = vpack.c.b16 %v2269, %v2265
    %v2366 = vpack.c.b16 %v2270, %v2266
    %v2367 = vpack.c.b16 %v2275, %v2271
    %v2368 = vpack.c.b16 %v2276, %v2272
    %v2369 = vpack.c.b16 %v2277, %v2273
    %v2370 = vpack.c.b16 %v2278, %v2274
    %v2371 = vpack.c.b16 %v2283, %v2279
    %v2372 = vpack.c.b16 %v2284, %v2280
    %v2373 = vpack.c.b16 %v2285, %v2281
    %v2374 = vpack.c.b16 %v2286, %v2282
    %v2375 = vpack.c.b16 %v2291, %v2287
    %v2376 = vpack.c.b16 %v2292, %v2288
    %v2377 = vpack.c.b16 %v2293, %v2289
    %v2378 = vpack.c.b16 %v2294, %v2290
    %v2379 = vpack.c.b16 %v2299, %v2295
    %v2380 = vpack.c.b16 %v2300, %v2296
    %v2381 = vpack.c.b16 %v2301, %v2297
    %v2382 = vpack.c.b16 %v2302, %v2298
    %v2383 = vpack.c.b16 %v2307, %v2303
    %v2384 = vpack.c.b16 %v2308, %v2304
    %v2385 = vpack.c.b16 %v2309, %v2305
    %v2386 = vpack.c.b16 %v2310, %v2306
    %v2387 = vpack.c.b16 %v2315, %v2311
    %v2388 = vpack.c.b16 %v2316, %v2312
    %v2389 = vpack.c.b16 %v2317, %v2313
    %v2390 = vpack.c.b16 %v2318, %v2314
    %v2391 = vpack.c.b16 %v2323, %v2319
    %v2392 = vpack.c.b16 %v2324, %v2320
    %v2393 = vpack.c.b16 %v2325, %v2321
    %v2394 = vpack.c.b16 %v2326, %v2322
    %v2395 = vpack.c.b16 %v2331, %v2327
    %v2396 = vpack.c.b16 %v2332, %v2328
    %v2397 = vpack.c.b16 %v2333, %v2329
    %v2398 = vpack.c.b16 %v2334, %v2330
    %2463 = vmatprep.subr.bf16.mxu0 %v2364
    %2464 = vmatpush1.bf16.msra.mxu0 %v2363
    %2465 = vmatprep.subr.bf16.mxu0 %v2360
    %2466 = vmatpush1.bf16.msra.mxu0 %v2359
    %2467 = vmatprep.subr.bf16.mxu0 %v2356
    %2468 = vmatpush1.bf16.msra.mxu0 %v2355
    %2469 = vmatprep.subr.bf16.mxu0 %v2352
    %2470 = vmatpush1.bf16.msra.mxu0 %v2351
    %2471 = vmatprep.subr.bf16.mxu0 %v2348
    %2472 = vmatpush1.bf16.msra.mxu0 %v2347
    %2473 = vmatprep.subr.bf16.mxu0 %v2344
    %2474 = vmatpush1.bf16.msra.mxu0 %v2343
    %2475 = vmatprep.subr.bf16.mxu0 %v2340
    %2476 = vmatpush1.bf16.msra.mxu0 %v2339
    %2477 = vmatprep.subr.bf16.mxu0 %v2336
    %2478 = vmatpush1.bf16.msra.mxu0 %v2335
    %2479 = vmatprep.subr.bf16.mxu0 %v2396
    %2480 = vmatpush2.bf16.msra.mxu0 %v2395
    %2481 = vmatprep.subr.bf16.mxu0 %v2392
    %2482 = vmatpush2.bf16.msra.mxu0 %v2391
    %2483 = vmatprep.subr.bf16.mxu0 %v2388
    %2484 = vmatpush2.bf16.msra.mxu0 %v2387
    %2485 = vmatprep.subr.bf16.mxu0 %v2384
    %2486 = vmatpush2.bf16.msra.mxu0 %v2383
    %2487 = vmatprep.subr.bf16.mxu0 %v2380
    %2488 = vmatpush2.bf16.msra.mxu0 %v2379
    %2489 = vmatprep.subr.bf16.mxu0 %v2376
    %2490 = vmatpush2.bf16.msra.mxu0 %v2375
    %2491 = vmatprep.subr.bf16.mxu0 %v2372
    %2492 = vmatpush2.bf16.msra.mxu0 %v2371
    %2493 = vmatprep.subr.bf16.mxu0 %v2368
    %2494 = vmatpush2.bf16.msra.mxu0 %v2367
    %2495 = vmatprep.mubr.bf16.mxu0 %v1934
    %2496 = vmatmul.mubr.bf16.gmra.mxu0 %v2056
    %v2497 = vpop.f32.mrf.mxu0
    %v2498 = vadd.f32 %v2126, %v2497
    %v2499 = vpop.f32.mrf.mxu0
    %v2500 = vadd.f32 %v2130, %v2499
    %v2501 = vpop.f32.mrf.mxu0
    %v2502 = vpop.f32.mrf.mxu0
    %2503 = vdwg.mxu0
    %2504 = vmatprep.subr.bf16.mxu0 %v2366
    %2505 = vmatpush1.bf16.msra.mxu0 %v2365
    %2506 = vmatprep.subr.bf16.mxu0 %v2362
    %2507 = vmatpush1.bf16.msra.mxu0 %v2361
    %2508 = vmatprep.subr.bf16.mxu0 %v2358
    %2509 = vmatpush1.bf16.msra.mxu0 %v2357
    %2510 = vmatprep.subr.bf16.mxu0 %v2354
    %2511 = vmatpush1.bf16.msra.mxu0 %v2353
    %2512 = vmatprep.subr.bf16.mxu0 %v2350
    %2513 = vmatpush1.bf16.msra.mxu0 %v2349
    %2514 = vmatprep.subr.bf16.mxu0 %v2346
    %2515 = vmatpush1.bf16.msra.mxu0 %v2345
    %2516 = vmatprep.subr.bf16.mxu0 %v2342
    %2517 = vmatpush1.bf16.msra.mxu0 %v2341
    %2518 = vmatprep.subr.bf16.mxu0 %v2338
    %2519 = vmatpush1.bf16.msra.mxu0 %v2337
    %2520 = vmatprep.subr.bf16.mxu0 %v2398
    %2521 = vmatpush2.bf16.msra.mxu0 %v2397
    %2522 = vmatprep.subr.bf16.mxu0 %v2394
    %2523 = vmatpush2.bf16.msra.mxu0 %v2393
    %2524 = vmatprep.subr.bf16.mxu0 %v2390
    %2525 = vmatpush2.bf16.msra.mxu0 %v2389
    %2526 = vmatprep.subr.bf16.mxu0 %v2386
    %2527 = vmatpush2.bf16.msra.mxu0 %v2385
    %2528 = vmatprep.subr.bf16.mxu0 %v2382
    %2529 = vmatpush2.bf16.msra.mxu0 %v2381
    %2530 = vmatprep.subr.bf16.mxu0 %v2378
    %2531 = vmatpush2.bf16.msra.mxu0 %v2377
    %2532 = vmatprep.subr.bf16.mxu0 %v2374
    %2533 = vmatpush2.bf16.msra.mxu0 %v2373
    %2534 = vmatprep.subr.bf16.mxu0 %v2370
    %2535 = vmatpush2.bf16.msra.mxu0 %v2369
    %2536 = vmatprep.mubr.bf16.mxu0 %v1934
    %2537 = vmatmul.mubr.bf16.gmra.mxu0 %v2056
    %v2538 = vpop.f32.mrf.mxu0
    %v2539 = vadd.f32 %v2134, %v2538
    %v2540 = vpop.f32.mrf.mxu0
    %v2541 = vadd.f32 %v2138, %v2540
    %v2542 = vpop.f32.mrf.mxu0
    %v2543 = vpop.f32.mrf.mxu0
    %2544 = vdwg.mxu0
    %v2545 = vxor.u32 %v2498, 2147483648
    %v2546 = vmul.f32 %v2545, 1.442695
    %v2547 = vpow.pop %v2546
    %v2548 = vadd.f32 %v2547, 1.0
    %v2549 = vrcp.pop %v2548
    %v2550 = vmul.f32 1.0, %v2549
    %v2551 = vxor.u32 %v2500, 2147483648
    %v2552 = vmul.f32 %v2551, 1.442695
    %v2553 = vpow.pop %v2552
    %v2554 = vadd.f32 %v2553, 1.0
    %v2555 = vrcp.pop %v2554
    %v2556 = vmul.f32 1.0, %v2555
    %v2557 = vmul.f32 %v2550, %v2541
    %v2558 = vadd.f32 %v2539, %v2557
    %v2559 = vtanh.pop %v2558
    %v2560 = vsub.f32 1.0, %v2556
    %v2561 = vmul.f32 %v2560, %v2559
    %v2562 = vmul.f32 %v2556, %v1933
    %v2563 = vadd.f32 %v2561, %v2562
    %v2564 = vpack.c.bf16 %v2563, %v2563
    %v2565 = vld [vmem:[#allocation8] sm:$0xf]
    %v2566 = vld [vmem:[#allocation8 + $0x4] sm:$0xf]
    %v2567 = vld [vmem:[#allocation8 + $0x8] sm:$0xf]
    %v2568 = vld [vmem:[#allocation8 + $0xc] sm:$0xf]
    %v2569 = vld [vmem:[#allocation8 + $0x10] sm:$0xf]
    %v2570 = vld [vmem:[#allocation8 + $0x14] sm:$0xf]
    %v2571 = vld [vmem:[#allocation8 + $0x18] sm:$0xf]
    %v2572 = vld [vmem:[#allocation8 + $0x1c] sm:$0xf]
    %v2573 = vld [vmem:[#allocation8 + $0x20] sm:$0xf]
    %v2574 = vld [vmem:[#allocation8 + $0x24] sm:$0xf]
    %v2575 = vld [vmem:[#allocation8 + $0x28] sm:$0xf]
    %v2576 = vld [vmem:[#allocation8 + $0x2c] sm:$0xf]
    %v2577 = vld [vmem:[#allocation8 + $0x30] sm:$0xf]
    %v2578 = vld [vmem:[#allocation8 + $0x34] sm:$0xf]
    %v2579 = vld [vmem:[#allocation8 + $0x38] sm:$0xf]
    %v2580 = vld [vmem:[#allocation8 + $0x3c] sm:$0xf]
    %v2581 = vld [vmem:[%s7] sm:$0x1]
    %v2583 = vlaneseq
    %v2584 = vshrl.u32 %v2583, 7
    %v2585 = vsub.s32 0, %v2584
    %v2586 = vrot.slane %v2581, %v2585
    %v2604 = vunpack.c.l.b16 %v2565
    %v2605 = vunpack.c.l.b16 %v2566
    %v2606 = vunpack.c.l.b16 %v2567
    %v2607 = vunpack.c.l.b16 %v2568
    %v2608 = vunpack.c.l.b16 %v2569
    %v2609 = vunpack.c.l.b16 %v2570
    %v2610 = vunpack.c.l.b16 %v2571
    %v2611 = vunpack.c.l.b16 %v2572
    %v2612 = vunpack.c.l.b16 %v2573
    %v2613 = vunpack.c.l.b16 %v2574
    %v2614 = vunpack.c.l.b16 %v2575
    %v2615 = vunpack.c.l.b16 %v2576
    %v2616 = vunpack.c.l.b16 %v2577
    %v2617 = vunpack.c.l.b16 %v2578
    %v2618 = vunpack.c.l.b16 %v2579
    %v2619 = vunpack.c.l.b16 %v2580
    %v2620 = vpack.c.b16 %v2605, %v2604
    %v2621 = vpack.c.b16 %v2607, %v2606
    %v2622 = vpack.c.b16 %v2609, %v2608
    %v2623 = vpack.c.b16 %v2611, %v2610
    %v2624 = vpack.c.b16 %v2613, %v2612
    %v2625 = vpack.c.b16 %v2615, %v2614
    %v2626 = vpack.c.b16 %v2617, %v2616
    %v2627 = vpack.c.b16 %v2619, %v2618
    %2636 = vmatprep.subr.bf16.mxu0 0
    %2637 = vmatpush1.bf16.msra.mxu0 %v2627
    %2638 = vmatprep.subr.bf16.mxu0 0
    %2639 = vmatpush1.bf16.msra.mxu0 %v2626
    %2640 = vmatprep.subr.bf16.mxu0 0
    %2641 = vmatpush1.bf16.msra.mxu0 %v2625
    %2642 = vmatprep.subr.bf16.mxu0 0
    %2643 = vmatpush1.bf16.msra.mxu0 %v2624
    %2644 = vmatprep.subr.bf16.mxu0 0
    %2645 = vmatpush1.bf16.msra.mxu0 %v2623
    %2646 = vmatprep.subr.bf16.mxu0 0
    %2647 = vmatpush1.bf16.msra.mxu0 %v2622
    %2648 = vmatprep.subr.bf16.mxu0 0
    %2649 = vmatpush1.bf16.msra.mxu0 %v2621
    %2650 = vmatprep.subr.bf16.mxu0 0
    %2651 = vmatpush1.bf16.msra.mxu0 %v2620
    %2652 = vmatprep.subr.bf16.mxu0 0
    %2653 = vmatpush2.bf16.msra.mxu0 0
    %2654 = vmatprep.subr.bf16.mxu0 0
    %2655 = vmatpush2.bf16.msra.mxu0 0
    %2656 = vmatprep.subr.bf16.mxu0 0
    %2657 = vmatpush2.bf16.msra.mxu0 0
    %2658 = vmatprep.subr.bf16.mxu0 0
    %2659 = vmatpush2.bf16.msra.mxu0 0
    %2660 = vmatprep.subr.bf16.mxu0 0
    %2661 = vmatpush2.bf16.msra.mxu0 0
    %2662 = vmatprep.subr.bf16.mxu0 0
    %2663 = vmatpush2.bf16.msra.mxu0 0
    %2664 = vmatprep.subr.bf16.mxu0 0
    %2665 = vmatpush2.bf16.msra.mxu0 0
    %2666 = vmatprep.subr.bf16.mxu0 0
    %2667 = vmatpush2.bf16.msra.mxu0 0
    %2668 = vmatprep.mubr.bf16.mxu0 0
    %2669 = vmatmul.mubr.bf16.gmra.mxu0 %v2564
    %v2670 = vpop.f32.mrf.mxu0
    %v2671 = vadd.f32 %v2586, %v2670
    %v2672 = vpop.f32.mrf.mxu0
    %v2673 = vpop.f32.mrf.mxu0
    %v2674 = vpop.f32.mrf.mxu0
    %2675 = vdwg.mxu0
    %v2676 = vmax.f32 %v2671, -10.0
    %v2677 = vmin.f32 %v2676, 10.0
    %s2678 = scalar_lea.vmem [#allocation10], 24
    %2679 = vst [vmem:[%s2678] sm:$0xff] %v2677
    %v2680 = vsub.f32 %v2677, %v165
    %2681 = vmax.xlane.f32.xlu0 %v2680
    %v2682 = vpop.xlane.xlu0 %2681
    %vm2683 = vcmp.eq.f32.partialorder %v2680, %v2682
    %v2684 = vsel %vm2683, 1, 0
    %v2685 = vcvt.s32.f32 %v2684
    %v2686 = vpack.c.bf16 %v2685, %v2685
    %v2687 = vld [vmem:[#allocation7] sm:$0xff]
    %v2688 = vld [vmem:[#allocation7 + $0x8] sm:$0xff]
    %v2689 = vld [vmem:[#allocation7 + $0x10] sm:$0xff]
    %v2690 = vld [vmem:[#allocation7 + $0x18] sm:$0xff]
    %v2691 = vld [vmem:[#allocation7 + $0x20] sm:$0xff]
    %v2692 = vld [vmem:[#allocation7 + $0x28] sm:$0xff]
    %v2693 = vld [vmem:[#allocation7 + $0x30] sm:$0xff]
    %v2694 = vld [vmem:[#allocation7 + $0x38] sm:$0xff]
    %v2695 = vld [vmem:[#allocation7 + $0x40] sm:$0xff]
    %v2696 = vld [vmem:[#allocation7 + $0x48] sm:$0xff]
    %v2697 = vld [vmem:[#allocation7 + $0x50] sm:$0xff]
    %v2698 = vld [vmem:[#allocation7 + $0x58] sm:$0xff]
    %v2699 = vld [vmem:[#allocation7 + $0x60] sm:$0xff]
    %v2700 = vld [vmem:[#allocation7 + $0x68] sm:$0xff]
    %v2701 = vld [vmem:[#allocation7 + $0x70] sm:$0xff]
    %v2702 = vld [vmem:[#allocation7 + $0x78] sm:$0xff]
    %v2703 = vld [vmem:[#allocation7 + $0x80] sm:$0xff]
    %v2704 = vld [vmem:[#allocation7 + $0x88] sm:$0xff]
    %v2705 = vld [vmem:[#allocation7 + $0x90] sm:$0xff]
    %v2706 = vld [vmem:[#allocation7 + $0x98] sm:$0xff]
    %v2707 = vld [vmem:[#allocation7 + $0xa0] sm:$0xff]
    %v2708 = vld [vmem:[#allocation7 + $0xa8] sm:$0xff]
    %v2709 = vld [vmem:[#allocation7 + $0xb0] sm:$0xff]
    %v2710 = vld [vmem:[#allocation7 + $0xb8] sm:$0xff]
    %v2711 = vld [vmem:[#allocation7 + $0xc0] sm:$0xff]
    %v2712 = vld [vmem:[#allocation7 + $0xc8] sm:$0xff]
    %v2713 = vld [vmem:[#allocation7 + $0xd0] sm:$0xff]
    %v2714 = vld [vmem:[#allocation7 + $0xd8] sm:$0xff]
    %v2715 = vld [vmem:[#allocation7 + $0xe0] sm:$0xff]
    %v2716 = vld [vmem:[#allocation7 + $0xe8] sm:$0xff]
    %v2717 = vld [vmem:[#allocation7 + $0xf0] sm:$0xff]
    %v2718 = vld [vmem:[#allocation7 + $0xf8] sm:$0xff]
    %v2719 = vld [vmem:[#allocation7 + $0x100] sm:$0xff]
    %v2720 = vld [vmem:[#allocation7 + $0x108] sm:$0xff]
    %v2721 = vld [vmem:[#allocation7 + $0x110] sm:$0xff]
    %v2722 = vld [vmem:[#allocation7 + $0x118] sm:$0xff]
    %v2723 = vld [vmem:[#allocation7 + $0x120] sm:$0xff]
    %v2724 = vld [vmem:[#allocation7 + $0x128] sm:$0xff]
    %v2725 = vld [vmem:[#allocation7 + $0x130] sm:$0xff]
    %v2726 = vld [vmem:[#allocation7 + $0x138] sm:$0xff]
    %v2727 = vld [vmem:[#allocation7 + $0x140] sm:$0xff]
    %v2728 = vld [vmem:[#allocation7 + $0x148] sm:$0xff]
    %v2729 = vld [vmem:[#allocation7 + $0x150] sm:$0xff]
    %v2730 = vld [vmem:[#allocation7 + $0x158] sm:$0xff]
    %v2731 = vld [vmem:[#allocation7 + $0x160] sm:$0xff]
    %v2732 = vld [vmem:[#allocation7 + $0x168] sm:$0xff]
    %v2733 = vld [vmem:[#allocation7 + $0x170] sm:$0xff]
    %v2734 = vld [vmem:[#allocation7 + $0x178] sm:$0xff]
    %v2735 = vld [vmem:[#allocation7 + $0x180] sm:$0xff]
    %v2736 = vld [vmem:[#allocation7 + $0x188] sm:$0xff]
    %v2737 = vld [vmem:[#allocation7 + $0x190] sm:$0xff]
    %v2738 = vld [vmem:[#allocation7 + $0x198] sm:$0xff]
    %v2739 = vld [vmem:[#allocation7 + $0x1a0] sm:$0xff]
    %v2740 = vld [vmem:[#allocation7 + $0x1a8] sm:$0xff]
    %v2741 = vld [vmem:[#allocation7 + $0x1b0] sm:$0xff]
    %v2742 = vld [vmem:[#allocation7 + $0x1b8] sm:$0xff]
    %v2743 = vld [vmem:[#allocation7 + $0x1c0] sm:$0xff]
    %v2744 = vld [vmem:[#allocation7 + $0x1c8] sm:$0xff]
    %v2745 = vld [vmem:[#allocation7 + $0x1d0] sm:$0xff]
    %v2746 = vld [vmem:[#allocation7 + $0x1d8] sm:$0xff]
    %v2747 = vld [vmem:[#allocation7 + $0x1e0] sm:$0xff]
    %v2748 = vld [vmem:[#allocation7 + $0x1e8] sm:$0xff]
    %v2749 = vld [vmem:[#allocation7 + $0x1f0] sm:$0xff]
    %v2750 = vld [vmem:[#allocation7 + $0x1f8] sm:$0xff]
    %v2751 = vld [vmem:[%s5] sm:$0xf]
    %v2753 = vlaneseq
    %v2754 = vshrl.u32 %v2753, 7
    %v2755 = vsub.s32 0, %v2754
    %v2756 = vrot.slane %v2751, %v2755
    %v2757 = vlaneseq
    %v2758 = vshrl.u32 %v2757, 7
    %v2759 = vsub.s32 1, %v2758
    %v2760 = vrot.slane %v2751, %v2759
    %v2761 = vlaneseq
    %v2762 = vshrl.u32 %v2761, 7
    %v2763 = vsub.s32 2, %v2762
    %v2764 = vrot.slane %v2751, %v2763
    %v2765 = vlaneseq
    %v2766 = vshrl.u32 %v2765, 7
    %v2767 = vsub.s32 3, %v2766
    %v2768 = vrot.slane %v2751, %v2767
    %v2837 = vunpack.c.l.b16 %v2687
    %v2838 = vunpack.c.h.b16 %v2687
    %v2839 = vunpack.c.l.b16 %v2688
    %v2840 = vunpack.c.h.b16 %v2688
    %v2841 = vunpack.c.l.b16 %v2689
    %v2842 = vunpack.c.h.b16 %v2689
    %v2843 = vunpack.c.l.b16 %v2690
    %v2844 = vunpack.c.h.b16 %v2690
    %v2845 = vunpack.c.l.b16 %v2691
    %v2846 = vunpack.c.h.b16 %v2691
    %v2847 = vunpack.c.l.b16 %v2692
    %v2848 = vunpack.c.h.b16 %v2692
    %v2849 = vunpack.c.l.b16 %v2693
    %v2850 = vunpack.c.h.b16 %v2693
    %v2851 = vunpack.c.l.b16 %v2694
    %v2852 = vunpack.c.h.b16 %v2694
    %v2853 = vunpack.c.l.b16 %v2695
    %v2854 = vunpack.c.h.b16 %v2695
    %v2855 = vunpack.c.l.b16 %v2696
    %v2856 = vunpack.c.h.b16 %v2696
    %v2857 = vunpack.c.l.b16 %v2697
    %v2858 = vunpack.c.h.b16 %v2697
    %v2859 = vunpack.c.l.b16 %v2698
    %v2860 = vunpack.c.h.b16 %v2698
    %v2861 = vunpack.c.l.b16 %v2699
    %v2862 = vunpack.c.h.b16 %v2699
    %v2863 = vunpack.c.l.b16 %v2700
    %v2864 = vunpack.c.h.b16 %v2700
    %v2865 = vunpack.c.l.b16 %v2701
    %v2866 = vunpack.c.h.b16 %v2701
    %v2867 = vunpack.c.l.b16 %v2702
    %v2868 = vunpack.c.h.b16 %v2702
    %v2869 = vunpack.c.l.b16 %v2703
    %v2870 = vunpack.c.h.b16 %v2703
    %v2871 = vunpack.c.l.b16 %v2704
    %v2872 = vunpack.c.h.b16 %v2704
    %v2873 = vunpack.c.l.b16 %v2705
    %v2874 = vunpack.c.h.b16 %v2705
    %v2875 = vunpack.c.l.b16 %v2706
    %v2876 = vunpack.c.h.b16 %v2706
    %v2877 = vunpack.c.l.b16 %v2707
    %v2878 = vunpack.c.h.b16 %v2707
    %v2879 = vunpack.c.l.b16 %v2708
    %v2880 = vunpack.c.h.b16 %v2708
    %v2881 = vunpack.c.l.b16 %v2709
    %v2882 = vunpack.c.h.b16 %v2709
    %v2883 = vunpack.c.l.b16 %v2710
    %v2884 = vunpack.c.h.b16 %v2710
    %v2885 = vunpack.c.l.b16 %v2711
    %v2886 = vunpack.c.h.b16 %v2711
    %v2887 = vunpack.c.l.b16 %v2712
    %v2888 = vunpack.c.h.b16 %v2712
    %v2889 = vunpack.c.l.b16 %v2713
    %v2890 = vunpack.c.h.b16 %v2713
    %v2891 = vunpack.c.l.b16 %v2714
    %v2892 = vunpack.c.h.b16 %v2714
    %v2893 = vunpack.c.l.b16 %v2715
    %v2894 = vunpack.c.h.b16 %v2715
    %v2895 = vunpack.c.l.b16 %v2716
    %v2896 = vunpack.c.h.b16 %v2716
    %v2897 = vunpack.c.l.b16 %v2717
    %v2898 = vunpack.c.h.b16 %v2717
    %v2899 = vunpack.c.l.b16 %v2718
    %v2900 = vunpack.c.h.b16 %v2718
    %v2901 = vunpack.c.l.b16 %v2719
    %v2902 = vunpack.c.h.b16 %v2719
    %v2903 = vunpack.c.l.b16 %v2720
    %v2904 = vunpack.c.h.b16 %v2720
    %v2905 = vunpack.c.l.b16 %v2721
    %v2906 = vunpack.c.h.b16 %v2721
    %v2907 = vunpack.c.l.b16 %v2722
    %v2908 = vunpack.c.h.b16 %v2722
    %v2909 = vunpack.c.l.b16 %v2723
    %v2910 = vunpack.c.h.b16 %v2723
    %v2911 = vunpack.c.l.b16 %v2724
    %v2912 = vunpack.c.h.b16 %v2724
    %v2913 = vunpack.c.l.b16 %v2725
    %v2914 = vunpack.c.h.b16 %v2725
    %v2915 = vunpack.c.l.b16 %v2726
    %v2916 = vunpack.c.h.b16 %v2726
    %v2917 = vunpack.c.l.b16 %v2727
    %v2918 = vunpack.c.h.b16 %v2727
    %v2919 = vunpack.c.l.b16 %v2728
    %v2920 = vunpack.c.h.b16 %v2728
    %v2921 = vunpack.c.l.b16 %v2729
    %v2922 = vunpack.c.h.b16 %v2729
    %v2923 = vunpack.c.l.b16 %v2730
    %v2924 = vunpack.c.h.b16 %v2730
    %v2925 = vunpack.c.l.b16 %v2731
    %v2926 = vunpack.c.h.b16 %v2731
    %v2927 = vunpack.c.l.b16 %v2732
    %v2928 = vunpack.c.h.b16 %v2732
    %v2929 = vunpack.c.l.b16 %v2733
    %v2930 = vunpack.c.h.b16 %v2733
    %v2931 = vunpack.c.l.b16 %v2734
    %v2932 = vunpack.c.h.b16 %v2734
    %v2933 = vunpack.c.l.b16 %v2735
    %v2934 = vunpack.c.h.b16 %v2735
    %v2935 = vunpack.c.l.b16 %v2736
    %v2936 = vunpack.c.h.b16 %v2736
    %v2937 = vunpack.c.l.b16 %v2737
    %v2938 = vunpack.c.h.b16 %v2737
    %v2939 = vunpack.c.l.b16 %v2738
    %v2940 = vunpack.c.h.b16 %v2738
    %v2941 = vunpack.c.l.b16 %v2739
    %v2942 = vunpack.c.h.b16 %v2739
    %v2943 = vunpack.c.l.b16 %v2740
    %v2944 = vunpack.c.h.b16 %v2740
    %v2945 = vunpack.c.l.b16 %v2741
    %v2946 = vunpack.c.h.b16 %v2741
    %v2947 = vunpack.c.l.b16 %v2742
    %v2948 = vunpack.c.h.b16 %v2742
    %v2949 = vunpack.c.l.b16 %v2743
    %v2950 = vunpack.c.h.b16 %v2743
    %v2951 = vunpack.c.l.b16 %v2744
    %v2952 = vunpack.c.h.b16 %v2744
    %v2953 = vunpack.c.l.b16 %v2745
    %v2954 = vunpack.c.h.b16 %v2745
    %v2955 = vunpack.c.l.b16 %v2746
    %v2956 = vunpack.c.h.b16 %v2746
    %v2957 = vunpack.c.l.b16 %v2747
    %v2958 = vunpack.c.h.b16 %v2747
    %v2959 = vunpack.c.l.b16 %v2748
    %v2960 = vunpack.c.h.b16 %v2748
    %v2961 = vunpack.c.l.b16 %v2749
    %v2962 = vunpack.c.h.b16 %v2749
    %v2963 = vunpack.c.l.b16 %v2750
    %v2964 = vunpack.c.h.b16 %v2750
    %v2965 = vpack.c.b16 %v2841, %v2837
    %v2966 = vpack.c.b16 %v2842, %v2838
    %v2967 = vpack.c.b16 %v2843, %v2839
    %v2968 = vpack.c.b16 %v2844, %v2840
    %v2969 = vpack.c.b16 %v2849, %v2845
    %v2970 = vpack.c.b16 %v2850, %v2846
    %v2971 = vpack.c.b16 %v2851, %v2847
    %v2972 = vpack.c.b16 %v2852, %v2848
    %v2973 = vpack.c.b16 %v2857, %v2853
    %v2974 = vpack.c.b16 %v2858, %v2854
    %v2975 = vpack.c.b16 %v2859, %v2855
    %v2976 = vpack.c.b16 %v2860, %v2856
    %v2977 = vpack.c.b16 %v2865, %v2861
    %v2978 = vpack.c.b16 %v2866, %v2862
    %v2979 = vpack.c.b16 %v2867, %v2863
    %v2980 = vpack.c.b16 %v2868, %v2864
    %v2981 = vpack.c.b16 %v2873, %v2869
    %v2982 = vpack.c.b16 %v2874, %v2870
    %v2983 = vpack.c.b16 %v2875, %v2871
    %v2984 = vpack.c.b16 %v2876, %v2872
    %v2985 = vpack.c.b16 %v2881, %v2877
    %v2986 = vpack.c.b16 %v2882, %v2878
    %v2987 = vpack.c.b16 %v2883, %v2879
    %v2988 = vpack.c.b16 %v2884, %v2880
    %v2989 = vpack.c.b16 %v2889, %v2885
    %v2990 = vpack.c.b16 %v2890, %v2886
    %v2991 = vpack.c.b16 %v2891, %v2887
    %v2992 = vpack.c.b16 %v2892, %v2888
    %v2993 = vpack.c.b16 %v2897, %v2893
    %v2994 = vpack.c.b16 %v2898, %v2894
    %v2995 = vpack.c.b16 %v2899, %v2895
    %v2996 = vpack.c.b16 %v2900, %v2896
    %v2997 = vpack.c.b16 %v2905, %v2901
    %v2998 = vpack.c.b16 %v2906, %v2902
    %v2999 = vpack.c.b16 %v2907, %v2903
    %v3000 = vpack.c.b16 %v2908, %v2904
    %v3001 = vpack.c.b16 %v2913, %v2909
    %v3002 = vpack.c.b16 %v2914, %v2910
    %v3003 = vpack.c.b16 %v2915, %v2911
    %v3004 = vpack.c.b16 %v2916, %v2912
    %v3005 = vpack.c.b16 %v2921, %v2917
    %v3006 = vpack.c.b16 %v2922, %v2918
    %v3007 = vpack.c.b16 %v2923, %v2919
    %v3008 = vpack.c.b16 %v2924, %v2920
    %v3009 = vpack.c.b16 %v2929, %v2925
    %v3010 = vpack.c.b16 %v2930, %v2926
    %v3011 = vpack.c.b16 %v2931, %v2927
    %v3012 = vpack.c.b16 %v2932, %v2928
    %v3013 = vpack.c.b16 %v2937, %v2933
    %v3014 = vpack.c.b16 %v2938, %v2934
    %v3015 = vpack.c.b16 %v2939, %v2935
    %v3016 = vpack.c.b16 %v2940, %v2936
    %v3017 = vpack.c.b16 %v2945, %v2941
    %v3018 = vpack.c.b16 %v2946, %v2942
    %v3019 = vpack.c.b16 %v2947, %v2943
    %v3020 = vpack.c.b16 %v2948, %v2944
    %v3021 = vpack.c.b16 %v2953, %v2949
    %v3022 = vpack.c.b16 %v2954, %v2950
    %v3023 = vpack.c.b16 %v2955, %v2951
    %v3024 = vpack.c.b16 %v2956, %v2952
    %v3025 = vpack.c.b16 %v2961, %v2957
    %v3026 = vpack.c.b16 %v2962, %v2958
    %v3027 = vpack.c.b16 %v2963, %v2959
    %v3028 = vpack.c.b16 %v2964, %v2960
    %3093 = vmatprep.subr.bf16.mxu0 %v2994
    %3094 = vmatpush1.bf16.msra.mxu0 %v2993
    %3095 = vmatprep.subr.bf16.mxu0 %v2990
    %3096 = vmatpush1.bf16.msra.mxu0 %v2989
    %3097 = vmatprep.subr.bf16.mxu0 %v2986
    %3098 = vmatpush1.bf16.msra.mxu0 %v2985
    %3099 = vmatprep.subr.bf16.mxu0 %v2982
    %3100 = vmatpush1.bf16.msra.mxu0 %v2981
    %3101 = vmatprep.subr.bf16.mxu0 %v2978
    %3102 = vmatpush1.bf16.msra.mxu0 %v2977
    %3103 = vmatprep.subr.bf16.mxu0 %v2974
    %3104 = vmatpush1.bf16.msra.mxu0 %v2973
    %3105 = vmatprep.subr.bf16.mxu0 %v2970
    %3106 = vmatpush1.bf16.msra.mxu0 %v2969
    %3107 = vmatprep.subr.bf16.mxu0 %v2966
    %3108 = vmatpush1.bf16.msra.mxu0 %v2965
    %3109 = vmatprep.subr.bf16.mxu0 %v3026
    %3110 = vmatpush2.bf16.msra.mxu0 %v3025
    %3111 = vmatprep.subr.bf16.mxu0 %v3022
    %3112 = vmatpush2.bf16.msra.mxu0 %v3021
    %3113 = vmatprep.subr.bf16.mxu0 %v3018
    %3114 = vmatpush2.bf16.msra.mxu0 %v3017
    %3115 = vmatprep.subr.bf16.mxu0 %v3014
    %3116 = vmatpush2.bf16.msra.mxu0 %v3013
    %3117 = vmatprep.subr.bf16.mxu0 %v3010
    %3118 = vmatpush2.bf16.msra.mxu0 %v3009
    %3119 = vmatprep.subr.bf16.mxu0 %v3006
    %3120 = vmatpush2.bf16.msra.mxu0 %v3005
    %3121 = vmatprep.subr.bf16.mxu0 %v3002
    %3122 = vmatpush2.bf16.msra.mxu0 %v3001
    %3123 = vmatprep.subr.bf16.mxu0 %v2998
    %3124 = vmatpush2.bf16.msra.mxu0 %v2997
    %3125 = vmatprep.mubr.bf16.mxu0 %v2564
    %3126 = vmatmul.mubr.bf16.gmra.mxu0 %v2686
    %v3127 = vpop.f32.mrf.mxu0
    %v3128 = vadd.f32 %v2756, %v3127
    %v3129 = vpop.f32.mrf.mxu0
    %v3130 = vadd.f32 %v2760, %v3129
    %v3131 = vpop.f32.mrf.mxu0
    %v3132 = vpop.f32.mrf.mxu0
    %3133 = vdwg.mxu0
    %3134 = vmatprep.subr.bf16.mxu0 %v2996
    %3135 = vmatpush1.bf16.msra.mxu0 %v2995
    %3136 = vmatprep.subr.bf16.mxu0 %v2992
    %3137 = vmatpush1.bf16.msra.mxu0 %v2991
    %3138 = vmatprep.subr.bf16.mxu0 %v2988
    %3139 = vmatpush1.bf16.msra.mxu0 %v2987
    %3140 = vmatprep.subr.bf16.mxu0 %v2984
    %3141 = vmatpush1.bf16.msra.mxu0 %v2983
    %3142 = vmatprep.subr.bf16.mxu0 %v2980
    %3143 = vmatpush1.bf16.msra.mxu0 %v2979
    %3144 = vmatprep.subr.bf16.mxu0 %v2976
    %3145 = vmatpush1.bf16.msra.mxu0 %v2975
    %3146 = vmatprep.subr.bf16.mxu0 %v2972
    %3147 = vmatpush1.bf16.msra.mxu0 %v2971
    %3148 = vmatprep.subr.bf16.mxu0 %v2968
    %3149 = vmatpush1.bf16.msra.mxu0 %v2967
    %3150 = vmatprep.subr.bf16.mxu0 %v3028
    %3151 = vmatpush2.bf16.msra.mxu0 %v3027
    %3152 = vmatprep.subr.bf16.mxu0 %v3024
    %3153 = vmatpush2.bf16.msra.mxu0 %v3023
    %3154 = vmatprep.subr.bf16.mxu0 %v3020
    %3155 = vmatpush2.bf16.msra.mxu0 %v3019
    %3156 = vmatprep.subr.bf16.mxu0 %v3016
    %3157 = vmatpush2.bf16.msra.mxu0 %v3015
    %3158 = vmatprep.subr.bf16.mxu0 %v3012
    %3159 = vmatpush2.bf16.msra.mxu0 %v3011
    %3160 = vmatprep.subr.bf16.mxu0 %v3008
    %3161 = vmatpush2.bf16.msra.mxu0 %v3007
    %3162 = vmatprep.subr.bf16.mxu0 %v3004
    %3163 = vmatpush2.bf16.msra.mxu0 %v3003
    %3164 = vmatprep.subr.bf16.mxu0 %v3000
    %3165 = vmatpush2.bf16.msra.mxu0 %v2999
    %3166 = vmatprep.mubr.bf16.mxu0 %v2564
    %3167 = vmatmul.mubr.bf16.gmra.mxu0 %v2686
    %v3168 = vpop.f32.mrf.mxu0
    %v3169 = vadd.f32 %v2764, %v3168
    %v3170 = vpop.f32.mrf.mxu0
    %v3171 = vadd.f32 %v2768, %v3170
    %v3172 = vpop.f32.mrf.mxu0
    %v3173 = vpop.f32.mrf.mxu0
    %3174 = vdwg.mxu0
    %v3175 = vxor.u32 %v3128, 2147483648
    %v3176 = vmul.f32 %v3175, 1.442695
    %v3177 = vpow.pop %v3176
    %v3178 = vadd.f32 %v3177, 1.0
    %v3179 = vrcp.pop %v3178
    %v3180 = vmul.f32 1.0, %v3179
    %v3181 = vxor.u32 %v3130, 2147483648
    %v3182 = vmul.f32 %v3181, 1.442695
    %v3183 = vpow.pop %v3182
    %v3184 = vadd.f32 %v3183, 1.0
    %v3185 = vrcp.pop %v3184
    %v3186 = vmul.f32 1.0, %v3185
    %v3187 = vmul.f32 %v3180, %v3171
    %v3188 = vadd.f32 %v3169, %v3187
    %v3189 = vtanh.pop %v3188
    %v3190 = vsub.f32 1.0, %v3186
    %v3191 = vmul.f32 %v3190, %v3189
    %v3192 = vmul.f32 %v3186, %v2563
    %v3193 = vadd.f32 %v3191, %v3192
    %v3194 = vpack.c.bf16 %v3193, %v3193
    %v3195 = vld [vmem:[#allocation8] sm:$0xf]
    %v3196 = vld [vmem:[#allocation8 + $0x4] sm:$0xf]
    %v3197 = vld [vmem:[#allocation8 + $0x8] sm:$0xf]
    %v3198 = vld [vmem:[#allocation8 + $0xc] sm:$0xf]
    %v3199 = vld [vmem:[#allocation8 + $0x10] sm:$0xf]
    %v3200 = vld [vmem:[#allocation8 + $0x14] sm:$0xf]
    %v3201 = vld [vmem:[#allocation8 + $0x18] sm:$0xf]
    %v3202 = vld [vmem:[#allocation8 + $0x1c] sm:$0xf]
    %v3203 = vld [vmem:[#allocation8 + $0x20] sm:$0xf]
    %v3204 = vld [vmem:[#allocation8 + $0x24] sm:$0xf]
    %v3205 = vld [vmem:[#allocation8 + $0x28] sm:$0xf]
    %v3206 = vld [vmem:[#allocation8 + $0x2c] sm:$0xf]
    %v3207 = vld [vmem:[#allocation8 + $0x30] sm:$0xf]
    %v3208 = vld [vmem:[#allocation8 + $0x34] sm:$0xf]
    %v3209 = vld [vmem:[#allocation8 + $0x38] sm:$0xf]
    %v3210 = vld [vmem:[#allocation8 + $0x3c] sm:$0xf]
    %v3211 = vld [vmem:[%s7] sm:$0x1]
    %v3213 = vlaneseq
    %v3214 = vshrl.u32 %v3213, 7
    %v3215 = vsub.s32 0, %v3214
    %v3216 = vrot.slane %v3211, %v3215
    %v3234 = vunpack.c.l.b16 %v3195
    %v3235 = vunpack.c.l.b16 %v3196
    %v3236 = vunpack.c.l.b16 %v3197
    %v3237 = vunpack.c.l.b16 %v3198
    %v3238 = vunpack.c.l.b16 %v3199
    %v3239 = vunpack.c.l.b16 %v3200
    %v3240 = vunpack.c.l.b16 %v3201
    %v3241 = vunpack.c.l.b16 %v3202
    %v3242 = vunpack.c.l.b16 %v3203
    %v3243 = vunpack.c.l.b16 %v3204
    %v3244 = vunpack.c.l.b16 %v3205
    %v3245 = vunpack.c.l.b16 %v3206
    %v3246 = vunpack.c.l.b16 %v3207
    %v3247 = vunpack.c.l.b16 %v3208
    %v3248 = vunpack.c.l.b16 %v3209
    %v3249 = vunpack.c.l.b16 %v3210
    %v3250 = vpack.c.b16 %v3235, %v3234
    %v3251 = vpack.c.b16 %v3237, %v3236
    %v3252 = vpack.c.b16 %v3239, %v3238
    %v3253 = vpack.c.b16 %v3241, %v3240
    %v3254 = vpack.c.b16 %v3243, %v3242
    %v3255 = vpack.c.b16 %v3245, %v3244
    %v3256 = vpack.c.b16 %v3247, %v3246
    %v3257 = vpack.c.b16 %v3249, %v3248
    %3266 = vmatprep.subr.bf16.mxu0 0
    %3267 = vmatpush1.bf16.msra.mxu0 %v3257
    %3268 = vmatprep.subr.bf16.mxu0 0
    %3269 = vmatpush1.bf16.msra.mxu0 %v3256
    %3270 = vmatprep.subr.bf16.mxu0 0
    %3271 = vmatpush1.bf16.msra.mxu0 %v3255
    %3272 = vmatprep.subr.bf16.mxu0 0
    %3273 = vmatpush1.bf16.msra.mxu0 %v3254
    %3274 = vmatprep.subr.bf16.mxu0 0
    %3275 = vmatpush1.bf16.msra.mxu0 %v3253
    %3276 = vmatprep.subr.bf16.mxu0 0
    %3277 = vmatpush1.bf16.msra.mxu0 %v3252
    %3278 = vmatprep.subr.bf16.mxu0 0
    %3279 = vmatpush1.bf16.msra.mxu0 %v3251
    %3280 = vmatprep.subr.bf16.mxu0 0
    %3281 = vmatpush1.bf16.msra.mxu0 %v3250
    %3282 = vmatprep.subr.bf16.mxu0 0
    %3283 = vmatpush2.bf16.msra.mxu0 0
    %3284 = vmatprep.subr.bf16.mxu0 0
    %3285 = vmatpush2.bf16.msra.mxu0 0
    %3286 = vmatprep.subr.bf16.mxu0 0
    %3287 = vmatpush2.bf16.msra.mxu0 0
    %3288 = vmatprep.subr.bf16.mxu0 0
    %3289 = vmatpush2.bf16.msra.mxu0 0
    %3290 = vmatprep.subr.bf16.mxu0 0
    %3291 = vmatpush2.bf16.msra.mxu0 0
    %3292 = vmatprep.subr.bf16.mxu0 0
    %3293 = vmatpush2.bf16.msra.mxu0 0
    %3294 = vmatprep.subr.bf16.mxu0 0
    %3295 = vmatpush2.bf16.msra.mxu0 0
    %3296 = vmatprep.subr.bf16.mxu0 0
    %3297 = vmatpush2.bf16.msra.mxu0 0
    %3298 = vmatprep.mubr.bf16.mxu0 0
    %3299 = vmatmul.mubr.bf16.gmra.mxu0 %v3194
    %v3300 = vpop.f32.mrf.mxu0
    %v3301 = vadd.f32 %v3216, %v3300
    %v3302 = vpop.f32.mrf.mxu0
    %v3303 = vpop.f32.mrf.mxu0
    %v3304 = vpop.f32.mrf.mxu0
    %3305 = vdwg.mxu0
    %v3306 = vmax.f32 %v3301, -10.0
    %v3307 = vmin.f32 %v3306, 10.0
    %s3308 = scalar_lea.vmem [#allocation10], 32
    %3309 = vst [vmem:[%s3308] sm:$0xff] %v3307
    %v3310 = vsub.f32 %v3307, %v165
    %3311 = vmax.xlane.f32.xlu0 %v3310
    %v3312 = vpop.xlane.xlu0 %3311
    %vm3313 = vcmp.eq.f32.partialorder %v3310, %v3312
    %v3314 = vsel %vm3313, 1, 0
    %v3315 = vcvt.s32.f32 %v3314
    %v3316 = vpack.c.bf16 %v3315, %v3315
    %v3317 = vld [vmem:[#allocation7] sm:$0xff]
    %v3318 = vld [vmem:[#allocation7 + $0x8] sm:$0xff]
    %v3319 = vld [vmem:[#allocation7 + $0x10] sm:$0xff]
    %v3320 = vld [vmem:[#allocation7 + $0x18] sm:$0xff]
    %v3321 = vld [vmem:[#allocation7 + $0x20] sm:$0xff]
    %v3322 = vld [vmem:[#allocation7 + $0x28] sm:$0xff]
    %v3323 = vld [vmem:[#allocation7 + $0x30] sm:$0xff]
    %v3324 = vld [vmem:[#allocation7 + $0x38] sm:$0xff]
    %v3325 = vld [vmem:[#allocation7 + $0x40] sm:$0xff]
    %v3326 = vld [vmem:[#allocation7 + $0x48] sm:$0xff]
    %v3327 = vld [vmem:[#allocation7 + $0x50] sm:$0xff]
    %v3328 = vld [vmem:[#allocation7 + $0x58] sm:$0xff]
    %v3329 = vld [vmem:[#allocation7 + $0x60] sm:$0xff]
    %v3330 = vld [vmem:[#allocation7 + $0x68] sm:$0xff]
    %v3331 = vld [vmem:[#allocation7 + $0x70] sm:$0xff]
    %v3332 = vld [vmem:[#allocation7 + $0x78] sm:$0xff]
    %v3333 = vld [vmem:[#allocation7 + $0x80] sm:$0xff]
    %v3334 = vld [vmem:[#allocation7 + $0x88] sm:$0xff]
    %v3335 = vld [vmem:[#allocation7 + $0x90] sm:$0xff]
    %v3336 = vld [vmem:[#allocation7 + $0x98] sm:$0xff]
    %v3337 = vld [vmem:[#allocation7 + $0xa0] sm:$0xff]
    %v3338 = vld [vmem:[#allocation7 + $0xa8] sm:$0xff]
    %v3339 = vld [vmem:[#allocation7 + $0xb0] sm:$0xff]
    %v3340 = vld [vmem:[#allocation7 + $0xb8] sm:$0xff]
    %v3341 = vld [vmem:[#allocation7 + $0xc0] sm:$0xff]
    %v3342 = vld [vmem:[#allocation7 + $0xc8] sm:$0xff]
    %v3343 = vld [vmem:[#allocation7 + $0xd0] sm:$0xff]
    %v3344 = vld [vmem:[#allocation7 + $0xd8] sm:$0xff]
    %v3345 = vld [vmem:[#allocation7 + $0xe0] sm:$0xff]
    %v3346 = vld [vmem:[#allocation7 + $0xe8] sm:$0xff]
    %v3347 = vld [vmem:[#allocation7 + $0xf0] sm:$0xff]
    %v3348 = vld [vmem:[#allocation7 + $0xf8] sm:$0xff]
    %v3349 = vld [vmem:[#allocation7 + $0x100] sm:$0xff]
    %v3350 = vld [vmem:[#allocation7 + $0x108] sm:$0xff]
    %v3351 = vld [vmem:[#allocation7 + $0x110] sm:$0xff]
    %v3352 = vld [vmem:[#allocation7 + $0x118] sm:$0xff]
    %v3353 = vld [vmem:[#allocation7 + $0x120] sm:$0xff]
    %v3354 = vld [vmem:[#allocation7 + $0x128] sm:$0xff]
    %v3355 = vld [vmem:[#allocation7 + $0x130] sm:$0xff]
    %v3356 = vld [vmem:[#allocation7 + $0x138] sm:$0xff]
    %v3357 = vld [vmem:[#allocation7 + $0x140] sm:$0xff]
    %v3358 = vld [vmem:[#allocation7 + $0x148] sm:$0xff]
    %v3359 = vld [vmem:[#allocation7 + $0x150] sm:$0xff]
    %v3360 = vld [vmem:[#allocation7 + $0x158] sm:$0xff]
    %v3361 = vld [vmem:[#allocation7 + $0x160] sm:$0xff]
    %v3362 = vld [vmem:[#allocation7 + $0x168] sm:$0xff]
    %v3363 = vld [vmem:[#allocation7 + $0x170] sm:$0xff]
    %v3364 = vld [vmem:[#allocation7 + $0x178] sm:$0xff]
    %v3365 = vld [vmem:[#allocation7 + $0x180] sm:$0xff]
    %v3366 = vld [vmem:[#allocation7 + $0x188] sm:$0xff]
    %v3367 = vld [vmem:[#allocation7 + $0x190] sm:$0xff]
    %v3368 = vld [vmem:[#allocation7 + $0x198] sm:$0xff]
    %v3369 = vld [vmem:[#allocation7 + $0x1a0] sm:$0xff]
    %v3370 = vld [vmem:[#allocation7 + $0x1a8] sm:$0xff]
    %v3371 = vld [vmem:[#allocation7 + $0x1b0] sm:$0xff]
    %v3372 = vld [vmem:[#allocation7 + $0x1b8] sm:$0xff]
    %v3373 = vld [vmem:[#allocation7 + $0x1c0] sm:$0xff]
    %v3374 = vld [vmem:[#allocation7 + $0x1c8] sm:$0xff]
    %v3375 = vld [vmem:[#allocation7 + $0x1d0] sm:$0xff]
    %v3376 = vld [vmem:[#allocation7 + $0x1d8] sm:$0xff]
    %v3377 = vld [vmem:[#allocation7 + $0x1e0] sm:$0xff]
    %v3378 = vld [vmem:[#allocation7 + $0x1e8] sm:$0xff]
    %v3379 = vld [vmem:[#allocation7 + $0x1f0] sm:$0xff]
    %v3380 = vld [vmem:[#allocation7 + $0x1f8] sm:$0xff]
    %v3381 = vld [vmem:[%s5] sm:$0xf]
    %v3383 = vlaneseq
    %v3384 = vshrl.u32 %v3383, 7
    %v3385 = vsub.s32 0, %v3384
    %v3386 = vrot.slane %v3381, %v3385
    %v3387 = vlaneseq
    %v3388 = vshrl.u32 %v3387, 7
    %v3389 = vsub.s32 1, %v3388
    %v3390 = vrot.slane %v3381, %v3389
    %v3391 = vlaneseq
    %v3392 = vshrl.u32 %v3391, 7
    %v3393 = vsub.s32 2, %v3392
    %v3394 = vrot.slane %v3381, %v3393
    %v3395 = vlaneseq
    %v3396 = vshrl.u32 %v3395, 7
    %v3397 = vsub.s32 3, %v3396
    %v3398 = vrot.slane %v3381, %v3397
    %v3467 = vunpack.c.l.b16 %v3317
    %v3468 = vunpack.c.h.b16 %v3317
    %v3469 = vunpack.c.l.b16 %v3318
    %v3470 = vunpack.c.h.b16 %v3318
    %v3471 = vunpack.c.l.b16 %v3319
    %v3472 = vunpack.c.h.b16 %v3319
    %v3473 = vunpack.c.l.b16 %v3320
    %v3474 = vunpack.c.h.b16 %v3320
    %v3475 = vunpack.c.l.b16 %v3321
    %v3476 = vunpack.c.h.b16 %v3321
    %v3477 = vunpack.c.l.b16 %v3322
    %v3478 = vunpack.c.h.b16 %v3322
    %v3479 = vunpack.c.l.b16 %v3323
    %v3480 = vunpack.c.h.b16 %v3323
    %v3481 = vunpack.c.l.b16 %v3324
    %v3482 = vunpack.c.h.b16 %v3324
    %v3483 = vunpack.c.l.b16 %v3325
    %v3484 = vunpack.c.h.b16 %v3325
    %v3485 = vunpack.c.l.b16 %v3326
    %v3486 = vunpack.c.h.b16 %v3326
    %v3487 = vunpack.c.l.b16 %v3327
    %v3488 = vunpack.c.h.b16 %v3327
    %v3489 = vunpack.c.l.b16 %v3328
    %v3490 = vunpack.c.h.b16 %v3328
    %v3491 = vunpack.c.l.b16 %v3329
    %v3492 = vunpack.c.h.b16 %v3329
    %v3493 = vunpack.c.l.b16 %v3330
    %v3494 = vunpack.c.h.b16 %v3330
    %v3495 = vunpack.c.l.b16 %v3331
    %v3496 = vunpack.c.h.b16 %v3331
    %v3497 = vunpack.c.l.b16 %v3332
    %v3498 = vunpack.c.h.b16 %v3332
    %v3499 = vunpack.c.l.b16 %v3333
    %v3500 = vunpack.c.h.b16 %v3333
    %v3501 = vunpack.c.l.b16 %v3334
    %v3502 = vunpack.c.h.b16 %v3334
    %v3503 = vunpack.c.l.b16 %v3335
    %v3504 = vunpack.c.h.b16 %v3335
    %v3505 = vunpack.c.l.b16 %v3336
    %v3506 = vunpack.c.h.b16 %v3336
    %v3507 = vunpack.c.l.b16 %v3337
    %v3508 = vunpack.c.h.b16 %v3337
    %v3509 = vunpack.c.l.b16 %v3338
    %v3510 = vunpack.c.h.b16 %v3338
    %v3511 = vunpack.c.l.b16 %v3339
    %v3512 = vunpack.c.h.b16 %v3339
    %v3513 = vunpack.c.l.b16 %v3340
    %v3514 = vunpack.c.h.b16 %v3340
    %v3515 = vunpack.c.l.b16 %v3341
    %v3516 = vunpack.c.h.b16 %v3341
    %v3517 = vunpack.c.l.b16 %v3342
    %v3518 = vunpack.c.h.b16 %v3342
    %v3519 = vunpack.c.l.b16 %v3343
    %v3520 = vunpack.c.h.b16 %v3343
    %v3521 = vunpack.c.l.b16 %v3344
    %v3522 = vunpack.c.h.b16 %v3344
    %v3523 = vunpack.c.l.b16 %v3345
    %v3524 = vunpack.c.h.b16 %v3345
    %v3525 = vunpack.c.l.b16 %v3346
    %v3526 = vunpack.c.h.b16 %v3346
    %v3527 = vunpack.c.l.b16 %v3347
    %v3528 = vunpack.c.h.b16 %v3347
    %v3529 = vunpack.c.l.b16 %v3348
    %v3530 = vunpack.c.h.b16 %v3348
    %v3531 = vunpack.c.l.b16 %v3349
    %v3532 = vunpack.c.h.b16 %v3349
    %v3533 = vunpack.c.l.b16 %v3350
    %v3534 = vunpack.c.h.b16 %v3350
    %v3535 = vunpack.c.l.b16 %v3351
    %v3536 = vunpack.c.h.b16 %v3351
    %v3537 = vunpack.c.l.b16 %v3352
    %v3538 = vunpack.c.h.b16 %v3352
    %v3539 = vunpack.c.l.b16 %v3353
    %v3540 = vunpack.c.h.b16 %v3353
    %v3541 = vunpack.c.l.b16 %v3354
    %v3542 = vunpack.c.h.b16 %v3354
    %v3543 = vunpack.c.l.b16 %v3355
    %v3544 = vunpack.c.h.b16 %v3355
    %v3545 = vunpack.c.l.b16 %v3356
    %v3546 = vunpack.c.h.b16 %v3356
    %v3547 = vunpack.c.l.b16 %v3357
    %v3548 = vunpack.c.h.b16 %v3357
    %v3549 = vunpack.c.l.b16 %v3358
    %v3550 = vunpack.c.h.b16 %v3358
    %v3551 = vunpack.c.l.b16 %v3359
    %v3552 = vunpack.c.h.b16 %v3359
    %v3553 = vunpack.c.l.b16 %v3360
    %v3554 = vunpack.c.h.b16 %v3360
    %v3555 = vunpack.c.l.b16 %v3361
    %v3556 = vunpack.c.h.b16 %v3361
    %v3557 = vunpack.c.l.b16 %v3362
    %v3558 = vunpack.c.h.b16 %v3362
    %v3559 = vunpack.c.l.b16 %v3363
    %v3560 = vunpack.c.h.b16 %v3363
    %v3561 = vunpack.c.l.b16 %v3364
    %v3562 = vunpack.c.h.b16 %v3364
    %v3563 = vunpack.c.l.b16 %v3365
    %v3564 = vunpack.c.h.b16 %v3365
    %v3565 = vunpack.c.l.b16 %v3366
    %v3566 = vunpack.c.h.b16 %v3366
    %v3567 = vunpack.c.l.b16 %v3367
    %v3568 = vunpack.c.h.b16 %v3367
    %v3569 = vunpack.c.l.b16 %v3368
    %v3570 = vunpack.c.h.b16 %v3368
    %v3571 = vunpack.c.l.b16 %v3369
    %v3572 = vunpack.c.h.b16 %v3369
    %v3573 = vunpack.c.l.b16 %v3370
    %v3574 = vunpack.c.h.b16 %v3370
    %v3575 = vunpack.c.l.b16 %v3371
    %v3576 = vunpack.c.h.b16 %v3371
    %v3577 = vunpack.c.l.b16 %v3372
    %v3578 = vunpack.c.h.b16 %v3372
    %v3579 = vunpack.c.l.b16 %v3373
    %v3580 = vunpack.c.h.b16 %v3373
    %v3581 = vunpack.c.l.b16 %v3374
    %v3582 = vunpack.c.h.b16 %v3374
    %v3583 = vunpack.c.l.b16 %v3375
    %v3584 = vunpack.c.h.b16 %v3375
    %v3585 = vunpack.c.l.b16 %v3376
    %v3586 = vunpack.c.h.b16 %v3376
    %v3587 = vunpack.c.l.b16 %v3377
    %v3588 = vunpack.c.h.b16 %v3377
    %v3589 = vunpack.c.l.b16 %v3378
    %v3590 = vunpack.c.h.b16 %v3378
    %v3591 = vunpack.c.l.b16 %v3379
    %v3592 = vunpack.c.h.b16 %v3379
    %v3593 = vunpack.c.l.b16 %v3380
    %v3594 = vunpack.c.h.b16 %v3380
    %v3595 = vpack.c.b16 %v3471, %v3467
    %v3596 = vpack.c.b16 %v3472, %v3468
    %v3597 = vpack.c.b16 %v3473, %v3469
    %v3598 = vpack.c.b16 %v3474, %v3470
    %v3599 = vpack.c.b16 %v3479, %v3475
    %v3600 = vpack.c.b16 %v3480, %v3476
    %v3601 = vpack.c.b16 %v3481, %v3477
    %v3602 = vpack.c.b16 %v3482, %v3478
    %v3603 = vpack.c.b16 %v3487, %v3483
    %v3604 = vpack.c.b16 %v3488, %v3484
    %v3605 = vpack.c.b16 %v3489, %v3485
    %v3606 = vpack.c.b16 %v3490, %v3486
    %v3607 = vpack.c.b16 %v3495, %v3491
    %v3608 = vpack.c.b16 %v3496, %v3492
    %v3609 = vpack.c.b16 %v3497, %v3493
    %v3610 = vpack.c.b16 %v3498, %v3494
    %v3611 = vpack.c.b16 %v3503, %v3499
    %v3612 = vpack.c.b16 %v3504, %v3500
    %v3613 = vpack.c.b16 %v3505, %v3501
    %v3614 = vpack.c.b16 %v3506, %v3502
    %v3615 = vpack.c.b16 %v3511, %v3507
    %v3616 = vpack.c.b16 %v3512, %v3508
    %v3617 = vpack.c.b16 %v3513, %v3509
    %v3618 = vpack.c.b16 %v3514, %v3510
    %v3619 = vpack.c.b16 %v3519, %v3515
    %v3620 = vpack.c.b16 %v3520, %v3516
    %v3621 = vpack.c.b16 %v3521, %v3517
    %v3622 = vpack.c.b16 %v3522, %v3518
    %v3623 = vpack.c.b16 %v3527, %v3523
    %v3624 = vpack.c.b16 %v3528, %v3524
    %v3625 = vpack.c.b16 %v3529, %v3525
    %v3626 = vpack.c.b16 %v3530, %v3526
    %v3627 = vpack.c.b16 %v3535, %v3531
    %v3628 = vpack.c.b16 %v3536, %v3532
    %v3629 = vpack.c.b16 %v3537, %v3533
    %v3630 = vpack.c.b16 %v3538, %v3534
    %v3631 = vpack.c.b16 %v3543, %v3539
    %v3632 = vpack.c.b16 %v3544, %v3540
    %v3633 = vpack.c.b16 %v3545, %v3541
    %v3634 = vpack.c.b16 %v3546, %v3542
    %v3635 = vpack.c.b16 %v3551, %v3547
    %v3636 = vpack.c.b16 %v3552, %v3548
    %v3637 = vpack.c.b16 %v3553, %v3549
    %v3638 = vpack.c.b16 %v3554, %v3550
    %v3639 = vpack.c.b16 %v3559, %v3555
    %v3640 = vpack.c.b16 %v3560, %v3556
    %v3641 = vpack.c.b16 %v3561, %v3557
    %v3642 = vpack.c.b16 %v3562, %v3558
    %v3643 = vpack.c.b16 %v3567, %v3563
    %v3644 = vpack.c.b16 %v3568, %v3564
    %v3645 = vpack.c.b16 %v3569, %v3565
    %v3646 = vpack.c.b16 %v3570, %v3566
    %v3647 = vpack.c.b16 %v3575, %v3571
    %v3648 = vpack.c.b16 %v3576, %v3572
    %v3649 = vpack.c.b16 %v3577, %v3573
    %v3650 = vpack.c.b16 %v3578, %v3574
    %v3651 = vpack.c.b16 %v3583, %v3579
    %v3652 = vpack.c.b16 %v3584, %v3580
    %v3653 = vpack.c.b16 %v3585, %v3581
    %v3654 = vpack.c.b16 %v3586, %v3582
    %v3655 = vpack.c.b16 %v3591, %v3587
    %v3656 = vpack.c.b16 %v3592, %v3588
    %v3657 = vpack.c.b16 %v3593, %v3589
    %v3658 = vpack.c.b16 %v3594, %v3590
    %3723 = vmatprep.subr.bf16.mxu0 %v3624
    %3724 = vmatpush1.bf16.msra.mxu0 %v3623
    %3725 = vmatprep.subr.bf16.mxu0 %v3620
    %3726 = vmatpush1.bf16.msra.mxu0 %v3619
    %3727 = vmatprep.subr.bf16.mxu0 %v3616
    %3728 = vmatpush1.bf16.msra.mxu0 %v3615
    %3729 = vmatprep.subr.bf16.mxu0 %v3612
    %3730 = vmatpush1.bf16.msra.mxu0 %v3611
    %3731 = vmatprep.subr.bf16.mxu0 %v3608
    %3732 = vmatpush1.bf16.msra.mxu0 %v3607
    %3733 = vmatprep.subr.bf16.mxu0 %v3604
    %3734 = vmatpush1.bf16.msra.mxu0 %v3603
    %3735 = vmatprep.subr.bf16.mxu0 %v3600
    %3736 = vmatpush1.bf16.msra.mxu0 %v3599
    %3737 = vmatprep.subr.bf16.mxu0 %v3596
    %3738 = vmatpush1.bf16.msra.mxu0 %v3595
    %3739 = vmatprep.subr.bf16.mxu0 %v3656
    %3740 = vmatpush2.bf16.msra.mxu0 %v3655
    %3741 = vmatprep.subr.bf16.mxu0 %v3652
    %3742 = vmatpush2.bf16.msra.mxu0 %v3651
    %3743 = vmatprep.subr.bf16.mxu0 %v3648
    %3744 = vmatpush2.bf16.msra.mxu0 %v3647
    %3745 = vmatprep.subr.bf16.mxu0 %v3644
    %3746 = vmatpush2.bf16.msra.mxu0 %v3643
    %3747 = vmatprep.subr.bf16.mxu0 %v3640
    %3748 = vmatpush2.bf16.msra.mxu0 %v3639
    %3749 = vmatprep.subr.bf16.mxu0 %v3636
    %3750 = vmatpush2.bf16.msra.mxu0 %v3635
    %3751 = vmatprep.subr.bf16.mxu0 %v3632
    %3752 = vmatpush2.bf16.msra.mxu0 %v3631
    %3753 = vmatprep.subr.bf16.mxu0 %v3628
    %3754 = vmatpush2.bf16.msra.mxu0 %v3627
    %3755 = vmatprep.mubr.bf16.mxu0 %v3194
    %3756 = vmatmul.mubr.bf16.gmra.mxu0 %v3316
    %v3757 = vpop.f32.mrf.mxu0
    %v3758 = vadd.f32 %v3386, %v3757
    %v3759 = vpop.f32.mrf.mxu0
    %v3760 = vadd.f32 %v3390, %v3759
    %v3761 = vpop.f32.mrf.mxu0
    %v3762 = vpop.f32.mrf.mxu0
    %3763 = vdwg.mxu0
    %3764 = vmatprep.subr.bf16.mxu0 %v3626
    %3765 = vmatpush1.bf16.msra.mxu0 %v3625
    %3766 = vmatprep.subr.bf16.mxu0 %v3622
    %3767 = vmatpush1.bf16.msra.mxu0 %v3621
    %3768 = vmatprep.subr.bf16.mxu0 %v3618
    %3769 = vmatpush1.bf16.msra.mxu0 %v3617
    %3770 = vmatprep.subr.bf16.mxu0 %v3614
    %3771 = vmatpush1.bf16.msra.mxu0 %v3613
    %3772 = vmatprep.subr.bf16.mxu0 %v3610
    %3773 = vmatpush1.bf16.msra.mxu0 %v3609
    %3774 = vmatprep.subr.bf16.mxu0 %v3606
    %3775 = vmatpush1.bf16.msra.mxu0 %v3605
    %3776 = vmatprep.subr.bf16.mxu0 %v3602
    %3777 = vmatpush1.bf16.msra.mxu0 %v3601
    %3778 = vmatprep.subr.bf16.mxu0 %v3598
    %3779 = vmatpush1.bf16.msra.mxu0 %v3597
    %3780 = vmatprep.subr.bf16.mxu0 %v3658
    %3781 = vmatpush2.bf16.msra.mxu0 %v3657
    %3782 = vmatprep.subr.bf16.mxu0 %v3654
    %3783 = vmatpush2.bf16.msra.mxu0 %v3653
    %3784 = vmatprep.subr.bf16.mxu0 %v3650
    %3785 = vmatpush2.bf16.msra.mxu0 %v3649
    %3786 = vmatprep.subr.bf16.mxu0 %v3646
    %3787 = vmatpush2.bf16.msra.mxu0 %v3645
    %3788 = vmatprep.subr.bf16.mxu0 %v3642
    %3789 = vmatpush2.bf16.msra.mxu0 %v3641
    %3790 = vmatprep.subr.bf16.mxu0 %v3638
    %3791 = vmatpush2.bf16.msra.mxu0 %v3637
    %3792 = vmatprep.subr.bf16.mxu0 %v3634
    %3793 = vmatpush2.bf16.msra.mxu0 %v3633
    %3794 = vmatprep.subr.bf16.mxu0 %v3630
    %3795 = vmatpush2.bf16.msra.mxu0 %v3629
    %3796 = vmatprep.mubr.bf16.mxu0 %v3194
    %3797 = vmatmul.mubr.bf16.gmra.mxu0 %v3316
    %v3798 = vpop.f32.mrf.mxu0
    %v3799 = vadd.f32 %v3394, %v3798
    %v3800 = vpop.f32.mrf.mxu0
    %v3801 = vadd.f32 %v3398, %v3800
    %v3802 = vpop.f32.mrf.mxu0
    %v3803 = vpop.f32.mrf.mxu0
    %3804 = vdwg.mxu0
    %v3805 = vxor.u32 %v3758, 2147483648
    %v3806 = vmul.f32 %v3805, 1.442695
    %v3807 = vpow.pop %v3806
    %v3808 = vadd.f32 %v3807, 1.0
    %v3809 = vrcp.pop %v3808
    %v3810 = vmul.f32 1.0, %v3809
    %v3811 = vxor.u32 %v3760, 2147483648
    %v3812 = vmul.f32 %v3811, 1.442695
    %v3813 = vpow.pop %v3812
    %v3814 = vadd.f32 %v3813, 1.0
    %v3815 = vrcp.pop %v3814
    %v3816 = vmul.f32 1.0, %v3815
    %v3817 = vmul.f32 %v3810, %v3801
    %v3818 = vadd.f32 %v3799, %v3817
    %v3819 = vtanh.pop %v3818
    %v3820 = vsub.f32 1.0, %v3816
    %v3821 = vmul.f32 %v3820, %v3819
    %v3822 = vmul.f32 %v3816, %v3193
    %v3823 = vadd.f32 %v3821, %v3822
    %v3824 = vpack.c.bf16 %v3823, %v3823
    %v3825 = vld [vmem:[#allocation8] sm:$0xf]
    %v3826 = vld [vmem:[#allocation8 + $0x4] sm:$0xf]
    %v3827 = vld [vmem:[#allocation8 + $0x8] sm:$0xf]
    %v3828 = vld [vmem:[#allocation8 + $0xc] sm:$0xf]
    %v3829 = vld [vmem:[#allocation8 + $0x10] sm:$0xf]
    %v3830 = vld [vmem:[#allocation8 + $0x14] sm:$0xf]
    %v3831 = vld [vmem:[#allocation8 + $0x18] sm:$0xf]
    %v3832 = vld [vmem:[#allocation8 + $0x1c] sm:$0xf]
    %v3833 = vld [vmem:[#allocation8 + $0x20] sm:$0xf]
    %v3834 = vld [vmem:[#allocation8 + $0x24] sm:$0xf]
    %v3835 = vld [vmem:[#allocation8 + $0x28] sm:$0xf]
    %v3836 = vld [vmem:[#allocation8 + $0x2c] sm:$0xf]
    %v3837 = vld [vmem:[#allocation8 + $0x30] sm:$0xf]
    %v3838 = vld [vmem:[#allocation8 + $0x34] sm:$0xf]
    %v3839 = vld [vmem:[#allocation8 + $0x38] sm:$0xf]
    %v3840 = vld [vmem:[#allocation8 + $0x3c] sm:$0xf]
    %v3841 = vld [vmem:[%s7] sm:$0x1]
    %v3843 = vlaneseq
    %v3844 = vshrl.u32 %v3843, 7
    %v3845 = vsub.s32 0, %v3844
    %v3846 = vrot.slane %v3841, %v3845
    %v3864 = vunpack.c.l.b16 %v3825
    %v3865 = vunpack.c.l.b16 %v3826
    %v3866 = vunpack.c.l.b16 %v3827
    %v3867 = vunpack.c.l.b16 %v3828
    %v3868 = vunpack.c.l.b16 %v3829
    %v3869 = vunpack.c.l.b16 %v3830
    %v3870 = vunpack.c.l.b16 %v3831
    %v3871 = vunpack.c.l.b16 %v3832
    %v3872 = vunpack.c.l.b16 %v3833
    %v3873 = vunpack.c.l.b16 %v3834
    %v3874 = vunpack.c.l.b16 %v3835
    %v3875 = vunpack.c.l.b16 %v3836
    %v3876 = vunpack.c.l.b16 %v3837
    %v3877 = vunpack.c.l.b16 %v3838
    %v3878 = vunpack.c.l.b16 %v3839
    %v3879 = vunpack.c.l.b16 %v3840
    %v3880 = vpack.c.b16 %v3865, %v3864
    %v3881 = vpack.c.b16 %v3867, %v3866
    %v3882 = vpack.c.b16 %v3869, %v3868
    %v3883 = vpack.c.b16 %v3871, %v3870
    %v3884 = vpack.c.b16 %v3873, %v3872
    %v3885 = vpack.c.b16 %v3875, %v3874
    %v3886 = vpack.c.b16 %v3877, %v3876
    %v3887 = vpack.c.b16 %v3879, %v3878
    %3896 = vmatprep.subr.bf16.mxu0 0
    %3897 = vmatpush1.bf16.msra.mxu0 %v3887
    %3898 = vmatprep.subr.bf16.mxu0 0
    %3899 = vmatpush1.bf16.msra.mxu0 %v3886
    %3900 = vmatprep.subr.bf16.mxu0 0
    %3901 = vmatpush1.bf16.msra.mxu0 %v3885
    %3902 = vmatprep.subr.bf16.mxu0 0
    %3903 = vmatpush1.bf16.msra.mxu0 %v3884
    %3904 = vmatprep.subr.bf16.mxu0 0
    %3905 = vmatpush1.bf16.msra.mxu0 %v3883
    %3906 = vmatprep.subr.bf16.mxu0 0
    %3907 = vmatpush1.bf16.msra.mxu0 %v3882
    %3908 = vmatprep.subr.bf16.mxu0 0
    %3909 = vmatpush1.bf16.msra.mxu0 %v3881
    %3910 = vmatprep.subr.bf16.mxu0 0
    %3911 = vmatpush1.bf16.msra.mxu0 %v3880
    %3912 = vmatprep.subr.bf16.mxu0 0
    %3913 = vmatpush2.bf16.msra.mxu0 0
    %3914 = vmatprep.subr.bf16.mxu0 0
    %3915 = vmatpush2.bf16.msra.mxu0 0
    %3916 = vmatprep.subr.bf16.mxu0 0
    %3917 = vmatpush2.bf16.msra.mxu0 0
    %3918 = vmatprep.subr.bf16.mxu0 0
    %3919 = vmatpush2.bf16.msra.mxu0 0
    %3920 = vmatprep.subr.bf16.mxu0 0
    %3921 = vmatpush2.bf16.msra.mxu0 0
    %3922 = vmatprep.subr.bf16.mxu0 0
    %3923 = vmatpush2.bf16.msra.mxu0 0
    %3924 = vmatprep.subr.bf16.mxu0 0
    %3925 = vmatpush2.bf16.msra.mxu0 0
    %3926 = vmatprep.subr.bf16.mxu0 0
    %3927 = vmatpush2.bf16.msra.mxu0 0
    %3928 = vmatprep.mubr.bf16.mxu0 0
    %3929 = vmatmul.mubr.bf16.gmra.mxu0 %v3824
    %v3930 = vpop.f32.mrf.mxu0
    %v3931 = vadd.f32 %v3846, %v3930
    %v3932 = vpop.f32.mrf.mxu0
    %v3933 = vpop.f32.mrf.mxu0
    %v3934 = vpop.f32.mrf.mxu0
    %3935 = vdwg.mxu0
    %v3936 = vmax.f32 %v3931, -10.0
    %v3937 = vmin.f32 %v3936, 10.0
    %s3938 = scalar_lea.vmem [#allocation10], 40
    %3939 = vst [vmem:[%s3938] sm:$0xff] %v3937
    %v3940 = vsub.f32 %v3937, %v165
    %3941 = vmax.xlane.f32.xlu0 %v3940
    %v3942 = vpop.xlane.xlu0 %3941
    %vm3943 = vcmp.eq.f32.partialorder %v3940, %v3942
    %v3944 = vsel %vm3943, 1, 0
    %v3945 = vcvt.s32.f32 %v3944
    %v3946 = vpack.c.bf16 %v3945, %v3945
    %v3947 = vld [vmem:[#allocation7] sm:$0xff]
    %v3948 = vld [vmem:[#allocation7 + $0x8] sm:$0xff]
    %v3949 = vld [vmem:[#allocation7 + $0x10] sm:$0xff]
    %v3950 = vld [vmem:[#allocation7 + $0x18] sm:$0xff]
    %v3951 = vld [vmem:[#allocation7 + $0x20] sm:$0xff]
    %v3952 = vld [vmem:[#allocation7 + $0x28] sm:$0xff]
    %v3953 = vld [vmem:[#allocation7 + $0x30] sm:$0xff]
    %v3954 = vld [vmem:[#allocation7 + $0x38] sm:$0xff]
    %v3955 = vld [vmem:[#allocation7 + $0x40] sm:$0xff]
    %v3956 = vld [vmem:[#allocation7 + $0x48] sm:$0xff]
    %v3957 = vld [vmem:[#allocation7 + $0x50] sm:$0xff]
    %v3958 = vld [vmem:[#allocation7 + $0x58] sm:$0xff]
    %v3959 = vld [vmem:[#allocation7 + $0x60] sm:$0xff]
    %v3960 = vld [vmem:[#allocation7 + $0x68] sm:$0xff]
    %v3961 = vld [vmem:[#allocation7 + $0x70] sm:$0xff]
    %v3962 = vld [vmem:[#allocation7 + $0x78] sm:$0xff]
    %v3963 = vld [vmem:[#allocation7 + $0x80] sm:$0xff]
    %v3964 = vld [vmem:[#allocation7 + $0x88] sm:$0xff]
    %v3965 = vld [vmem:[#allocation7 + $0x90] sm:$0xff]
    %v3966 = vld [vmem:[#allocation7 + $0x98] sm:$0xff]
    %v3967 = vld [vmem:[#allocation7 + $0xa0] sm:$0xff]
    %v3968 = vld [vmem:[#allocation7 + $0xa8] sm:$0xff]
    %v3969 = vld [vmem:[#allocation7 + $0xb0] sm:$0xff]
    %v3970 = vld [vmem:[#allocation7 + $0xb8] sm:$0xff]
    %v3971 = vld [vmem:[#allocation7 + $0xc0] sm:$0xff]
    %v3972 = vld [vmem:[#allocation7 + $0xc8] sm:$0xff]
    %v3973 = vld [vmem:[#allocation7 + $0xd0] sm:$0xff]
    %v3974 = vld [vmem:[#allocation7 + $0xd8] sm:$0xff]
    %v3975 = vld [vmem:[#allocation7 + $0xe0] sm:$0xff]
    %v3976 = vld [vmem:[#allocation7 + $0xe8] sm:$0xff]
    %v3977 = vld [vmem:[#allocation7 + $0xf0] sm:$0xff]
    %v3978 = vld [vmem:[#allocation7 + $0xf8] sm:$0xff]
    %v3979 = vld [vmem:[#allocation7 + $0x100] sm:$0xff]
    %v3980 = vld [vmem:[#allocation7 + $0x108] sm:$0xff]
    %v3981 = vld [vmem:[#allocation7 + $0x110] sm:$0xff]
    %v3982 = vld [vmem:[#allocation7 + $0x118] sm:$0xff]
    %v3983 = vld [vmem:[#allocation7 + $0x120] sm:$0xff]
    %v3984 = vld [vmem:[#allocation7 + $0x128] sm:$0xff]
    %v3985 = vld [vmem:[#allocation7 + $0x130] sm:$0xff]
    %v3986 = vld [vmem:[#allocation7 + $0x138] sm:$0xff]
    %v3987 = vld [vmem:[#allocation7 + $0x140] sm:$0xff]
    %v3988 = vld [vmem:[#allocation7 + $0x148] sm:$0xff]
    %v3989 = vld [vmem:[#allocation7 + $0x150] sm:$0xff]
    %v3990 = vld [vmem:[#allocation7 + $0x158] sm:$0xff]
    %v3991 = vld [vmem:[#allocation7 + $0x160] sm:$0xff]
    %v3992 = vld [vmem:[#allocation7 + $0x168] sm:$0xff]
    %v3993 = vld [vmem:[#allocation7 + $0x170] sm:$0xff]
    %v3994 = vld [vmem:[#allocation7 + $0x178] sm:$0xff]
    %v3995 = vld [vmem:[#allocation7 + $0x180] sm:$0xff]
    %v3996 = vld [vmem:[#allocation7 + $0x188] sm:$0xff]
    %v3997 = vld [vmem:[#allocation7 + $0x190] sm:$0xff]
    %v3998 = vld [vmem:[#allocation7 + $0x198] sm:$0xff]
    %v3999 = vld [vmem:[#allocation7 + $0x1a0] sm:$0xff]
    %v4000 = vld [vmem:[#allocation7 + $0x1a8] sm:$0xff]
    %v4001 = vld [vmem:[#allocation7 + $0x1b0] sm:$0xff]
    %v4002 = vld [vmem:[#allocation7 + $0x1b8] sm:$0xff]
    %v4003 = vld [vmem:[#allocation7 + $0x1c0] sm:$0xff]
    %v4004 = vld [vmem:[#allocation7 + $0x1c8] sm:$0xff]
    %v4005 = vld [vmem:[#allocation7 + $0x1d0] sm:$0xff]
    %v4006 = vld [vmem:[#allocation7 + $0x1d8] sm:$0xff]
    %v4007 = vld [vmem:[#allocation7 + $0x1e0] sm:$0xff]
    %v4008 = vld [vmem:[#allocation7 + $0x1e8] sm:$0xff]
    %v4009 = vld [vmem:[#allocation7 + $0x1f0] sm:$0xff]
    %v4010 = vld [vmem:[#allocation7 + $0x1f8] sm:$0xff]
    %v4011 = vld [vmem:[%s5] sm:$0xf]
    %v4013 = vlaneseq
    %v4014 = vshrl.u32 %v4013, 7
    %v4015 = vsub.s32 0, %v4014
    %v4016 = vrot.slane %v4011, %v4015
    %v4017 = vlaneseq
    %v4018 = vshrl.u32 %v4017, 7
    %v4019 = vsub.s32 1, %v4018
    %v4020 = vrot.slane %v4011, %v4019
    %v4021 = vlaneseq
    %v4022 = vshrl.u32 %v4021, 7
    %v4023 = vsub.s32 2, %v4022
    %v4024 = vrot.slane %v4011, %v4023
    %v4025 = vlaneseq
    %v4026 = vshrl.u32 %v4025, 7
    %v4027 = vsub.s32 3, %v4026
    %v4028 = vrot.slane %v4011, %v4027
    %v4097 = vunpack.c.l.b16 %v3947
    %v4098 = vunpack.c.h.b16 %v3947
    %v4099 = vunpack.c.l.b16 %v3948
    %v4100 = vunpack.c.h.b16 %v3948
    %v4101 = vunpack.c.l.b16 %v3949
    %v4102 = vunpack.c.h.b16 %v3949
    %v4103 = vunpack.c.l.b16 %v3950
    %v4104 = vunpack.c.h.b16 %v3950
    %v4105 = vunpack.c.l.b16 %v3951
    %v4106 = vunpack.c.h.b16 %v3951
    %v4107 = vunpack.c.l.b16 %v3952
    %v4108 = vunpack.c.h.b16 %v3952
    %v4109 = vunpack.c.l.b16 %v3953
    %v4110 = vunpack.c.h.b16 %v3953
    %v4111 = vunpack.c.l.b16 %v3954
    %v4112 = vunpack.c.h.b16 %v3954
    %v4113 = vunpack.c.l.b16 %v3955
    %v4114 = vunpack.c.h.b16 %v3955
    %v4115 = vunpack.c.l.b16 %v3956
    %v4116 = vunpack.c.h.b16 %v3956
    %v4117 = vunpack.c.l.b16 %v3957
    %v4118 = vunpack.c.h.b16 %v3957
    %v4119 = vunpack.c.l.b16 %v3958
    %v4120 = vunpack.c.h.b16 %v3958
    %v4121 = vunpack.c.l.b16 %v3959
    %v4122 = vunpack.c.h.b16 %v3959
    %v4123 = vunpack.c.l.b16 %v3960
    %v4124 = vunpack.c.h.b16 %v3960
    %v4125 = vunpack.c.l.b16 %v3961
    %v4126 = vunpack.c.h.b16 %v3961
    %v4127 = vunpack.c.l.b16 %v3962
    %v4128 = vunpack.c.h.b16 %v3962
    %v4129 = vunpack.c.l.b16 %v3963
    %v4130 = vunpack.c.h.b16 %v3963
    %v4131 = vunpack.c.l.b16 %v3964
    %v4132 = vunpack.c.h.b16 %v3964
    %v4133 = vunpack.c.l.b16 %v3965
    %v4134 = vunpack.c.h.b16 %v3965
    %v4135 = vunpack.c.l.b16 %v3966
    %v4136 = vunpack.c.h.b16 %v3966
    %v4137 = vunpack.c.l.b16 %v3967
    %v4138 = vunpack.c.h.b16 %v3967
    %v4139 = vunpack.c.l.b16 %v3968
    %v4140 = vunpack.c.h.b16 %v3968
    %v4141 = vunpack.c.l.b16 %v3969
    %v4142 = vunpack.c.h.b16 %v3969
    %v4143 = vunpack.c.l.b16 %v3970
    %v4144 = vunpack.c.h.b16 %v3970
    %v4145 = vunpack.c.l.b16 %v3971
    %v4146 = vunpack.c.h.b16 %v3971
    %v4147 = vunpack.c.l.b16 %v3972
    %v4148 = vunpack.c.h.b16 %v3972
    %v4149 = vunpack.c.l.b16 %v3973
    %v4150 = vunpack.c.h.b16 %v3973
    %v4151 = vunpack.c.l.b16 %v3974
    %v4152 = vunpack.c.h.b16 %v3974
    %v4153 = vunpack.c.l.b16 %v3975
    %v4154 = vunpack.c.h.b16 %v3975
    %v4155 = vunpack.c.l.b16 %v3976
    %v4156 = vunpack.c.h.b16 %v3976
    %v4157 = vunpack.c.l.b16 %v3977
    %v4158 = vunpack.c.h.b16 %v3977
    %v4159 = vunpack.c.l.b16 %v3978
    %v4160 = vunpack.c.h.b16 %v3978
    %v4161 = vunpack.c.l.b16 %v3979
    %v4162 = vunpack.c.h.b16 %v3979
    %v4163 = vunpack.c.l.b16 %v3980
    %v4164 = vunpack.c.h.b16 %v3980
    %v4165 = vunpack.c.l.b16 %v3981
    %v4166 = vunpack.c.h.b16 %v3981
    %v4167 = vunpack.c.l.b16 %v3982
    %v4168 = vunpack.c.h.b16 %v3982
    %v4169 = vunpack.c.l.b16 %v3983
    %v4170 = vunpack.c.h.b16 %v3983
    %v4171 = vunpack.c.l.b16 %v3984
    %v4172 = vunpack.c.h.b16 %v3984
    %v4173 = vunpack.c.l.b16 %v3985
    %v4174 = vunpack.c.h.b16 %v3985
    %v4175 = vunpack.c.l.b16 %v3986
    %v4176 = vunpack.c.h.b16 %v3986
    %v4177 = vunpack.c.l.b16 %v3987
    %v4178 = vunpack.c.h.b16 %v3987
    %v4179 = vunpack.c.l.b16 %v3988
    %v4180 = vunpack.c.h.b16 %v3988
    %v4181 = vunpack.c.l.b16 %v3989
    %v4182 = vunpack.c.h.b16 %v3989
    %v4183 = vunpack.c.l.b16 %v3990
    %v4184 = vunpack.c.h.b16 %v3990
    %v4185 = vunpack.c.l.b16 %v3991
    %v4186 = vunpack.c.h.b16 %v3991
    %v4187 = vunpack.c.l.b16 %v3992
    %v4188 = vunpack.c.h.b16 %v3992
    %v4189 = vunpack.c.l.b16 %v3993
    %v4190 = vunpack.c.h.b16 %v3993
    %v4191 = vunpack.c.l.b16 %v3994
    %v4192 = vunpack.c.h.b16 %v3994
    %v4193 = vunpack.c.l.b16 %v3995
    %v4194 = vunpack.c.h.b16 %v3995
    %v4195 = vunpack.c.l.b16 %v3996
    %v4196 = vunpack.c.h.b16 %v3996
    %v4197 = vunpack.c.l.b16 %v3997
    %v4198 = vunpack.c.h.b16 %v3997
    %v4199 = vunpack.c.l.b16 %v3998
    %v4200 = vunpack.c.h.b16 %v3998
    %v4201 = vunpack.c.l.b16 %v3999
    %v4202 = vunpack.c.h.b16 %v3999
    %v4203 = vunpack.c.l.b16 %v4000
    %v4204 = vunpack.c.h.b16 %v4000
    %v4205 = vunpack.c.l.b16 %v4001
    %v4206 = vunpack.c.h.b16 %v4001
    %v4207 = vunpack.c.l.b16 %v4002
    %v4208 = vunpack.c.h.b16 %v4002
    %v4209 = vunpack.c.l.b16 %v4003
    %v4210 = vunpack.c.h.b16 %v4003
    %v4211 = vunpack.c.l.b16 %v4004
    %v4212 = vunpack.c.h.b16 %v4004
    %v4213 = vunpack.c.l.b16 %v4005
    %v4214 = vunpack.c.h.b16 %v4005
    %v4215 = vunpack.c.l.b16 %v4006
    %v4216 = vunpack.c.h.b16 %v4006
    %v4217 = vunpack.c.l.b16 %v4007
    %v4218 = vunpack.c.h.b16 %v4007
    %v4219 = vunpack.c.l.b16 %v4008
    %v4220 = vunpack.c.h.b16 %v4008
    %v4221 = vunpack.c.l.b16 %v4009
    %v4222 = vunpack.c.h.b16 %v4009
    %v4223 = vunpack.c.l.b16 %v4010
    %v4224 = vunpack.c.h.b16 %v4010
    %v4225 = vpack.c.b16 %v4101, %v4097
    %v4226 = vpack.c.b16 %v4102, %v4098
    %v4227 = vpack.c.b16 %v4103, %v4099
    %v4228 = vpack.c.b16 %v4104, %v4100
    %v4229 = vpack.c.b16 %v4109, %v4105
    %v4230 = vpack.c.b16 %v4110, %v4106
    %v4231 = vpack.c.b16 %v4111, %v4107
    %v4232 = vpack.c.b16 %v4112, %v4108
    %v4233 = vpack.c.b16 %v4117, %v4113
    %v4234 = vpack.c.b16 %v4118, %v4114
    %v4235 = vpack.c.b16 %v4119, %v4115
    %v4236 = vpack.c.b16 %v4120, %v4116
    %v4237 = vpack.c.b16 %v4125, %v4121
    %v4238 = vpack.c.b16 %v4126, %v4122
    %v4239 = vpack.c.b16 %v4127, %v4123
    %v4240 = vpack.c.b16 %v4128, %v4124
    %v4241 = vpack.c.b16 %v4133, %v4129
    %v4242 = vpack.c.b16 %v4134, %v4130
    %v4243 = vpack.c.b16 %v4135, %v4131
    %v4244 = vpack.c.b16 %v4136, %v4132
    %v4245 = vpack.c.b16 %v4141, %v4137
    %v4246 = vpack.c.b16 %v4142, %v4138
    %v4247 = vpack.c.b16 %v4143, %v4139
    %v4248 = vpack.c.b16 %v4144, %v4140
    %v4249 = vpack.c.b16 %v4149, %v4145
    %v4250 = vpack.c.b16 %v4150, %v4146
    %v4251 = vpack.c.b16 %v4151, %v4147
    %v4252 = vpack.c.b16 %v4152, %v4148
    %v4253 = vpack.c.b16 %v4157, %v4153
    %v4254 = vpack.c.b16 %v4158, %v4154
    %v4255 = vpack.c.b16 %v4159, %v4155
    %v4256 = vpack.c.b16 %v4160, %v4156
    %v4257 = vpack.c.b16 %v4165, %v4161
    %v4258 = vpack.c.b16 %v4166, %v4162
    %v4259 = vpack.c.b16 %v4167, %v4163
    %v4260 = vpack.c.b16 %v4168, %v4164
    %v4261 = vpack.c.b16 %v4173, %v4169
    %v4262 = vpack.c.b16 %v4174, %v4170
    %v4263 = vpack.c.b16 %v4175, %v4171
    %v4264 = vpack.c.b16 %v4176, %v4172
    %v4265 = vpack.c.b16 %v4181, %v4177
    %v4266 = vpack.c.b16 %v4182, %v4178
    %v4267 = vpack.c.b16 %v4183, %v4179
    %v4268 = vpack.c.b16 %v4184, %v4180
    %v4269 = vpack.c.b16 %v4189, %v4185
    %v4270 = vpack.c.b16 %v4190, %v4186
    %v4271 = vpack.c.b16 %v4191, %v4187
    %v4272 = vpack.c.b16 %v4192, %v4188
    %v4273 = vpack.c.b16 %v4197, %v4193
    %v4274 = vpack.c.b16 %v4198, %v4194
    %v4275 = vpack.c.b16 %v4199, %v4195
    %v4276 = vpack.c.b16 %v4200, %v4196
    %v4277 = vpack.c.b16 %v4205, %v4201
    %v4278 = vpack.c.b16 %v4206, %v4202
    %v4279 = vpack.c.b16 %v4207, %v4203
    %v4280 = vpack.c.b16 %v4208, %v4204
    %v4281 = vpack.c.b16 %v4213, %v4209
    %v4282 = vpack.c.b16 %v4214, %v4210
    %v4283 = vpack.c.b16 %v4215, %v4211
    %v4284 = vpack.c.b16 %v4216, %v4212
    %v4285 = vpack.c.b16 %v4221, %v4217
    %v4286 = vpack.c.b16 %v4222, %v4218
    %v4287 = vpack.c.b16 %v4223, %v4219
    %v4288 = vpack.c.b16 %v4224, %v4220
    %4353 = vmatprep.subr.bf16.mxu0 %v4254
    %4354 = vmatpush1.bf16.msra.mxu0 %v4253
    %4355 = vmatprep.subr.bf16.mxu0 %v4250
    %4356 = vmatpush1.bf16.msra.mxu0 %v4249
    %4357 = vmatprep.subr.bf16.mxu0 %v4246
    %4358 = vmatpush1.bf16.msra.mxu0 %v4245
    %4359 = vmatprep.subr.bf16.mxu0 %v4242
    %4360 = vmatpush1.bf16.msra.mxu0 %v4241
    %4361 = vmatprep.subr.bf16.mxu0 %v4238
    %4362 = vmatpush1.bf16.msra.mxu0 %v4237
    %4363 = vmatprep.subr.bf16.mxu0 %v4234
    %4364 = vmatpush1.bf16.msra.mxu0 %v4233
    %4365 = vmatprep.subr.bf16.mxu0 %v4230
    %4366 = vmatpush1.bf16.msra.mxu0 %v4229
    %4367 = vmatprep.subr.bf16.mxu0 %v4226
    %4368 = vmatpush1.bf16.msra.mxu0 %v4225
    %4369 = vmatprep.subr.bf16.mxu0 %v4286
    %4370 = vmatpush2.bf16.msra.mxu0 %v4285
    %4371 = vmatprep.subr.bf16.mxu0 %v4282
    %4372 = vmatpush2.bf16.msra.mxu0 %v4281
    %4373 = vmatprep.subr.bf16.mxu0 %v4278
    %4374 = vmatpush2.bf16.msra.mxu0 %v4277
    %4375 = vmatprep.subr.bf16.mxu0 %v4274
    %4376 = vmatpush2.bf16.msra.mxu0 %v4273
    %4377 = vmatprep.subr.bf16.mxu0 %v4270
    %4378 = vmatpush2.bf16.msra.mxu0 %v4269
    %4379 = vmatprep.subr.bf16.mxu0 %v4266
    %4380 = vmatpush2.bf16.msra.mxu0 %v4265
    %4381 = vmatprep.subr.bf16.mxu0 %v4262
    %4382 = vmatpush2.bf16.msra.mxu0 %v4261
    %4383 = vmatprep.subr.bf16.mxu0 %v4258
    %4384 = vmatpush2.bf16.msra.mxu0 %v4257
    %4385 = vmatprep.mubr.bf16.mxu0 %v3824
    %4386 = vmatmul.mubr.bf16.gmra.mxu0 %v3946
    %v4387 = vpop.f32.mrf.mxu0
    %v4388 = vadd.f32 %v4016, %v4387
    %v4389 = vpop.f32.mrf.mxu0
    %v4390 = vadd.f32 %v4020, %v4389
    %v4391 = vpop.f32.mrf.mxu0
    %v4392 = vpop.f32.mrf.mxu0
    %4393 = vdwg.mxu0
    %4394 = vmatprep.subr.bf16.mxu0 %v4256
    %4395 = vmatpush1.bf16.msra.mxu0 %v4255
    %4396 = vmatprep.subr.bf16.mxu0 %v4252
    %4397 = vmatpush1.bf16.msra.mxu0 %v4251
    %4398 = vmatprep.subr.bf16.mxu0 %v4248
    %4399 = vmatpush1.bf16.msra.mxu0 %v4247
    %4400 = vmatprep.subr.bf16.mxu0 %v4244
    %4401 = vmatpush1.bf16.msra.mxu0 %v4243
    %4402 = vmatprep.subr.bf16.mxu0 %v4240
    %4403 = vmatpush1.bf16.msra.mxu0 %v4239
    %4404 = vmatprep.subr.bf16.mxu0 %v4236
    %4405 = vmatpush1.bf16.msra.mxu0 %v4235
    %4406 = vmatprep.subr.bf16.mxu0 %v4232
    %4407 = vmatpush1.bf16.msra.mxu0 %v4231
    %4408 = vmatprep.subr.bf16.mxu0 %v4228
    %4409 = vmatpush1.bf16.msra.mxu0 %v4227
    %4410 = vmatprep.subr.bf16.mxu0 %v4288
    %4411 = vmatpush2.bf16.msra.mxu0 %v4287
    %4412 = vmatprep.subr.bf16.mxu0 %v4284
    %4413 = vmatpush2.bf16.msra.mxu0 %v4283
    %4414 = vmatprep.subr.bf16.mxu0 %v4280
    %4415 = vmatpush2.bf16.msra.mxu0 %v4279
    %4416 = vmatprep.subr.bf16.mxu0 %v4276
    %4417 = vmatpush2.bf16.msra.mxu0 %v4275
    %4418 = vmatprep.subr.bf16.mxu0 %v4272
    %4419 = vmatpush2.bf16.msra.mxu0 %v4271
    %4420 = vmatprep.subr.bf16.mxu0 %v4268
    %4421 = vmatpush2.bf16.msra.mxu0 %v4267
    %4422 = vmatprep.subr.bf16.mxu0 %v4264
    %4423 = vmatpush2.bf16.msra.mxu0 %v4263
    %4424 = vmatprep.subr.bf16.mxu0 %v4260
    %4425 = vmatpush2.bf16.msra.mxu0 %v4259
    %4426 = vmatprep.mubr.bf16.mxu0 %v3824
    %4427 = vmatmul.mubr.bf16.gmra.mxu0 %v3946
    %v4428 = vpop.f32.mrf.mxu0
    %v4429 = vadd.f32 %v4024, %v4428
    %v4430 = vpop.f32.mrf.mxu0
    %v4431 = vadd.f32 %v4028, %v4430
    %v4432 = vpop.f32.mrf.mxu0
    %v4433 = vpop.f32.mrf.mxu0
    %4434 = vdwg.mxu0
    %v4435 = vxor.u32 %v4388, 2147483648
    %v4436 = vmul.f32 %v4435, 1.442695
    %v4437 = vpow.pop %v4436
    %v4438 = vadd.f32 %v4437, 1.0
    %v4439 = vrcp.pop %v4438
    %v4440 = vmul.f32 1.0, %v4439
    %v4441 = vxor.u32 %v4390, 2147483648
    %v4442 = vmul.f32 %v4441, 1.442695
    %v4443 = vpow.pop %v4442
    %v4444 = vadd.f32 %v4443, 1.0
    %v4445 = vrcp.pop %v4444
    %v4446 = vmul.f32 1.0, %v4445
    %v4447 = vmul.f32 %v4440, %v4431
    %v4448 = vadd.f32 %v4429, %v4447
    %v4449 = vtanh.pop %v4448
    %v4450 = vsub.f32 1.0, %v4446
    %v4451 = vmul.f32 %v4450, %v4449
    %v4452 = vmul.f32 %v4446, %v3823
    %v4453 = vadd.f32 %v4451, %v4452
    %v4454 = vpack.c.bf16 %v4453, %v4453
    %v4455 = vld [vmem:[#allocation8] sm:$0xf]
    %v4456 = vld [vmem:[#allocation8 + $0x4] sm:$0xf]
    %v4457 = vld [vmem:[#allocation8 + $0x8] sm:$0xf]
    %v4458 = vld [vmem:[#allocation8 + $0xc] sm:$0xf]
    %v4459 = vld [vmem:[#allocation8 + $0x10] sm:$0xf]
    %v4460 = vld [vmem:[#allocation8 + $0x14] sm:$0xf]
    %v4461 = vld [vmem:[#allocation8 + $0x18] sm:$0xf]
    %v4462 = vld [vmem:[#allocation8 + $0x1c] sm:$0xf]
    %v4463 = vld [vmem:[#allocation8 + $0x20] sm:$0xf]
    %v4464 = vld [vmem:[#allocation8 + $0x24] sm:$0xf]
    %v4465 = vld [vmem:[#allocation8 + $0x28] sm:$0xf]
    %v4466 = vld [vmem:[#allocation8 + $0x2c] sm:$0xf]
    %v4467 = vld [vmem:[#allocation8 + $0x30] sm:$0xf]
    %v4468 = vld [vmem:[#allocation8 + $0x34] sm:$0xf]
    %v4469 = vld [vmem:[#allocation8 + $0x38] sm:$0xf]
    %v4470 = vld [vmem:[#allocation8 + $0x3c] sm:$0xf]
    %v4471 = vld [vmem:[%s7] sm:$0x1]
    %v4473 = vlaneseq
    %v4474 = vshrl.u32 %v4473, 7
    %v4475 = vsub.s32 0, %v4474
    %v4476 = vrot.slane %v4471, %v4475
    %v4494 = vunpack.c.l.b16 %v4455
    %v4495 = vunpack.c.l.b16 %v4456
    %v4496 = vunpack.c.l.b16 %v4457
    %v4497 = vunpack.c.l.b16 %v4458
    %v4498 = vunpack.c.l.b16 %v4459
    %v4499 = vunpack.c.l.b16 %v4460
    %v4500 = vunpack.c.l.b16 %v4461
    %v4501 = vunpack.c.l.b16 %v4462
    %v4502 = vunpack.c.l.b16 %v4463
    %v4503 = vunpack.c.l.b16 %v4464
    %v4504 = vunpack.c.l.b16 %v4465
    %v4505 = vunpack.c.l.b16 %v4466
    %v4506 = vunpack.c.l.b16 %v4467
    %v4507 = vunpack.c.l.b16 %v4468
    %v4508 = vunpack.c.l.b16 %v4469
    %v4509 = vunpack.c.l.b16 %v4470
    %v4510 = vpack.c.b16 %v4495, %v4494
    %v4511 = vpack.c.b16 %v4497, %v4496
    %v4512 = vpack.c.b16 %v4499, %v4498
    %v4513 = vpack.c.b16 %v4501, %v4500
    %v4514 = vpack.c.b16 %v4503, %v4502
    %v4515 = vpack.c.b16 %v4505, %v4504
    %v4516 = vpack.c.b16 %v4507, %v4506
    %v4517 = vpack.c.b16 %v4509, %v4508
    %4526 = vmatprep.subr.bf16.mxu0 0
    %4527 = vmatpush1.bf16.msra.mxu0 %v4517
    %4528 = vmatprep.subr.bf16.mxu0 0
    %4529 = vmatpush1.bf16.msra.mxu0 %v4516
    %4530 = vmatprep.subr.bf16.mxu0 0
    %4531 = vmatpush1.bf16.msra.mxu0 %v4515
    %4532 = vmatprep.subr.bf16.mxu0 0
    %4533 = vmatpush1.bf16.msra.mxu0 %v4514
    %4534 = vmatprep.subr.bf16.mxu0 0
    %4535 = vmatpush1.bf16.msra.mxu0 %v4513
    %4536 = vmatprep.subr.bf16.mxu0 0
    %4537 = vmatpush1.bf16.msra.mxu0 %v4512
    %4538 = vmatprep.subr.bf16.mxu0 0
    %4539 = vmatpush1.bf16.msra.mxu0 %v4511
    %4540 = vmatprep.subr.bf16.mxu0 0
    %4541 = vmatpush1.bf16.msra.mxu0 %v4510
    %4542 = vmatprep.subr.bf16.mxu0 0
    %4543 = vmatpush2.bf16.msra.mxu0 0
    %4544 = vmatprep.subr.bf16.mxu0 0
    %4545 = vmatpush2.bf16.msra.mxu0 0
    %4546 = vmatprep.subr.bf16.mxu0 0
    %4547 = vmatpush2.bf16.msra.mxu0 0
    %4548 = vmatprep.subr.bf16.mxu0 0
    %4549 = vmatpush2.bf16.msra.mxu0 0
    %4550 = vmatprep.subr.bf16.mxu0 0
    %4551 = vmatpush2.bf16.msra.mxu0 0
    %4552 = vmatprep.subr.bf16.mxu0 0
    %4553 = vmatpush2.bf16.msra.mxu0 0
    %4554 = vmatprep.subr.bf16.mxu0 0
    %4555 = vmatpush2.bf16.msra.mxu0 0
    %4556 = vmatprep.subr.bf16.mxu0 0
    %4557 = vmatpush2.bf16.msra.mxu0 0
    %4558 = vmatprep.mubr.bf16.mxu0 0
    %4559 = vmatmul.mubr.bf16.gmra.mxu0 %v4454
    %v4560 = vpop.f32.mrf.mxu0
    %v4561 = vadd.f32 %v4476, %v4560
    %v4562 = vpop.f32.mrf.mxu0
    %v4563 = vpop.f32.mrf.mxu0
    %v4564 = vpop.f32.mrf.mxu0
    %4565 = vdwg.mxu0
    %v4566 = vmax.f32 %v4561, -10.0
    %v4567 = vmin.f32 %v4566, 10.0
    %s4568 = scalar_lea.vmem [#allocation10], 48
    %4569 = vst [vmem:[%s4568] sm:$0xff] %v4567
    %v4570 = vsub.f32 %v4567, %v165
    %4571 = vmax.xlane.f32.xlu0 %v4570
    %v4572 = vpop.xlane.xlu0 %4571
    %vm4573 = vcmp.eq.f32.partialorder %v4570, %v4572
    %v4574 = vsel %vm4573, 1, 0
    %v4575 = vcvt.s32.f32 %v4574
    %v4576 = vpack.c.bf16 %v4575, %v4575
    %v4577 = vld [vmem:[#allocation7] sm:$0xff]
    %v4578 = vld [vmem:[#allocation7 + $0x8] sm:$0xff]
    %v4579 = vld [vmem:[#allocation7 + $0x10] sm:$0xff]
    %v4580 = vld [vmem:[#allocation7 + $0x18] sm:$0xff]
    %v4581 = vld [vmem:[#allocation7 + $0x20] sm:$0xff]
    %v4582 = vld [vmem:[#allocation7 + $0x28] sm:$0xff]
    %v4583 = vld [vmem:[#allocation7 + $0x30] sm:$0xff]
    %v4584 = vld [vmem:[#allocation7 + $0x38] sm:$0xff]
    %v4585 = vld [vmem:[#allocation7 + $0x40] sm:$0xff]
    %v4586 = vld [vmem:[#allocation7 + $0x48] sm:$0xff]
    %v4587 = vld [vmem:[#allocation7 + $0x50] sm:$0xff]
    %v4588 = vld [vmem:[#allocation7 + $0x58] sm:$0xff]
    %v4589 = vld [vmem:[#allocation7 + $0x60] sm:$0xff]
    %v4590 = vld [vmem:[#allocation7 + $0x68] sm:$0xff]
    %v4591 = vld [vmem:[#allocation7 + $0x70] sm:$0xff]
    %v4592 = vld [vmem:[#allocation7 + $0x78] sm:$0xff]
    %v4593 = vld [vmem:[#allocation7 + $0x80] sm:$0xff]
    %v4594 = vld [vmem:[#allocation7 + $0x88] sm:$0xff]
    %v4595 = vld [vmem:[#allocation7 + $0x90] sm:$0xff]
    %v4596 = vld [vmem:[#allocation7 + $0x98] sm:$0xff]
    %v4597 = vld [vmem:[#allocation7 + $0xa0] sm:$0xff]
    %v4598 = vld [vmem:[#allocation7 + $0xa8] sm:$0xff]
    %v4599 = vld [vmem:[#allocation7 + $0xb0] sm:$0xff]
    %v4600 = vld [vmem:[#allocation7 + $0xb8] sm:$0xff]
    %v4601 = vld [vmem:[#allocation7 + $0xc0] sm:$0xff]
    %v4602 = vld [vmem:[#allocation7 + $0xc8] sm:$0xff]
    %v4603 = vld [vmem:[#allocation7 + $0xd0] sm:$0xff]
    %v4604 = vld [vmem:[#allocation7 + $0xd8] sm:$0xff]
    %v4605 = vld [vmem:[#allocation7 + $0xe0] sm:$0xff]
    %v4606 = vld [vmem:[#allocation7 + $0xe8] sm:$0xff]
    %v4607 = vld [vmem:[#allocation7 + $0xf0] sm:$0xff]
    %v4608 = vld [vmem:[#allocation7 + $0xf8] sm:$0xff]
    %v4609 = vld [vmem:[#allocation7 + $0x100] sm:$0xff]
    %v4610 = vld [vmem:[#allocation7 + $0x108] sm:$0xff]
    %v4611 = vld [vmem:[#allocation7 + $0x110] sm:$0xff]
    %v4612 = vld [vmem:[#allocation7 + $0x118] sm:$0xff]
    %v4613 = vld [vmem:[#allocation7 + $0x120] sm:$0xff]
    %v4614 = vld [vmem:[#allocation7 + $0x128] sm:$0xff]
    %v4615 = vld [vmem:[#allocation7 + $0x130] sm:$0xff]
    %v4616 = vld [vmem:[#allocation7 + $0x138] sm:$0xff]
    %v4617 = vld [vmem:[#allocation7 + $0x140] sm:$0xff]
    %v4618 = vld [vmem:[#allocation7 + $0x148] sm:$0xff]
    %v4619 = vld [vmem:[#allocation7 + $0x150] sm:$0xff]
    %v4620 = vld [vmem:[#allocation7 + $0x158] sm:$0xff]
    %v4621 = vld [vmem:[#allocation7 + $0x160] sm:$0xff]
    %v4622 = vld [vmem:[#allocation7 + $0x168] sm:$0xff]
    %v4623 = vld [vmem:[#allocation7 + $0x170] sm:$0xff]
    %v4624 = vld [vmem:[#allocation7 + $0x178] sm:$0xff]
    %v4625 = vld [vmem:[#allocation7 + $0x180] sm:$0xff]
    %v4626 = vld [vmem:[#allocation7 + $0x188] sm:$0xff]
    %v4627 = vld [vmem:[#allocation7 + $0x190] sm:$0xff]
    %v4628 = vld [vmem:[#allocation7 + $0x198] sm:$0xff]
    %v4629 = vld [vmem:[#allocation7 + $0x1a0] sm:$0xff]
    %v4630 = vld [vmem:[#allocation7 + $0x1a8] sm:$0xff]
    %v4631 = vld [vmem:[#allocation7 + $0x1b0] sm:$0xff]
    %v4632 = vld [vmem:[#allocation7 + $0x1b8] sm:$0xff]
    %v4633 = vld [vmem:[#allocation7 + $0x1c0] sm:$0xff]
    %v4634 = vld [vmem:[#allocation7 + $0x1c8] sm:$0xff]
    %v4635 = vld [vmem:[#allocation7 + $0x1d0] sm:$0xff]
    %v4636 = vld [vmem:[#allocation7 + $0x1d8] sm:$0xff]
    %v4637 = vld [vmem:[#allocation7 + $0x1e0] sm:$0xff]
    %v4638 = vld [vmem:[#allocation7 + $0x1e8] sm:$0xff]
    %v4639 = vld [vmem:[#allocation7 + $0x1f0] sm:$0xff]
    %v4640 = vld [vmem:[#allocation7 + $0x1f8] sm:$0xff]
    %v4641 = vld [vmem:[%s5] sm:$0xf]
    %v4643 = vlaneseq
    %v4644 = vshrl.u32 %v4643, 7
    %v4645 = vsub.s32 0, %v4644
    %v4646 = vrot.slane %v4641, %v4645
    %v4647 = vlaneseq
    %v4648 = vshrl.u32 %v4647, 7
    %v4649 = vsub.s32 1, %v4648
    %v4650 = vrot.slane %v4641, %v4649
    %v4651 = vlaneseq
    %v4652 = vshrl.u32 %v4651, 7
    %v4653 = vsub.s32 2, %v4652
    %v4654 = vrot.slane %v4641, %v4653
    %v4655 = vlaneseq
    %v4656 = vshrl.u32 %v4655, 7
    %v4657 = vsub.s32 3, %v4656
    %v4658 = vrot.slane %v4641, %v4657
    %v4727 = vunpack.c.l.b16 %v4577
    %v4728 = vunpack.c.h.b16 %v4577
    %v4729 = vunpack.c.l.b16 %v4578
    %v4730 = vunpack.c.h.b16 %v4578
    %v4731 = vunpack.c.l.b16 %v4579
    %v4732 = vunpack.c.h.b16 %v4579
    %v4733 = vunpack.c.l.b16 %v4580
    %v4734 = vunpack.c.h.b16 %v4580
    %v4735 = vunpack.c.l.b16 %v4581
    %v4736 = vunpack.c.h.b16 %v4581
    %v4737 = vunpack.c.l.b16 %v4582
    %v4738 = vunpack.c.h.b16 %v4582
    %v4739 = vunpack.c.l.b16 %v4583
    %v4740 = vunpack.c.h.b16 %v4583
    %v4741 = vunpack.c.l.b16 %v4584
    %v4742 = vunpack.c.h.b16 %v4584
    %v4743 = vunpack.c.l.b16 %v4585
    %v4744 = vunpack.c.h.b16 %v4585
    %v4745 = vunpack.c.l.b16 %v4586
    %v4746 = vunpack.c.h.b16 %v4586
    %v4747 = vunpack.c.l.b16 %v4587
    %v4748 = vunpack.c.h.b16 %v4587
    %v4749 = vunpack.c.l.b16 %v4588
    %v4750 = vunpack.c.h.b16 %v4588
    %v4751 = vunpack.c.l.b16 %v4589
    %v4752 = vunpack.c.h.b16 %v4589
    %v4753 = vunpack.c.l.b16 %v4590
    %v4754 = vunpack.c.h.b16 %v4590
    %v4755 = vunpack.c.l.b16 %v4591
    %v4756 = vunpack.c.h.b16 %v4591
    %v4757 = vunpack.c.l.b16 %v4592
    %v4758 = vunpack.c.h.b16 %v4592
    %v4759 = vunpack.c.l.b16 %v4593
    %v4760 = vunpack.c.h.b16 %v4593
    %v4761 = vunpack.c.l.b16 %v4594
    %v4762 = vunpack.c.h.b16 %v4594
    %v4763 = vunpack.c.l.b16 %v4595
    %v4764 = vunpack.c.h.b16 %v4595
    %v4765 = vunpack.c.l.b16 %v4596
    %v4766 = vunpack.c.h.b16 %v4596
    %v4767 = vunpack.c.l.b16 %v4597
    %v4768 = vunpack.c.h.b16 %v4597
    %v4769 = vunpack.c.l.b16 %v4598
    %v4770 = vunpack.c.h.b16 %v4598
    %v4771 = vunpack.c.l.b16 %v4599
    %v4772 = vunpack.c.h.b16 %v4599
    %v4773 = vunpack.c.l.b16 %v4600
    %v4774 = vunpack.c.h.b16 %v4600
    %v4775 = vunpack.c.l.b16 %v4601
    %v4776 = vunpack.c.h.b16 %v4601
    %v4777 = vunpack.c.l.b16 %v4602
    %v4778 = vunpack.c.h.b16 %v4602
    %v4779 = vunpack.c.l.b16 %v4603
    %v4780 = vunpack.c.h.b16 %v4603
    %v4781 = vunpack.c.l.b16 %v4604
    %v4782 = vunpack.c.h.b16 %v4604
    %v4783 = vunpack.c.l.b16 %v4605
    %v4784 = vunpack.c.h.b16 %v4605
    %v4785 = vunpack.c.l.b16 %v4606
    %v4786 = vunpack.c.h.b16 %v4606
    %v4787 = vunpack.c.l.b16 %v4607
    %v4788 = vunpack.c.h.b16 %v4607
    %v4789 = vunpack.c.l.b16 %v4608
    %v4790 = vunpack.c.h.b16 %v4608
    %v4791 = vunpack.c.l.b16 %v4609
    %v4792 = vunpack.c.h.b16 %v4609
    %v4793 = vunpack.c.l.b16 %v4610
    %v4794 = vunpack.c.h.b16 %v4610
    %v4795 = vunpack.c.l.b16 %v4611
    %v4796 = vunpack.c.h.b16 %v4611
    %v4797 = vunpack.c.l.b16 %v4612
    %v4798 = vunpack.c.h.b16 %v4612
    %v4799 = vunpack.c.l.b16 %v4613
    %v4800 = vunpack.c.h.b16 %v4613
    %v4801 = vunpack.c.l.b16 %v4614
    %v4802 = vunpack.c.h.b16 %v4614
    %v4803 = vunpack.c.l.b16 %v4615
    %v4804 = vunpack.c.h.b16 %v4615
    %v4805 = vunpack.c.l.b16 %v4616
    %v4806 = vunpack.c.h.b16 %v4616
    %v4807 = vunpack.c.l.b16 %v4617
    %v4808 = vunpack.c.h.b16 %v4617
    %v4809 = vunpack.c.l.b16 %v4618
    %v4810 = vunpack.c.h.b16 %v4618
    %v4811 = vunpack.c.l.b16 %v4619
    %v4812 = vunpack.c.h.b16 %v4619
    %v4813 = vunpack.c.l.b16 %v4620
    %v4814 = vunpack.c.h.b16 %v4620
    %v4815 = vunpack.c.l.b16 %v4621
    %v4816 = vunpack.c.h.b16 %v4621
    %v4817 = vunpack.c.l.b16 %v4622
    %v4818 = vunpack.c.h.b16 %v4622
    %v4819 = vunpack.c.l.b16 %v4623
    %v4820 = vunpack.c.h.b16 %v4623
    %v4821 = vunpack.c.l.b16 %v4624
    %v4822 = vunpack.c.h.b16 %v4624
    %v4823 = vunpack.c.l.b16 %v4625
    %v4824 = vunpack.c.h.b16 %v4625
    %v4825 = vunpack.c.l.b16 %v4626
    %v4826 = vunpack.c.h.b16 %v4626
    %v4827 = vunpack.c.l.b16 %v4627
    %v4828 = vunpack.c.h.b16 %v4627
    %v4829 = vunpack.c.l.b16 %v4628
    %v4830 = vunpack.c.h.b16 %v4628
    %v4831 = vunpack.c.l.b16 %v4629
    %v4832 = vunpack.c.h.b16 %v4629
    %v4833 = vunpack.c.l.b16 %v4630
    %v4834 = vunpack.c.h.b16 %v4630
    %v4835 = vunpack.c.l.b16 %v4631
    %v4836 = vunpack.c.h.b16 %v4631
    %v4837 = vunpack.c.l.b16 %v4632
    %v4838 = vunpack.c.h.b16 %v4632
    %v4839 = vunpack.c.l.b16 %v4633
    %v4840 = vunpack.c.h.b16 %v4633
    %v4841 = vunpack.c.l.b16 %v4634
    %v4842 = vunpack.c.h.b16 %v4634
    %v4843 = vunpack.c.l.b16 %v4635
    %v4844 = vunpack.c.h.b16 %v4635
    %v4845 = vunpack.c.l.b16 %v4636
    %v4846 = vunpack.c.h.b16 %v4636
    %v4847 = vunpack.c.l.b16 %v4637
    %v4848 = vunpack.c.h.b16 %v4637
    %v4849 = vunpack.c.l.b16 %v4638
    %v4850 = vunpack.c.h.b16 %v4638
    %v4851 = vunpack.c.l.b16 %v4639
    %v4852 = vunpack.c.h.b16 %v4639
    %v4853 = vunpack.c.l.b16 %v4640
    %v4854 = vunpack.c.h.b16 %v4640
    %v4855 = vpack.c.b16 %v4731, %v4727
    %v4856 = vpack.c.b16 %v4732, %v4728
    %v4857 = vpack.c.b16 %v4733, %v4729
    %v4858 = vpack.c.b16 %v4734, %v4730
    %v4859 = vpack.c.b16 %v4739, %v4735
    %v4860 = vpack.c.b16 %v4740, %v4736
    %v4861 = vpack.c.b16 %v4741, %v4737
    %v4862 = vpack.c.b16 %v4742, %v4738
    %v4863 = vpack.c.b16 %v4747, %v4743
    %v4864 = vpack.c.b16 %v4748, %v4744
    %v4865 = vpack.c.b16 %v4749, %v4745
    %v4866 = vpack.c.b16 %v4750, %v4746
    %v4867 = vpack.c.b16 %v4755, %v4751
    %v4868 = vpack.c.b16 %v4756, %v4752
    %v4869 = vpack.c.b16 %v4757, %v4753
    %v4870 = vpack.c.b16 %v4758, %v4754
    %v4871 = vpack.c.b16 %v4763, %v4759
    %v4872 = vpack.c.b16 %v4764, %v4760
    %v4873 = vpack.c.b16 %v4765, %v4761
    %v4874 = vpack.c.b16 %v4766, %v4762
    %v4875 = vpack.c.b16 %v4771, %v4767
    %v4876 = vpack.c.b16 %v4772, %v4768
    %v4877 = vpack.c.b16 %v4773, %v4769
    %v4878 = vpack.c.b16 %v4774, %v4770
    %v4879 = vpack.c.b16 %v4779, %v4775
    %v4880 = vpack.c.b16 %v4780, %v4776
    %v4881 = vpack.c.b16 %v4781, %v4777
    %v4882 = vpack.c.b16 %v4782, %v4778
    %v4883 = vpack.c.b16 %v4787, %v4783
    %v4884 = vpack.c.b16 %v4788, %v4784
    %v4885 = vpack.c.b16 %v4789, %v4785
    %v4886 = vpack.c.b16 %v4790, %v4786
    %v4887 = vpack.c.b16 %v4795, %v4791
    %v4888 = vpack.c.b16 %v4796, %v4792
    %v4889 = vpack.c.b16 %v4797, %v4793
    %v4890 = vpack.c.b16 %v4798, %v4794
    %v4891 = vpack.c.b16 %v4803, %v4799
    %v4892 = vpack.c.b16 %v4804, %v4800
    %v4893 = vpack.c.b16 %v4805, %v4801
    %v4894 = vpack.c.b16 %v4806, %v4802
    %v4895 = vpack.c.b16 %v4811, %v4807
    %v4896 = vpack.c.b16 %v4812, %v4808
    %v4897 = vpack.c.b16 %v4813, %v4809
    %v4898 = vpack.c.b16 %v4814, %v4810
    %v4899 = vpack.c.b16 %v4819, %v4815
    %v4900 = vpack.c.b16 %v4820, %v4816
    %v4901 = vpack.c.b16 %v4821, %v4817
    %v4902 = vpack.c.b16 %v4822, %v4818
    %v4903 = vpack.c.b16 %v4827, %v4823
    %v4904 = vpack.c.b16 %v4828, %v4824
    %v4905 = vpack.c.b16 %v4829, %v4825
    %v4906 = vpack.c.b16 %v4830, %v4826
    %v4907 = vpack.c.b16 %v4835, %v4831
    %v4908 = vpack.c.b16 %v4836, %v4832
    %v4909 = vpack.c.b16 %v4837, %v4833
    %v4910 = vpack.c.b16 %v4838, %v4834
    %v4911 = vpack.c.b16 %v4843, %v4839
    %v4912 = vpack.c.b16 %v4844, %v4840
    %v4913 = vpack.c.b16 %v4845, %v4841
    %v4914 = vpack.c.b16 %v4846, %v4842
    %v4915 = vpack.c.b16 %v4851, %v4847
    %v4916 = vpack.c.b16 %v4852, %v4848
    %v4917 = vpack.c.b16 %v4853, %v4849
    %v4918 = vpack.c.b16 %v4854, %v4850
    %4983 = vmatprep.subr.bf16.mxu0 %v4884
    %4984 = vmatpush1.bf16.msra.mxu0 %v4883
    %4985 = vmatprep.subr.bf16.mxu0 %v4880
    %4986 = vmatpush1.bf16.msra.mxu0 %v4879
    %4987 = vmatprep.subr.bf16.mxu0 %v4876
    %4988 = vmatpush1.bf16.msra.mxu0 %v4875
    %4989 = vmatprep.subr.bf16.mxu0 %v4872
    %4990 = vmatpush1.bf16.msra.mxu0 %v4871
    %4991 = vmatprep.subr.bf16.mxu0 %v4868
    %4992 = vmatpush1.bf16.msra.mxu0 %v4867
    %4993 = vmatprep.subr.bf16.mxu0 %v4864
    %4994 = vmatpush1.bf16.msra.mxu0 %v4863
    %4995 = vmatprep.subr.bf16.mxu0 %v4860
    %4996 = vmatpush1.bf16.msra.mxu0 %v4859
    %4997 = vmatprep.subr.bf16.mxu0 %v4856
    %4998 = vmatpush1.bf16.msra.mxu0 %v4855
    %4999 = vmatprep.subr.bf16.mxu0 %v4916
    %5000 = vmatpush2.bf16.msra.mxu0 %v4915
    %5001 = vmatprep.subr.bf16.mxu0 %v4912
    %5002 = vmatpush2.bf16.msra.mxu0 %v4911
    %5003 = vmatprep.subr.bf16.mxu0 %v4908
    %5004 = vmatpush2.bf16.msra.mxu0 %v4907
    %5005 = vmatprep.subr.bf16.mxu0 %v4904
    %5006 = vmatpush2.bf16.msra.mxu0 %v4903
    %5007 = vmatprep.subr.bf16.mxu0 %v4900
    %5008 = vmatpush2.bf16.msra.mxu0 %v4899
    %5009 = vmatprep.subr.bf16.mxu0 %v4896
    %5010 = vmatpush2.bf16.msra.mxu0 %v4895
    %5011 = vmatprep.subr.bf16.mxu0 %v4892
    %5012 = vmatpush2.bf16.msra.mxu0 %v4891
    %5013 = vmatprep.subr.bf16.mxu0 %v4888
    %5014 = vmatpush2.bf16.msra.mxu0 %v4887
    %5015 = vmatprep.mubr.bf16.mxu0 %v4454
    %5016 = vmatmul.mubr.bf16.gmra.mxu0 %v4576
    %v5017 = vpop.f32.mrf.mxu0
    %v5018 = vadd.f32 %v4646, %v5017
    %v5019 = vpop.f32.mrf.mxu0
    %v5020 = vadd.f32 %v4650, %v5019
    %v5021 = vpop.f32.mrf.mxu0
    %v5022 = vpop.f32.mrf.mxu0
    %5023 = vdwg.mxu0
    %5024 = vmatprep.subr.bf16.mxu0 %v4886
    %5025 = vmatpush1.bf16.msra.mxu0 %v4885
    %5026 = vmatprep.subr.bf16.mxu0 %v4882
    %5027 = vmatpush1.bf16.msra.mxu0 %v4881
    %5028 = vmatprep.subr.bf16.mxu0 %v4878
    %5029 = vmatpush1.bf16.msra.mxu0 %v4877
    %5030 = vmatprep.subr.bf16.mxu0 %v4874
    %5031 = vmatpush1.bf16.msra.mxu0 %v4873
    %5032 = vmatprep.subr.bf16.mxu0 %v4870
    %5033 = vmatpush1.bf16.msra.mxu0 %v4869
    %5034 = vmatprep.subr.bf16.mxu0 %v4866
    %5035 = vmatpush1.bf16.msra.mxu0 %v4865
    %5036 = vmatprep.subr.bf16.mxu0 %v4862
    %5037 = vmatpush1.bf16.msra.mxu0 %v4861
    %5038 = vmatprep.subr.bf16.mxu0 %v4858
    %5039 = vmatpush1.bf16.msra.mxu0 %v4857
    %5040 = vmatprep.subr.bf16.mxu0 %v4918
    %5041 = vmatpush2.bf16.msra.mxu0 %v4917
    %5042 = vmatprep.subr.bf16.mxu0 %v4914
    %5043 = vmatpush2.bf16.msra.mxu0 %v4913
    %5044 = vmatprep.subr.bf16.mxu0 %v4910
    %5045 = vmatpush2.bf16.msra.mxu0 %v4909
    %5046 = vmatprep.subr.bf16.mxu0 %v4906
    %5047 = vmatpush2.bf16.msra.mxu0 %v4905
    %5048 = vmatprep.subr.bf16.mxu0 %v4902
    %5049 = vmatpush2.bf16.msra.mxu0 %v4901
    %5050 = vmatprep.subr.bf16.mxu0 %v4898
    %5051 = vmatpush2.bf16.msra.mxu0 %v4897
    %5052 = vmatprep.subr.bf16.mxu0 %v4894
    %5053 = vmatpush2.bf16.msra.mxu0 %v4893
    %5054 = vmatprep.subr.bf16.mxu0 %v4890
    %5055 = vmatpush2.bf16.msra.mxu0 %v4889
    %5056 = vmatprep.mubr.bf16.mxu0 %v4454
    %5057 = vmatmul.mubr.bf16.gmra.mxu0 %v4576
    %v5058 = vpop.f32.mrf.mxu0
    %v5059 = vadd.f32 %v4654, %v5058
    %v5060 = vpop.f32.mrf.mxu0
    %v5061 = vadd.f32 %v4658, %v5060
    %v5062 = vpop.f32.mrf.mxu0
    %v5063 = vpop.f32.mrf.mxu0
    %5064 = vdwg.mxu0
    %v5065 = vxor.u32 %v5018, 2147483648
    %v5066 = vmul.f32 %v5065, 1.442695
    %v5067 = vpow.pop %v5066
    %v5068 = vadd.f32 %v5067, 1.0
    %v5069 = vrcp.pop %v5068
    %v5070 = vmul.f32 1.0, %v5069
    %v5071 = vxor.u32 %v5020, 2147483648
    %v5072 = vmul.f32 %v5071, 1.442695
    %v5073 = vpow.pop %v5072
    %v5074 = vadd.f32 %v5073, 1.0
    %v5075 = vrcp.pop %v5074
    %v5076 = vmul.f32 1.0, %v5075
    %v5077 = vmul.f32 %v5070, %v5061
    %v5078 = vadd.f32 %v5059, %v5077
    %v5079 = vtanh.pop %v5078
    %v5080 = vsub.f32 1.0, %v5076
    %v5081 = vmul.f32 %v5080, %v5079
    %v5082 = vmul.f32 %v5076, %v4453
    %v5083 = vadd.f32 %v5081, %v5082
    %v5084 = vpack.c.bf16 %v5083, %v5083
    %v5085 = vld [vmem:[#allocation8] sm:$0xf]
    %v5086 = vld [vmem:[#allocation8 + $0x4] sm:$0xf]
    %v5087 = vld [vmem:[#allocation8 + $0x8] sm:$0xf]
    %v5088 = vld [vmem:[#allocation8 + $0xc] sm:$0xf]
    %v5089 = vld [vmem:[#allocation8 + $0x10] sm:$0xf]
    %v5090 = vld [vmem:[#allocation8 + $0x14] sm:$0xf]
    %v5091 = vld [vmem:[#allocation8 + $0x18] sm:$0xf]
    %v5092 = vld [vmem:[#allocation8 + $0x1c] sm:$0xf]
    %v5093 = vld [vmem:[#allocation8 + $0x20] sm:$0xf]
    %v5094 = vld [vmem:[#allocation8 + $0x24] sm:$0xf]
    %v5095 = vld [vmem:[#allocation8 + $0x28] sm:$0xf]
    %v5096 = vld [vmem:[#allocation8 + $0x2c] sm:$0xf]
    %v5097 = vld [vmem:[#allocation8 + $0x30] sm:$0xf]
    %v5098 = vld [vmem:[#allocation8 + $0x34] sm:$0xf]
    %v5099 = vld [vmem:[#allocation8 + $0x38] sm:$0xf]
    %v5100 = vld [vmem:[#allocation8 + $0x3c] sm:$0xf]
    %v5101 = vld [vmem:[%s7] sm:$0x1]
    %v5103 = vlaneseq
    %v5104 = vshrl.u32 %v5103, 7
    %v5105 = vsub.s32 0, %v5104
    %v5106 = vrot.slane %v5101, %v5105
    %v5124 = vunpack.c.l.b16 %v5085
    %v5125 = vunpack.c.l.b16 %v5086
    %v5126 = vunpack.c.l.b16 %v5087
    %v5127 = vunpack.c.l.b16 %v5088
    %v5128 = vunpack.c.l.b16 %v5089
    %v5129 = vunpack.c.l.b16 %v5090
    %v5130 = vunpack.c.l.b16 %v5091
    %v5131 = vunpack.c.l.b16 %v5092
    %v5132 = vunpack.c.l.b16 %v5093
    %v5133 = vunpack.c.l.b16 %v5094
    %v5134 = vunpack.c.l.b16 %v5095
    %v5135 = vunpack.c.l.b16 %v5096
    %v5136 = vunpack.c.l.b16 %v5097
    %v5137 = vunpack.c.l.b16 %v5098
    %v5138 = vunpack.c.l.b16 %v5099
    %v5139 = vunpack.c.l.b16 %v5100
    %v5140 = vpack.c.b16 %v5125, %v5124
    %v5141 = vpack.c.b16 %v5127, %v5126
    %v5142 = vpack.c.b16 %v5129, %v5128
    %v5143 = vpack.c.b16 %v5131, %v5130
    %v5144 = vpack.c.b16 %v5133, %v5132
    %v5145 = vpack.c.b16 %v5135, %v5134
    %v5146 = vpack.c.b16 %v5137, %v5136
    %v5147 = vpack.c.b16 %v5139, %v5138
    %5156 = vmatprep.subr.bf16.mxu0 0
    %5157 = vmatpush1.bf16.msra.mxu0 %v5147
    %5158 = vmatprep.subr.bf16.mxu0 0
    %5159 = vmatpush1.bf16.msra.mxu0 %v5146
    %5160 = vmatprep.subr.bf16.mxu0 0
    %5161 = vmatpush1.bf16.msra.mxu0 %v5145
    %5162 = vmatprep.subr.bf16.mxu0 0
    %5163 = vmatpush1.bf16.msra.mxu0 %v5144
    %5164 = vmatprep.subr.bf16.mxu0 0
    %5165 = vmatpush1.bf16.msra.mxu0 %v5143
    %5166 = vmatprep.subr.bf16.mxu0 0
    %5167 = vmatpush1.bf16.msra.mxu0 %v5142
    %5168 = vmatprep.subr.bf16.mxu0 0
    %5169 = vmatpush1.bf16.msra.mxu0 %v5141
    %5170 = vmatprep.subr.bf16.mxu0 0
    %5171 = vmatpush1.bf16.msra.mxu0 %v5140
    %5172 = vmatprep.subr.bf16.mxu0 0
    %5173 = vmatpush2.bf16.msra.mxu0 0
    %5174 = vmatprep.subr.bf16.mxu0 0
    %5175 = vmatpush2.bf16.msra.mxu0 0
    %5176 = vmatprep.subr.bf16.mxu0 0
    %5177 = vmatpush2.bf16.msra.mxu0 0
    %5178 = vmatprep.subr.bf16.mxu0 0
    %5179 = vmatpush2.bf16.msra.mxu0 0
    %5180 = vmatprep.subr.bf16.mxu0 0
    %5181 = vmatpush2.bf16.msra.mxu0 0
    %5182 = vmatprep.subr.bf16.mxu0 0
    %5183 = vmatpush2.bf16.msra.mxu0 0
    %5184 = vmatprep.subr.bf16.mxu0 0
    %5185 = vmatpush2.bf16.msra.mxu0 0
    %5186 = vmatprep.subr.bf16.mxu0 0
    %5187 = vmatpush2.bf16.msra.mxu0 0
    %5188 = vmatprep.mubr.bf16.mxu0 0
    %5189 = vmatmul.mubr.bf16.gmra.mxu0 %v5084
    %v5190 = vpop.f32.mrf.mxu0
    %v5191 = vadd.f32 %v5106, %v5190
    %v5192 = vpop.f32.mrf.mxu0
    %v5193 = vpop.f32.mrf.mxu0
    %v5194 = vpop.f32.mrf.mxu0
    %5195 = vdwg.mxu0
    %v5196 = vmax.f32 %v5191, -10.0
    %v5197 = vmin.f32 %v5196, 10.0
    %s5198 = scalar_lea.vmem [#allocation10], 56
    %5199 = vst [vmem:[%s5198] sm:$0xff] %v5197
    // Predicated region
    $region50: #{tpu_custom_call.1} parent=1 // pred_check
      _
    $region51: #{tpu_custom_call.1} parent=1 // pred_check_branch
      %5201 = sbr.rel (0) target = $region53
    $region52: #{tpu_custom_call.1} parent=1 // pred_region
      %s5203 = ssub.s32 1024, 1024
      %5204 = vsyncadd [#allocation4], %s5203
      %s5205 = sshll.u32 [#allocation10], 4
      %s5206 = int_to_ptr.vmem [resolvable:$true] %s5205
      %5211 = dma.vmem_to_hbm [thread:$0]  %s5206, 1024, %s8, [#allocation4], 128, 128, 8
    $region53: #{tpu_custom_call.1} parent=1 // pred_fallthru
      _
    // Predicated region
    $region54: #{tpu_custom_call.1} parent=1 // pred_check
      _
    $region55: #{tpu_custom_call.1} parent=1 // pred_check_branch
      %5213 = sbr.rel (0) target = $region57
    $region56: #{tpu_custom_call.1} parent=1 // pred_region
      %5214 = dma.done [#allocation4], 1024
    $region57: #{tpu_custom_call.1} parent=1 // pred_fallthru
      _
    %5215 = vsyncpa [#allocation3], 1
    %5216 = vsyncpa [#allocation6], 1
    %5217 = vsyncpa [#allocation9], 1
    %5218 = vsyncpa [#allocation4], 1

</llo_original>
